<compile_context>
chip_gen: v5e
topology: v5e:2x2
jax: 0.10.0
libtpu: 0.0.40
codegen_flags: <defaults>
</compile_context>

<pallas_src>
import functools
import numpy as np
import jax
import jax.numpy as jnp
from jax.experimental import pallas as pl
from jax.experimental.pallas import tpu as pltpu


# -------------------------- hardware-aware config ---------------------------

@functools.lru_cache(maxsize=None)
def _hw_config():
    """Scoped-VMEM limit + dense tile targets per TPU generation."""
    try:
        cap = getattr(pltpu.get_tpu_info(), "vmem_capacity_bytes", None)
    except Exception:
        cap = None
    if cap is not None and cap >= 96 * 1024 * 1024:      # v5e / v6e: 128 MiB VMEM
        return {"vmem": 64 * 1024 * 1024, "tm": 512, "tn": 512, "tk": 512}
    if cap is not None:                                   # v7x: 64 MiB VMEM per TC
        return {"vmem": 40 * 1024 * 1024, "tm": 256, "tn": 256, "tk": 512}
    return {"vmem": 32 * 1024 * 1024, "tm": 256, "tn": 256, "tk": 512}


def _round_up(x, m):
    return (x + m - 1) // m * m


def _pick_tile(dim, target):
    """(tile, padded_dim). Dims <= target use the full extent (legal block dim,
    no padding); oversize dims use `target` (a multiple of 128)."""
    if dim <= target:
        return dim, dim
    return target, _round_up(dim, target)


# ------------------------------ Pallas kernels ------------------------------

def _dense_kernel(x_ref, w_ref, b_ref, *rest, activation, fuse_ln, eps):
    if fuse_ln:
        r_ref, g_ref, be_ref, o_ref, acc_ref = rest
    else:
        o_ref, acc_ref = rest

    @pl.when(pl.program_id(2) == 0)
    def _():
        acc_ref[...] = jnp.zeros_like(acc_ref)

    # x and w are stored in bf16 in HBM; MXU consumes them directly, f32 acc.
    acc_ref[...] += jnp.dot(x_ref[...], w_ref[...],
                            preferred_element_type=jnp.float32)

    @pl.when(pl.program_id(2) == pl.num_programs(2) - 1)
    def _():
        y = acc_ref[...] + b_ref[...]
        if activation == "relu":
            y = jnp.maximum(y, 0.0)
        if fuse_ln:
            # fused residual add + LayerNorm epilogue (f32 statistics)
            y = y + r_ref[...].astype(jnp.float32)
            mu = jnp.mean(y, axis=-1, keepdims=True)
            var = jnp.mean(jnp.square(y - mu), axis=-1, keepdims=True)
            y = (y - mu) * jax.lax.rsqrt(var + eps)
            y = y * g_ref[...] + be_ref[...]
        o_ref[...] = y.astype(o_ref.dtype)


def dense(x, w, b, activation=None, residual=None, gamma=None, beta=None,
          eps=1e-5):
    """x:(M,K) @ w:(K,N) + b  [-> relu]  [-> LayerNorm(residual + .)].
    (M,N,K) grid, f32 VMEM accumulator, bf16 operands, bf16 output."""
    cfg = _hw_config()
    M, K = x.shape
    N = w.shape[1]
    if x.dtype != jnp.bfloat16:
        x = x.astype(jnp.bfloat16)
    if w.dtype != jnp.bfloat16:
        w = w.astype(jnp.bfloat16)

    tm, Mp = _pick_tile(M, cfg["tm"])
    tk, Kp = _pick_tile(K, cfg["tk"])
    tn, Np = _pick_tile(N, cfg["tn"])

    fuse_ln = residual is not None
    if fuse_ln and tn != Np:
        # LN needs the whole feature row in one output tile; fall back.
        y = dense(x, w, b, activation=activation)
        return add_layernorm(y, residual, gamma, beta, eps=eps)

    # TODO(synk): weight padding belongs in make_params for production shapes;
    #             it is a no-op at the shapes used here.
    xp = x if (Mp == M and Kp == K) else jnp.pad(x, ((0, Mp - M), (0, Kp - K)))
    wp = w if (Kp == K and Np == N) else jnp.pad(w, ((0, Kp - K), (0, Np - N)))
    bp = b if Np == N else jnp.pad(b, (0, Np - N))

    in_specs = [
        pl.BlockSpec((tm, tk), lambda i, j, k: (i, k)),
        pl.BlockSpec((tk, tn), lambda i, j, k: (k, j)),
        pl.BlockSpec((1, tn), lambda i, j, k: (0, j)),
    ]
    args = [xp, wp, bp.reshape(1, Np)]
    if fuse_ln:
        rp = residual if Mp == M else jnp.pad(residual, ((0, Mp - M), (0, 0)))
        in_specs += [
            pl.BlockSpec((tm, tn), lambda i, j, k: (i, j)),
            pl.BlockSpec((1, tn), lambda i, j, k: (0, j)),
            pl.BlockSpec((1, tn), lambda i, j, k: (0, j)),
        ]
        args += [rp, gamma.reshape(1, N), beta.reshape(1, N)]

    out = pl.pallas_call(
        functools.partial(_dense_kernel, activation=activation,
                          fuse_ln=fuse_ln, eps=eps),
        grid=(Mp // tm, Np // tn, Kp // tk),
        in_specs=in_specs,
        out_specs=pl.BlockSpec((tm, tn), lambda i, j, k: (i, j)),
        out_shape=jax.ShapeDtypeStruct((Mp, Np), jnp.bfloat16),
        scratch_shapes=[pltpu.VMEM((tm, tn), jnp.float32)],
        compiler_params=pltpu.CompilerParams(
            dimension_semantics=("parallel", "parallel", "arbitrary"),
            vmem_limit_bytes=cfg["vmem"],
        ),
    )(*args)
    if Mp != M or Np != N:
        out = out[:M, :N]
    return out


def _add_ln_kernel(x_ref, r_ref, g_ref, b_ref, o_ref, *, eps):
    x = x_ref[...].astype(jnp.float32) + r_ref[...].astype(jnp.float32)
    mu = jnp.mean(x, axis=-1, keepdims=True)
    var = jnp.mean(jnp.square(x - mu), axis=-1, keepdims=True)
    y = (x - mu) * jax.lax.rsqrt(var + eps)
    o_ref[...] = (y * g_ref[...] + b_ref[...]).astype(o_ref.dtype)


def add_layernorm(x, r, gamma, beta, eps=1e-5):
    """Standalone LayerNorm(x + r) fallback (only used when d_model exceeds
    one output tile and the fused dense epilogue cannot be applied)."""
    cfg = _hw_config()
    M, D = x.shape
    tm, Mp = _pick_tile(M, cfg["tm"])
    xp = x if Mp == M else jnp.pad(x, ((0, Mp - M), (0, 0)))
    rp = r if Mp == M else jnp.pad(r, ((0, Mp - M), (0, 0)))
    out = pl.pallas_call(
        functools.partial(_add_ln_kernel, eps=eps),
        grid=(Mp // tm,),
        in_specs=[
            pl.BlockSpec((tm, D), lambda i: (i, 0)),
            pl.BlockSpec((tm, D), lambda i: (i, 0)),
            pl.BlockSpec((1, D), lambda i: (0, 0)),
            pl.BlockSpec((1, D), lambda i: (0, 0)),
        ],
        out_specs=pl.BlockSpec((tm, D), lambda i: (i, 0)),
        out_shape=jax.ShapeDtypeStruct((Mp, D), jnp.bfloat16),
        compiler_params=pltpu.CompilerParams(
            dimension_semantics=("parallel",),
            vmem_limit_bytes=cfg["vmem"],
        ),
    )(xp, rp, gamma.reshape(1, D), beta.reshape(1, D))
    return out[:M] if Mp != M else out


def _attention_heads(q, k, v, bias, o_ref, *, num_heads, scale):
    """Shared per-head attention core. q:(Sq,D), k/v:(Sk,D), bias broadcasts
    over rows. Each head's result is stored straight into its lane slice."""
    Sq, D = q.shape
    dh = D // num_heads
    for h in range(num_heads):                       # static loop over heads
        qh = q[:, h * dh:(h + 1) * dh]
        kh = k[:, h * dh:(h + 1) * dh]
        vh = v[:, h * dh:(h + 1) * dh]
        # contract last axes directly: no in-kernel transpose of K
        s = jax.lax.dot_general(qh, kh, (((1,), (1,)), ((), ())),
                                preferred_element_type=jnp.float32)
        s = s * scale + bias                          # mask added in f32
        s = s - jnp.max(s, axis=-1, keepdims=True)
        p = jnp.exp(s)
        # approx reciprocal (EUP): rows sum to 1 within a few ULP
        p = p * pl.reciprocal(jnp.sum(p, axis=-1, keepdims=True), approx=True)
        o = jnp.dot(p.astype(vh.dtype), vh, preferred_element_type=jnp.float32)
        o_ref[0, :, h * dh:(h + 1) * dh] = o.astype(o_ref.dtype)


def _mha_self_kernel(qkv_ref, kbias_ref, o_ref, *, num_heads, scale, causal):
    D = o_ref.shape[2]
    q = qkv_ref[0, :, 0:D]                  # slice fused QKV in VMEM (free-ish)
    k = qkv_ref[0, :, D:2 * D]
    v = qkv_ref[0, :, 2 * D:3 * D]
    bias = kbias_ref[0]                     # (1, Sk) additive key-padding bias
    if causal:                              # look-ahead mask generated on-chip
        S = q.shape[0]
        row = jax.lax.broadcasted_iota(jnp.int32, (S, S), 0)
        col = jax.lax.broadcasted_iota(jnp.int32, (S, S), 1)
        bias = bias + jnp.where(col > row, -1e9, 0.0).astype(jnp.float32)
    _attention_heads(q, k, v, bias, o_ref, num_heads=num_heads, scale=scale)


def _mha_cross_kernel(q_ref, kv_ref, kbias_ref, o_ref, *, num_heads, scale):
    D = o_ref.shape[2]
    q = q_ref[0]
    k = kv_ref[0, :, 0:D]
    v = kv_ref[0, :, D:2 * D]
    bias = kbias_ref[0]
    _attention_heads(q, k, v, bias, o_ref, num_heads=num_heads, scale=scale)


def fused_mha_self(qkv, kbias, num_heads, causal):
    """qkv: (B, S, 3D) fused projection, kbias: (B, 1, S) additive bias.
    One grid step per batch element; all heads processed in-kernel."""
    cfg = _hw_config()
    B, S, D3 = qkv.shape
    D = D3 // 3
    scale = float(1.0 / np.sqrt(D // num_heads))
    return pl.pallas_call(
        functools.partial(_mha_self_kernel, num_heads=num_heads, scale=scale,
                          causal=causal),
        grid=(B,),
        in_specs=[
            pl.BlockSpec((1, S, D3), lambda b: (b, 0, 0)),
            pl.BlockSpec((1, 1, S), lambda b: (b, 0, 0)),
        ],
        out_specs=pl.BlockSpec((1, S, D), lambda b: (b, 0, 0)),
        out_shape=jax.ShapeDtypeStruct((B, S, D), qkv.dtype),
        compiler_params=pltpu.CompilerParams(
            dimension_semantics=("parallel",),
            vmem_limit_bytes=cfg["vmem"],
        ),
    )(qkv, kbias)


def fused_mha_cross(q, kv, kbias, num_heads):
    """q: (B, Sq, D), kv: (B, Sk, 2D) fused [K|V], kbias: (B, 1, Sk)."""
    cfg = _hw_config()
    B, Sq, D = q.shape
    Sk = kv.shape[1]
    scale = float(1.0 / np.sqrt(D // num_heads))
    return pl.pallas_call(
        functools.partial(_mha_cross_kernel, num_heads=num_heads, scale=scale),
        grid=(B,),
        in_specs=[
            pl.BlockSpec((1, Sq, D), lambda b: (b, 0, 0)),
            pl.BlockSpec((1, Sk, 2 * D), lambda b: (b, 0, 0)),
            pl.BlockSpec((1, 1, Sk), lambda b: (b, 0, 0)),
        ],
        out_specs=pl.BlockSpec((1, Sq, D), lambda b: (b, 0, 0)),
        out_shape=jax.ShapeDtypeStruct((B, Sq, D), q.dtype),
        compiler_params=pltpu.CompilerParams(
            dimension_semantics=("parallel",),
            vmem_limit_bytes=cfg["vmem"],
        ),
    )(q, kv, kbias)


# -------------------------------- Model glue --------------------------------

def positional_encoding(max_len, d_model):
    pos = np.arange(max_len)[:, None].astype(np.float64)
    i = np.arange(d_model)[None, :].astype(np.float64)
    angle = pos / np.power(10000.0, (2.0 * (i // 2)) / d_model)
    pe = np.zeros((max_len, d_model), dtype=np.float32)
    pe[:, 0::2] = np.sin(angle[:, 0::2])
    pe[:, 1::2] = np.cos(angle[:, 1::2])
    return jnp.asarray(pe)


def embed_tokens(tokens, emb_table, pe, d_model):
    # TODO(synk): embedding-table row gather stays in plain JAX (no clean
    #             Pallas equivalent for a per-token gather at this scale).
    pad = (tokens == 0)                               # padding mask (token id 0)
    x = emb_table[tokens]                             # (B, S, D), f32
    x = jnp.where(pad[..., None], 0.0, x)             # masked_fill_(padding, 0)
    x = x * (1.0 / np.sqrt(d_model))                  # .mul_(embedding_scale)
    x = x + pe[None, : tokens.shape[1], :]            # positional encoding
    # embedding dropout omitted (eval-mode semantics)
    return x.astype(jnp.bfloat16), pad                # bf16 activations in HBM


def encoder_layer(x, kbias, p, num_heads):
    B, S, D = x.shape
    x2d = x.reshape(B * S, D)
    qkv = dense(x2d, p["attn"]["wqkv"], p["attn"]["bqkv"]).reshape(B, S, 3 * D)
    a = fused_mha_self(qkv, kbias, num_heads, causal=False)
    # out-projection + residual add + LayerNorm fused into one kernel
    x2d = dense(a.reshape(B * S, D), p["attn"]["wo"], p["attn"]["bo"],
                residual=x2d, gamma=p["ln1_g"], beta=p["ln1_b"])
    h = dense(x2d, p["ffn"]["w1"], p["ffn"]["b1"], activation="relu")
    x2d = dense(h, p["ffn"]["w2"], p["ffn"]["b2"],
                residual=x2d, gamma=p["ln2_g"], beta=p["ln2_b"])
    return x2d.reshape(B, S, D)


def decoder_layer(y, enc_out, kbias_tgt, kbias_in, p, num_heads):
    B, S, D = y.shape
    Sk = enc_out.shape[1]
    y2d = y.reshape(B * S, D)
    qkv = dense(y2d, p["self_attn"]["wqkv"],
                p["self_attn"]["bqkv"]).reshape(B, S, 3 * D)
    a = fused_mha_self(qkv, kbias_tgt, num_heads, causal=True)
    y2d = dense(a.reshape(B * S, D), p["self_attn"]["wo"], p["self_attn"]["bo"],
                residual=y2d, gamma=p["ln1_g"], beta=p["ln1_b"])
    q = dense(y2d, p["cross_attn"]["wq"], p["cross_attn"]["bq"]).reshape(B, S, D)
    kv = dense(enc_out.reshape(B * Sk, D), p["cross_attn"]["wkv"],
               p["cross_attn"]["bkv"]).reshape(B, Sk, 2 * D)
    c = fused_mha_cross(q, kv, kbias_in, num_heads)
    y2d = dense(c.reshape(B * S, D), p["cross_attn"]["wo"], p["cross_attn"]["bo"],
                residual=y2d, gamma=p["ln2_g"], beta=p["ln2_b"])
    h = dense(y2d, p["ffn"]["w1"], p["ffn"]["b1"], activation="relu")
    y2d = dense(h, p["ffn"]["w2"], p["ffn"]["b2"],
                residual=y2d, gamma=p["ln3_g"], beta=p["ln3_b"])
    return y2d.reshape(B, S, D)


def transformer_forward(params, input_sentences, decoded_outputs, *,
                        d_model, num_heads):
    # ----- encode -----
    x, pad_in = embed_tokens(input_sentences, params["embedding"],
                             params["pe"], d_model)
    B, S_in, _ = x.shape
    # additive key-padding bias, (B, 1, Sk): the only mask ever sent to HBM
    kbias_in = jnp.where(pad_in, -1e9, 0.0).astype(jnp.float32).reshape(B, 1, S_in)
    for lp in params["encoder"]:
        x = encoder_layer(x, kbias_in, lp, num_heads)
    encoder_outputs = x

    # ----- decode -----
    y, pad_tgt = embed_tokens(decoded_outputs, params["embedding"],
                              params["pe"], d_model)
    S_tgt = y.shape[1]
    kbias_tgt = jnp.where(pad_tgt, -1e9, 0.0).astype(jnp.float32).reshape(B, 1, S_tgt)
    for lp in params["decoder"]:
        y = decoder_layer(y, encoder_outputs, kbias_tgt, kbias_in, lp, num_heads)

    # forward() returns decoder outputs (no vocab projection)
    return y.astype(jnp.float32)


# -------------------------------- Parameters ---------------------------------

def _xavier(key, fan_in, fan_out):
    std = np.sqrt(2.0 / (fan_in + fan_out))
    # weights stored in bf16 (cast once) -- halves HBM traffic of dense()
    return (std * jax.random.normal(key, (fan_in, fan_out))).astype(jnp.bfloat16)


def _make_self_attn_params(key, d_model):
    ks = jax.random.split(key, 4)
    wq, wk, wv, wo = (_xavier(k, d_model, d_model) for k in ks)
    return {
        "wqkv": jnp.concatenate([wq, wk, wv], axis=1),           # (D, 3D) fused
        "bqkv": jnp.zeros((3 * d_model,), jnp.float32),
        "wo": wo, "bo": jnp.zeros((d_model,), jnp.float32),
    }


def _make_cross_attn_params(key, d_model):
    ks = jax.random.split(key, 4)
    wq, wk, wv, wo = (_xavier(k, d_model, d_model) for k in ks)
    return {
        "wq": wq, "bq": jnp.zeros((d_model,), jnp.float32),
        "wkv": jnp.concatenate([wk, wv], axis=1),                # (D, 2D) fused
        "bkv": jnp.zeros((2 * d_model,), jnp.float32),
        "wo": wo, "bo": jnp.zeros((d_model,), jnp.float32),
    }


def _make_ffn_params(key, d_model, d_ff):
    k1, k2 = jax.random.split(key)
    return {
        "w1": _xavier(k1, d_model, d_ff), "b1": jnp.zeros((d_ff,), jnp.float32),
        "w2": _xavier(k2, d_ff, d_model), "b2": jnp.zeros((d_model,), jnp.float32),
    }


def make_params(key, vocab_size, d_model, d_ff, num_layers, max_len):
    k_emb, k_enc, k_dec = jax.random.split(key, 3)
    emb = (d_model ** -0.5) * jax.random.normal(k_emb, (vocab_size, d_model))
    params = {
        "embedding": emb.astype(jnp.float32),
        "pe": positional_encoding(max_len, d_model),
        "encoder": [],
        "decoder": [],
    }
    enc_keys = jax.random.split(k_enc, num_layers)
    for lk in enc_keys:
        k1, k2 = jax.random.split(lk)
        params["encoder"].append({
            "attn": _make_self_attn_params(k1, d_model),
            "ffn": _make_ffn_params(k2, d_model, d_ff),
            "ln1_g": jnp.ones((d_model,), jnp.float32),
            "ln1_b": jnp.zeros((d_model,), jnp.float32),
            "ln2_g": jnp.ones((d_model,), jnp.float32),
            "ln2_b": jnp.zeros((d_model,), jnp.float32),
        })
    dec_keys = jax.random.split(k_dec, num_layers)
    for lk in dec_keys:
        k1, k2, k3 = jax.random.split(lk, 3)
        params["decoder"].append({
            "self_attn": _make_self_attn_params(k1, d_model),
            "cross_attn": _make_cross_attn_params(k2, d_model),
            "ffn": _make_ffn_params(k3, d_model, d_ff),
            "ln1_g": jnp.ones((d_model,), jnp.float32),
            "ln1_b": jnp.zeros((d_model,), jnp.float32),
            "ln2_g": jnp.ones((d_model,), jnp.float32),
            "ln2_b": jnp.zeros((d_model,), jnp.float32),
            "ln3_g": jnp.ones((d_model,), jnp.float32),
            "ln3_b": jnp.zeros((d_model,), jnp.float32),
        })
    return params


# ----------------------------------- Main ------------------------------------

if __name__ == "__main__":
    vocab_size, d_model, d_ff, num_heads, num_layers = 50, 32, 64, 4, 2
    batch, seq_in, seq_tgt, max_len = 2, 8, 8, 16

    root = jax.random.PRNGKey(0)
    k_params, k_in, k_tgt = jax.random.split(root, 3)

    params = make_params(k_params, vocab_size, d_model, d_ff, num_layers, max_len)

    # token ids in [1, vocab); trailing positions set to 0 to exercise padding masks
    input_sentences = jax.random.randint(k_in, (batch, seq_in), 1, vocab_size,
                                         dtype=jnp.int32)
    decoded_outputs = jax.random.randint(k_tgt, (batch, seq_tgt), 1, vocab_size,
                                         dtype=jnp.int32)
    input_sentences = input_sentences.at[:, -2:].set(0)
    decoded_outputs = decoded_outputs.at[:, -1:].set(0)

    fwd = jax.jit(functools.partial(transformer_forward, d_model=d_model,
                                    num_heads=num_heads))
    out = fwd(params, input_sentences, decoded_outputs)
    out = jax.block_until_ready(out)

    assert out.shape == (batch, seq_tgt, d_model)
    assert bool(jnp.all(jnp.isfinite(out)))
    print("KERNEL_OK")
</pallas_src>

<mosaic_0001>
module attributes {stable_mosaic.version = 11 : i64} {
  func.func @_dense_kernel(%arg0: i32, %arg1: i32, %arg2: i32, %arg3: memref<16x32xbf16, #tpu.memory_space<vmem>>, %arg4: memref<32x96xbf16, #tpu.memory_space<vmem>>, %arg5: memref<1x96xf32, #tpu.memory_space<vmem>>, %arg6: memref<16x96xbf16, #tpu.memory_space<vmem>>, %arg7: memref<16x96xf32, #tpu.memory_space<vmem>>) attributes {dimension_semantics = [#tpu.dimension_semantics<parallel>, #tpu.dimension_semantics<parallel>, #tpu.dimension_semantics<arbitrary>], iteration_bounds = array<i64: 1, 1, 1>, scalar_prefetch = 0 : i64, scratch_operands = 1 : i64, tpu.core_type = #tpu.core_type<tc>, window_params = [{transform_indices = @transform_0, window_bounds = array<i64: 16, 32>}, {transform_indices = @transform_1, window_bounds = array<i64: 32, 96>}, {transform_indices = @transform_2, window_bounds = array<i64: 1, 96>}, {transform_indices = @transform_3, window_bounds = array<i64: 16, 96>}]} {
    %c0_i32 = arith.constant 0 : i32
    %0 = arith.cmpi eq, %arg2, %c0_i32 : i32
    %1 = arith.extui %0 : i1 to i32
    %c0_i32_0 = arith.constant 0 : i32
    %2 = arith.cmpi ne, %1, %c0_i32_0 : i32
    scf.if %2 {
      %cst_10 = arith.constant 0.000000e+00 : f32
      %12 = vector.broadcast %cst_10 : f32 to vector<16x96xf32>
      %c0_11 = arith.constant 0 : index
      %c0_12 = arith.constant 0 : index
      %13 = vector.load %arg7[%c0_11, %c0_12] : memref<16x96xf32, #tpu.memory_space<vmem>>, vector<16x96xf32>
      tpu.vector_store %arg7[%c0_11, %c0_12], %12 {strides = array<i32>} : memref<16x96xf32, #tpu.memory_space<vmem>>, vector<16x96xf32>,
    } else {
    }
    %c0 = arith.constant 0 : index
    %c0_1 = arith.constant 0 : index
    %3 = vector.load %arg7[%c0, %c0_1] : memref<16x96xf32, #tpu.memory_space<vmem>>, vector<16x96xf32>
    %c0_2 = arith.constant 0 : index
    %c0_3 = arith.constant 0 : index
    %4 = vector.load %arg3[%c0_2, %c0_3] : memref<16x32xbf16, #tpu.memory_space<vmem>>, vector<16x32xbf16>
    %c0_4 = arith.constant 0 : index
    %c0_5 = arith.constant 0 : index
    %5 = vector.load %arg4[%c0_4, %c0_5] : memref<32x96xbf16, #tpu.memory_space<vmem>>, vector<32x96xbf16>
    %cst = arith.constant dense<0.000000e+00> : vector<16x96xf32>
    %6 = tpu.matmul %4, %5, %cst {dimension_numbers = #tpu.dot_dimension_numbers<[1], [0], [0], [1], [0, 0, 1, 1], [], []>} : vector<16x32xbf16>, vector<32x96xbf16>, vector<16x96xf32> -> vector<16x96xf32>
    %7 = arith.addf %3, %6 : vector<16x96xf32>
    %c0_6 = arith.constant 0 : index
    %c0_7 = arith.constant 0 : index
    %8 = vector.load %arg7[%c0_6, %c0_7] : memref<16x96xf32, #tpu.memory_space<vmem>>, vector<16x96xf32>
    tpu.vector_store %arg7[%c0_6, %c0_7], %7 {strides = array<i32>} : memref<16x96xf32, #tpu.memory_space<vmem>>, vector<16x96xf32>,
    %c0_i32_8 = arith.constant 0 : i32
    %9 = arith.cmpi eq, %arg2, %c0_i32_8 : i32
    %10 = arith.extui %9 : i1 to i32
    %c0_i32_9 = arith.constant 0 : i32
    %11 = arith.cmpi ne, %10, %c0_i32_9 : i32
    scf.if %11 {
      %c0_10 = arith.constant 0 : index
      %c0_11 = arith.constant 0 : index
      %12 = vector.load %arg7[%c0_10, %c0_11] : memref<16x96xf32, #tpu.memory_space<vmem>>, vector<16x96xf32>
      %c0_12 = arith.constant 0 : index
      %c0_13 = arith.constant 0 : index
      %13 = vector.load %arg5[%c0_12, %c0_13] : memref<1x96xf32, #tpu.memory_space<vmem>>, vector<1x96xf32>
      %14 = vector.broadcast %13 : vector<1x96xf32> to vector<16x96xf32>
      %15 = arith.addf %12, %14 : vector<16x96xf32>
      %16 = arith.truncf %15 : vector<16x96xf32> to vector<16x96xbf16>
      %c0_14 = arith.constant 0 : index
      %c0_15 = arith.constant 0 : index
      %17 = vector.load %arg6[%c0_14, %c0_15] : memref<16x96xbf16, #tpu.memory_space<vmem>>, vector<16x96xbf16>
      tpu.vector_store %arg6[%c0_14, %c0_15], %16 {strides = array<i32>} : memref<16x96xbf16, #tpu.memory_space<vmem>>, vector<16x96xbf16>,
    } else {
    }
    return
  }
  func.func @transform_0(%arg0: i32, %arg1: i32, %arg2: i32) -> (i32, i32) {
    %c0_i32 = arith.constant 0 : i32
    return %arg0, %arg2 : i32, i32
  }
  func.func @transform_1(%arg0: i32, %arg1: i32, %arg2: i32) -> (i32, i32) {
    %c0_i32 = arith.constant 0 : i32
    return %arg2, %arg1 : i32, i32
  }
  func.func @transform_2(%arg0: i32, %arg1: i32, %arg2: i32) -> (i32, i32) {
    %c0_i32 = arith.constant 0 : i32
    %c0_i32_0 = arith.constant 0 : i32
    return %c0_i32, %arg1 : i32, i32
  }
  func.func @transform_3(%arg0: i32, %arg1: i32, %arg2: i32) -> (i32, i32) {
    %c0_i32 = arith.constant 0 : i32
    return %arg0, %arg1 : i32, i32
  }
}

module attributes {stable_mosaic.version = 11 : i64} {
  func.func @_dense_kernel(%arg0: i32, %arg1: i32, %arg2: i32, %arg3: memref<16x32xbf16, #tpu.memory_space<vmem>>, %arg4: memref<32x32xbf16, #tpu.memory_space<vmem>>, %arg5: memref<1x32xf32, #tpu.memory_space<vmem>>, %arg6: memref<16x32xbf16, #tpu.memory_space<vmem>>, %arg7: memref<1x32xf32, #tpu.memory_space<vmem>>, %arg8: memref<1x32xf32, #tpu.memory_space<vmem>>, %arg9: memref<16x32xbf16, #tpu.memory_space<vmem>>, %arg10: memref<16x32xf32, #tpu.memory_space<vmem>>) attributes {dimension_semantics = [#tpu.dimension_semantics<parallel>, #tpu.dimension_semantics<parallel>, #tpu.dimension_semantics<arbitrary>], iteration_bounds = array<i64: 1, 1, 1>, scalar_prefetch = 0 : i64, scratch_operands = 1 : i64, tpu.core_type = #tpu.core_type<tc>, window_params = [{transform_indices = @transform_0, window_bounds = array<i64: 16, 32>}, {transform_indices = @transform_1, window_bounds = array<i64: 32, 32>}, {transform_indices = @transform_2, window_bounds = array<i64: 1, 32>}, {transform_indices = @transform_3, window_bounds = array<i64: 16, 32>}, {transform_indices = @transform_4, window_bounds = array<i64: 1, 32>}, {transform_indices = @transform_5, window_bounds = array<i64: 1, 32>}, {transform_indices = @transform_6, window_bounds = array<i64: 16, 32>}]} {
    %c0_i32 = arith.constant 0 : i32
    %0 = arith.cmpi eq, %arg2, %c0_i32 : i32
    %1 = arith.extui %0 : i1 to i32
    %c0_i32_0 = arith.constant 0 : i32
    %2 = arith.cmpi ne, %1, %c0_i32_0 : i32
    scf.if %2 {
      %cst_10 = arith.constant 0.000000e+00 : f32
      %12 = vector.broadcast %cst_10 : f32 to vector<16x32xf32>
      %c0_11 = arith.constant 0 : index
      %c0_12 = arith.constant 0 : index
      %13 = vector.load %arg10[%c0_11, %c0_12] : memref<16x32xf32, #tpu.memory_space<vmem>>, vector<16x32xf32>
      tpu.vector_store %arg10[%c0_11, %c0_12], %12 {strides = array<i32>} : memref<16x32xf32, #tpu.memory_space<vmem>>, vector<16x32xf32>,
    } else {
    }
    %c0 = arith.constant 0 : index
    %c0_1 = arith.constant 0 : index
    %3 = vector.load %arg10[%c0, %c0_1] : memref<16x32xf32, #tpu.memory_space<vmem>>, vector<16x32xf32>
    %c0_2 = arith.constant 0 : index
    %c0_3 = arith.constant 0 : index
    %4 = vector.load %arg3[%c0_2, %c0_3] : memref<16x32xbf16, #tpu.memory_space<vmem>>, vector<16x32xbf16>
    %c0_4 = arith.constant 0 : index
    %c0_5 = arith.constant 0 : index
    %5 = vector.load %arg4[%c0_4, %c0_5] : memref<32x32xbf16, #tpu.memory_space<vmem>>, vector<32x32xbf16>
    %cst = arith.constant dense<0.000000e+00> : vector<16x32xf32>
    %6 = tpu.matmul %4, %5, %cst {dimension_numbers = #tpu.dot_dimension_numbers<[1], [0], [0], [1], [0, 0, 1, 1], [], []>} : vector<16x32xbf16>, vector<32x32xbf16>, vector<16x32xf32> -> vector<16x32xf32>
    %7 = arith.addf %3, %6 : vector<16x32xf32>
    %c0_6 = arith.constant 0 : index
    %c0_7 = arith.constant 0 : index
    %8 = vector.load %arg10[%c0_6, %c0_7] : memref<16x32xf32, #tpu.memory_space<vmem>>, vector<16x32xf32>
    tpu.vector_store %arg10[%c0_6, %c0_7], %7 {strides = array<i32>} : memref<16x32xf32, #tpu.memory_space<vmem>>, vector<16x32xf32>,
    %c0_i32_8 = arith.constant 0 : i32
    %9 = arith.cmpi eq, %arg2, %c0_i32_8 : i32
    %10 = arith.extui %9 : i1 to i32
    %c0_i32_9 = arith.constant 0 : i32
    %11 = arith.cmpi ne, %10, %c0_i32_9 : i32
    scf.if %11 {
      %c0_10 = arith.constant 0 : index
      %c0_11 = arith.constant 0 : index
      %12 = vector.load %arg10[%c0_10, %c0_11] : memref<16x32xf32, #tpu.memory_space<vmem>>, vector<16x32xf32>
      %c0_12 = arith.constant 0 : index
      %c0_13 = arith.constant 0 : index
      %13 = vector.load %arg5[%c0_12, %c0_13] : memref<1x32xf32, #tpu.memory_space<vmem>>, vector<1x32xf32>
      %14 = vector.broadcast %13 : vector<1x32xf32> to vector<16x32xf32>
      %15 = arith.addf %12, %14 : vector<16x32xf32>
      %c0_14 = arith.constant 0 : index
      %c0_15 = arith.constant 0 : index
      %16 = vector.load %arg6[%c0_14, %c0_15] : memref<16x32xbf16, #tpu.memory_space<vmem>>, vector<16x32xbf16>
      %17 = arith.extf %16 : vector<16x32xbf16> to vector<16x32xf32>
      %18 = arith.addf %15, %17 : vector<16x32xf32>
      %cst_16 = arith.constant dense<0.000000e+00> : vector<16xf32>
      %19 = vector.multi_reduction <add>, %18, %cst_16 [1] : vector<16x32xf32> to vector<16xf32>
      %20 = vector.shape_cast %19 : vector<16xf32> to vector<16x1xf32>
      %cst_17 = arith.constant 3.200000e+01 : f32
      %21 = vector.broadcast %cst_17 : f32 to vector<16x1xf32>
      %22 = arith.divf %20, %21 : vector<16x1xf32>
      %23 = vector.broadcast %22 : vector<16x1xf32> to vector<16x32xf32>
      %24 = arith.subf %18, %23 : vector<16x32xf32>
      %25 = arith.mulf %24, %24 : vector<16x32xf32>
      %cst_18 = arith.constant dense<0.000000e+00> : vector<16xf32>
      %26 = vector.multi_reduction <add>, %25, %cst_18 [1] : vector<16x32xf32> to vector<16xf32>
      %27 = vector.shape_cast %26 : vector<16xf32> to vector<16x1xf32>
      %cst_19 = arith.constant 3.200000e+01 : f32
      %28 = vector.broadcast %cst_19 : f32 to vector<16x1xf32>
      %29 = arith.divf %27, %28 : vector<16x1xf32>
      %30 = vector.broadcast %22 : vector<16x1xf32> to vector<16x32xf32>
      %31 = arith.subf %18, %30 : vector<16x32xf32>
      %cst_20 = arith.constant 9.99999974E-6 : f32
      %32 = vector.broadcast %cst_20 : f32 to vector<16x1xf32>
      %33 = arith.addf %29, %32 : vector<16x1xf32>
      %34 = math.rsqrt %33 : vector<16x1xf32>
      %35 = vector.broadcast %34 : vector<16x1xf32> to vector<16x32xf32>
      %36 = arith.mulf %31, %35 : vector<16x32xf32>
      %c0_21 = arith.constant 0 : index
      %c0_22 = arith.constant 0 : index
      %37 = vector.load %arg7[%c0_21, %c0_22] : memref<1x32xf32, #tpu.memory_space<vmem>>, vector<1x32xf32>
      %38 = vector.broadcast %37 : vector<1x32xf32> to vector<16x32xf32>
      %39 = arith.mulf %36, %38 : vector<16x32xf32>
      %c0_23 = arith.constant 0 : index
      %c0_24 = arith.constant 0 : index
      %40 = vector.load %arg8[%c0_23, %c0_24] : memref<1x32xf32, #tpu.memory_space<vmem>>, vector<1x32xf32>
      %41 = vector.broadcast %40 : vector<1x32xf32> to vector<16x32xf32>
      %42 = arith.addf %39, %41 : vector<16x32xf32>
      %43 = arith.truncf %42 : vector<16x32xf32> to vector<16x32xbf16>
      %c0_25 = arith.constant 0 : index
      %c0_26 = arith.constant 0 : index
      %44 = vector.load %arg9[%c0_25, %c0_26] : memref<16x32xbf16, #tpu.memory_space<vmem>>, vector<16x32xbf16>
      tpu.vector_store %arg9[%c0_25, %c0_26], %43 {strides = array<i32>} : memref<16x32xbf16, #tpu.memory_space<vmem>>, vector<16x32xbf16>,
    } else {
    }
    return
  }
  func.func @transform_0(%arg0: i32, %arg1: i32, %arg2: i32) -> (i32, i32) {
    %c0_i32 = arith.constant 0 : i32
    return %arg0, %arg2 : i32, i32
  }
  func.func @transform_1(%arg0: i32, %arg1: i32, %arg2: i32) -> (i32, i32) {
    %c0_i32 = arith.constant 0 : i32
    return %arg2, %arg1 : i32, i32
  }
  func.func @transform_2(%arg0: i32, %arg1: i32, %arg2: i32) -> (i32, i32) {
    %c0_i32 = arith.constant 0 : i32
    %c0_i32_0 = arith.constant 0 : i32
    return %c0_i32, %arg1 : i32, i32
  }
  func.func @transform_3(%arg0: i32, %arg1: i32, %arg2: i32) -> (i32, i32) {
    %c0_i32 = arith.constant 0 : i32
    return %arg0, %arg1 : i32, i32
  }
  func.func @transform_4(%arg0: i32, %arg1: i32, %arg2: i32) -> (i32, i32) {
    %c0_i32 = arith.constant 0 : i32
    %c0_i32_0 = arith.constant 0 : i32
    return %c0_i32, %arg1 : i32, i32
  }
  func.func @transform_5(%arg0: i32, %arg1: i32, %arg2: i32) -> (i32, i32) {
    %c0_i32 = arith.constant 0 : i32
    %c0_i32_0 = arith.constant 0 : i32
    return %c0_i32, %arg1 : i32, i32
  }
  func.func @transform_6(%arg0: i32, %arg1: i32, %arg2: i32) -> (i32, i32) {
    %c0_i32 = arith.constant 0 : i32
    return %arg0, %arg1 : i32, i32
  }
}

module attributes {stable_mosaic.version = 11 : i64} {
  func.func @_dense_kernel(%arg0: i32, %arg1: i32, %arg2: i32, %arg3: memref<16x32xbf16, #tpu.memory_space<vmem>>, %arg4: memref<32x64xbf16, #tpu.memory_space<vmem>>, %arg5: memref<1x64xf32, #tpu.memory_space<vmem>>, %arg6: memref<16x64xbf16, #tpu.memory_space<vmem>>, %arg7: memref<16x64xf32, #tpu.memory_space<vmem>>) attributes {dimension_semantics = [#tpu.dimension_semantics<parallel>, #tpu.dimension_semantics<parallel>, #tpu.dimension_semantics<arbitrary>], iteration_bounds = array<i64: 1, 1, 1>, scalar_prefetch = 0 : i64, scratch_operands = 1 : i64, tpu.core_type = #tpu.core_type<tc>, window_params = [{transform_indices = @transform_0, window_bounds = array<i64: 16, 32>}, {transform_indices = @transform_1, window_bounds = array<i64: 32, 64>}, {transform_indices = @transform_2, window_bounds = array<i64: 1, 64>}, {transform_indices = @transform_3, window_bounds = array<i64: 16, 64>}]} {
    %c0_i32 = arith.constant 0 : i32
    %0 = arith.cmpi eq, %arg2, %c0_i32 : i32
    %1 = arith.extui %0 : i1 to i32
    %c0_i32_0 = arith.constant 0 : i32
    %2 = arith.cmpi ne, %1, %c0_i32_0 : i32
    scf.if %2 {
      %cst_10 = arith.constant 0.000000e+00 : f32
      %12 = vector.broadcast %cst_10 : f32 to vector<16x64xf32>
      %c0_11 = arith.constant 0 : index
      %c0_12 = arith.constant 0 : index
      %13 = vector.load %arg7[%c0_11, %c0_12] : memref<16x64xf32, #tpu.memory_space<vmem>>, vector<16x64xf32>
      tpu.vector_store %arg7[%c0_11, %c0_12], %12 {strides = array<i32>} : memref<16x64xf32, #tpu.memory_space<vmem>>, vector<16x64xf32>,
    } else {
    }
    %c0 = arith.constant 0 : index
    %c0_1 = arith.constant 0 : index
    %3 = vector.load %arg7[%c0, %c0_1] : memref<16x64xf32, #tpu.memory_space<vmem>>, vector<16x64xf32>
    %c0_2 = arith.constant 0 : index
    %c0_3 = arith.constant 0 : index
    %4 = vector.load %arg3[%c0_2, %c0_3] : memref<16x32xbf16, #tpu.memory_space<vmem>>, vector<16x32xbf16>
    %c0_4 = arith.constant 0 : index
    %c0_5 = arith.constant 0 : index
    %5 = vector.load %arg4[%c0_4, %c0_5] : memref<32x64xbf16, #tpu.memory_space<vmem>>, vector<32x64xbf16>
    %cst = arith.constant dense<0.000000e+00> : vector<16x64xf32>
    %6 = tpu.matmul %4, %5, %cst {dimension_numbers = #tpu.dot_dimension_numbers<[1], [0], [0], [1], [0, 0, 1, 1], [], []>} : vector<16x32xbf16>, vector<32x64xbf16>, vector<16x64xf32> -> vector<16x64xf32>
    %7 = arith.addf %3, %6 : vector<16x64xf32>
    %c0_6 = arith.constant 0 : index
    %c0_7 = arith.constant 0 : index
    %8 = vector.load %arg7[%c0_6, %c0_7] : memref<16x64xf32, #tpu.memory_space<vmem>>, vector<16x64xf32>
    tpu.vector_store %arg7[%c0_6, %c0_7], %7 {strides = array<i32>} : memref<16x64xf32, #tpu.memory_space<vmem>>, vector<16x64xf32>,
    %c0_i32_8 = arith.constant 0 : i32
    %9 = arith.cmpi eq, %arg2, %c0_i32_8 : i32
    %10 = arith.extui %9 : i1 to i32
    %c0_i32_9 = arith.constant 0 : i32
    %11 = arith.cmpi ne, %10, %c0_i32_9 : i32
    scf.if %11 {
      %c0_10 = arith.constant 0 : index
      %c0_11 = arith.constant 0 : index
      %12 = vector.load %arg7[%c0_10, %c0_11] : memref<16x64xf32, #tpu.memory_space<vmem>>, vector<16x64xf32>
      %c0_12 = arith.constant 0 : index
      %c0_13 = arith.constant 0 : index
      %13 = vector.load %arg5[%c0_12, %c0_13] : memref<1x64xf32, #tpu.memory_space<vmem>>, vector<1x64xf32>
      %14 = vector.broadcast %13 : vector<1x64xf32> to vector<16x64xf32>
      %15 = arith.addf %12, %14 : vector<16x64xf32>
      %cst_14 = arith.constant 0.000000e+00 : f32
      %16 = vector.broadcast %cst_14 : f32 to vector<16x64xf32>
      %17 = arith.maximumf %15, %16 : vector<16x64xf32>
      %18 = arith.truncf %17 : vector<16x64xf32> to vector<16x64xbf16>
      %c0_15 = arith.constant 0 : index
      %c0_16 = arith.constant 0 : index
      %19 = vector.load %arg6[%c0_15, %c0_16] : memref<16x64xbf16, #tpu.memory_space<vmem>>, vector<16x64xbf16>
      tpu.vector_store %arg6[%c0_15, %c0_16], %18 {strides = array<i32>} : memref<16x64xbf16, #tpu.memory_space<vmem>>, vector<16x64xbf16>,
    } else {
    }
    return
  }
  func.func @transform_0(%arg0: i32, %arg1: i32, %arg2: i32) -> (i32, i32) {
    %c0_i32 = arith.constant 0 : i32
    return %arg0, %arg2 : i32, i32
  }
  func.func @transform_1(%arg0: i32, %arg1: i32, %arg2: i32) -> (i32, i32) {
    %c0_i32 = arith.constant 0 : i32
    return %arg2, %arg1 : i32, i32
  }
  func.func @transform_2(%arg0: i32, %arg1: i32, %arg2: i32) -> (i32, i32) {
    %c0_i32 = arith.constant 0 : i32
    %c0_i32_0 = arith.constant 0 : i32
    return %c0_i32, %arg1 : i32, i32
  }
  func.func @transform_3(%arg0: i32, %arg1: i32, %arg2: i32) -> (i32, i32) {
    %c0_i32 = arith.constant 0 : i32
    return %arg0, %arg1 : i32, i32
  }
}

module attributes {stable_mosaic.version = 11 : i64} {
  func.func @_mha_self_kernel(%arg0: i32, %arg1: memref<1x8x96xbf16, #tpu.memory_space<vmem>>, %arg2: memref<1x1x8xf32, #tpu.memory_space<vmem>>, %arg3: memref<1x8x32xbf16, #tpu.memory_space<vmem>>) attributes {dimension_semantics = [#tpu.dimension_semantics<parallel>], iteration_bounds = array<i64: 2>, scalar_prefetch = 0 : i64, scratch_operands = 0 : i64, tpu.core_type = #tpu.core_type<tc>, window_params = [{transform_indices = @transform_0, window_bounds = array<i64: 1, 8, 96>}, {transform_indices = @transform_1, window_bounds = array<i64: 1, 1, 8>}, {transform_indices = @transform_2, window_bounds = array<i64: 1, 8, 32>}]} {
    %c0 = arith.constant 0 : index
    %c0_0 = arith.constant 0 : index
    %c0_1 = arith.constant 0 : index
    %0 = vector.load %arg1[%c0, %c0_0, %c0_1] : memref<1x8x96xbf16, #tpu.memory_space<vmem>>, vector<1x8x32xbf16>
    %1 = vector.shape_cast %0 : vector<1x8x32xbf16> to vector<8x32xbf16>
    %c0_2 = arith.constant 0 : index
    %c0_3 = arith.constant 0 : index
    %c32 = arith.constant 32 : index
    %2 = vector.load %arg1[%c0_2, %c0_3, %c32] : memref<1x8x96xbf16, #tpu.memory_space<vmem>>, vector<1x8x32xbf16>
    %3 = vector.shape_cast %2 : vector<1x8x32xbf16> to vector<8x32xbf16>
    %c0_4 = arith.constant 0 : index
    %c0_5 = arith.constant 0 : index
    %c64 = arith.constant 64 : index
    %4 = vector.load %arg1[%c0_4, %c0_5, %c64] : memref<1x8x96xbf16, #tpu.memory_space<vmem>>, vector<1x8x32xbf16>
    %5 = vector.shape_cast %4 : vector<1x8x32xbf16> to vector<8x32xbf16>
    %c0_6 = arith.constant 0 : index
    %c0_7 = arith.constant 0 : index
    %c0_8 = arith.constant 0 : index
    %6 = vector.load %arg2[%c0_6, %c0_7, %c0_8] : memref<1x1x8xf32, #tpu.memory_space<vmem>>, vector<1x1x8xf32>
    %7 = vector.shape_cast %6 : vector<1x1x8xf32> to vector<1x8xf32>
    %8 = vector.extract_strided_slice %1 {offsets = [0, 0], sizes = [8, 8], strides = [1, 1]} : vector<8x32xbf16> to vector<8x8xbf16>
    %9 = vector.extract_strided_slice %3 {offsets = [0, 0], sizes = [8, 8], strides = [1, 1]} : vector<8x32xbf16> to vector<8x8xbf16>
    %10 = vector.extract_strided_slice %5 {offsets = [0, 0], sizes = [8, 8], strides = [1, 1]} : vector<8x32xbf16> to vector<8x8xbf16>
    %cst = arith.constant dense<0.000000e+00> : vector<8x8xf32>
    %11 = tpu.matmul %8, %9, %cst {dimension_numbers = #tpu.dot_dimension_numbers<[1], [1], [0], [0], [0, 0, 1, 0], [], []>} : vector<8x8xbf16>, vector<8x8xbf16>, vector<8x8xf32> -> vector<8x8xf32>
    %cst_9 = arith.constant 0.353553385 : f32
    %12 = vector.broadcast %cst_9 : f32 to vector<8x8xf32>
    %13 = arith.mulf %11, %12 : vector<8x8xf32>
    %14 = vector.broadcast %7 : vector<1x8xf32> to vector<8x8xf32>
    %15 = arith.addf %13, %14 : vector<8x8xf32>
    %cst_10 = arith.constant dense<0xFF800000> : vector<8xf32>
    %16 = vector.multi_reduction <maximumf>, %15, %cst_10 [1] : vector<8x8xf32> to vector<8xf32>
    %17 = vector.shape_cast %16 : vector<8xf32> to vector<8x1xf32>
    %18 = vector.broadcast %17 : vector<8x1xf32> to vector<8x8xf32>
    %19 = arith.subf %15, %18 : vector<8x8xf32>
    %20 = math.exp %19 : vector<8x8xf32>
    %cst_11 = arith.constant dense<0.000000e+00> : vector<8xf32>
    %21 = vector.multi_reduction <add>, %20, %cst_11 [1] : vector<8x8xf32> to vector<8xf32>
    %22 = vector.shape_cast %21 : vector<8xf32> to vector<8x1xf32>
    %23 = tpu.reciprocal %22 {approx = true} : vector<8x1xf32> -> vector<8x1xf32>
    %24 = vector.broadcast %23 : vector<8x1xf32> to vector<8x8xf32>
    %25 = arith.mulf %20, %24 : vector<8x8xf32>
    %26 = arith.truncf %25 : vector<8x8xf32> to vector<8x8xbf16>
    %cst_12 = arith.constant dense<0.000000e+00> : vector<8x8xf32>
    %27 = tpu.matmul %26, %10, %cst_12 {dimension_numbers = #tpu.dot_dimension_numbers<[1], [0], [0], [1], [0, 0, 1, 1], [], []>} : vector<8x8xbf16>, vector<8x8xbf16>, vector<8x8xf32> -> vector<8x8xf32>
    %28 = arith.truncf %27 : vector<8x8xf32> to vector<8x8xbf16>
    %c0_13 = arith.constant 0 : index
    %c0_14 = arith.constant 0 : index
    %c0_15 = arith.constant 0 : index
    %29 = vector.load %arg3[%c0_13, %c0_14, %c0_15] : memref<1x8x32xbf16, #tpu.memory_space<vmem>>, vector<1x8x8xbf16>
    %30 = vector.shape_cast %29 : vector<1x8x8xbf16> to vector<8x8xbf16>
    %31 = vector.shape_cast %28 : vector<8x8xbf16> to vector<1x8x8xbf16>
    tpu.vector_store %arg3[%c0_13, %c0_14, %c0_15], %31 {strides = array<i32>} : memref<1x8x32xbf16, #tpu.memory_space<vmem>>, vector<1x8x8xbf16>,
    %32 = vector.extract_strided_slice %1 {offsets = [0, 8], sizes = [8, 8], strides = [1, 1]} : vector<8x32xbf16> to vector<8x8xbf16>
    %33 = vector.extract_strided_slice %3 {offsets = [0, 8], sizes = [8, 8], strides = [1, 1]} : vector<8x32xbf16> to vector<8x8xbf16>
    %34 = vector.extract_strided_slice %5 {offsets = [0, 8], sizes = [8, 8], strides = [1, 1]} : vector<8x32xbf16> to vector<8x8xbf16>
    %cst_16 = arith.constant dense<0.000000e+00> : vector<8x8xf32>
    %35 = tpu.matmul %32, %33, %cst_16 {dimension_numbers = #tpu.dot_dimension_numbers<[1], [1], [0], [0], [0, 0, 1, 0], [], []>} : vector<8x8xbf16>, vector<8x8xbf16>, vector<8x8xf32> -> vector<8x8xf32>
    %cst_17 = arith.constant 0.353553385 : f32
    %36 = vector.broadcast %cst_17 : f32 to vector<8x8xf32>
    %37 = arith.mulf %35, %36 : vector<8x8xf32>
    %38 = vector.broadcast %7 : vector<1x8xf32> to vector<8x8xf32>
    %39 = arith.addf %37, %38 : vector<8x8xf32>
    %cst_18 = arith.constant dense<0xFF800000> : vector<8xf32>
    %40 = vector.multi_reduction <maximumf>, %39, %cst_18 [1] : vector<8x8xf32> to vector<8xf32>
    %41 = vector.shape_cast %40 : vector<8xf32> to vector<8x1xf32>
    %42 = vector.broadcast %41 : vector<8x1xf32> to vector<8x8xf32>
    %43 = arith.subf %39, %42 : vector<8x8xf32>
    %44 = math.exp %43 : vector<8x8xf32>
    %cst_19 = arith.constant dense<0.000000e+00> : vector<8xf32>
    %45 = vector.multi_reduction <add>, %44, %cst_19 [1] : vector<8x8xf32> to vector<8xf32>
    %46 = vector.shape_cast %45 : vector<8xf32> to vector<8x1xf32>
    %47 = tpu.reciprocal %46 {approx = true} : vector<8x1xf32> -> vector<8x1xf32>
    %48 = vector.broadcast %47 : vector<8x1xf32> to vector<8x8xf32>
    %49 = arith.mulf %44, %48 : vector<8x8xf32>
    %50 = arith.truncf %49 : vector<8x8xf32> to vector<8x8xbf16>
    %cst_20 = arith.constant dense<0.000000e+00> : vector<8x8xf32>
    %51 = tpu.matmul %50, %34, %cst_20 {dimension_numbers = #tpu.dot_dimension_numbers<[1], [0], [0], [1], [0, 0, 1, 1], [], []>} : vector<8x8xbf16>, vector<8x8xbf16>, vector<8x8xf32> -> vector<8x8xf32>
    %52 = arith.truncf %51 : vector<8x8xf32> to vector<8x8xbf16>
    %c0_21 = arith.constant 0 : index
    %c0_22 = arith.constant 0 : index
    %c8 = arith.constant 8 : index
    %53 = vector.load %arg3[%c0_21, %c0_22, %c8] : memref<1x8x32xbf16, #tpu.memory_space<vmem>>, vector<1x8x8xbf16>
    %54 = vector.shape_cast %53 : vector<1x8x8xbf16> to vector<8x8xbf16>
    %55 = vector.shape_cast %52 : vector<8x8xbf16> to vector<1x8x8xbf16>
    tpu.vector_store %arg3[%c0_21, %c0_22, %c8], %55 {strides = array<i32>} : memref<1x8x32xbf16, #tpu.memory_space<vmem>>, vector<1x8x8xbf16>,
    %56 = vector.extract_strided_slice %1 {offsets = [0, 16], sizes = [8, 8], strides = [1, 1]} : vector<8x32xbf16> to vector<8x8xbf16>
    %57 = vector.extract_strided_slice %3 {offsets = [0, 16], sizes = [8, 8], strides = [1, 1]} : vector<8x32xbf16> to vector<8x8xbf16>
    %58 = vector.extract_strided_slice %5 {offsets = [0, 16], sizes = [8, 8], strides = [1, 1]} : vector<8x32xbf16> to vector<8x8xbf16>
    %cst_23 = arith.constant dense<0.000000e+00> : vector<8x8xf32>
    %59 = tpu.matmul %56, %57, %cst_23 {dimension_numbers = #tpu.dot_dimension_numbers<[1], [1], [0], [0], [0, 0, 1, 0], [], []>} : vector<8x8xbf16>, vector<8x8xbf16>, vector<8x8xf32> -> vector<8x8xf32>
    %cst_24 = arith.constant 0.353553385 : f32
    %60 = vector.broadcast %cst_24 : f32 to vector<8x8xf32>
    %61 = arith.mulf %59, %60 : vector<8x8xf32>
    %62 = vector.broadcast %7 : vector<1x8xf32> to vector<8x8xf32>
    %63 = arith.addf %61, %62 : vector<8x8xf32>
    %cst_25 = arith.constant dense<0xFF800000> : vector<8xf32>
    %64 = vector.multi_reduction <maximumf>, %63, %cst_25 [1] : vector<8x8xf32> to vector<8xf32>
    %65 = vector.shape_cast %64 : vector<8xf32> to vector<8x1xf32>
    %66 = vector.broadcast %65 : vector<8x1xf32> to vector<8x8xf32>
    %67 = arith.subf %63, %66 : vector<8x8xf32>
    %68 = math.exp %67 : vector<8x8xf32>
    %cst_26 = arith.constant dense<0.000000e+00> : vector<8xf32>
    %69 = vector.multi_reduction <add>, %68, %cst_26 [1] : vector<8x8xf32> to vector<8xf32>
    %70 = vector.shape_cast %69 : vector<8xf32> to vector<8x1xf32>
    %71 = tpu.reciprocal %70 {approx = true} : vector<8x1xf32> -> vector<8x1xf32>
    %72 = vector.broadcast %71 : vector<8x1xf32> to vector<8x8xf32>
    %73 = arith.mulf %68, %72 : vector<8x8xf32>
    %74 = arith.truncf %73 : vector<8x8xf32> to vector<8x8xbf16>
    %cst_27 = arith.constant dense<0.000000e+00> : vector<8x8xf32>
    %75 = tpu.matmul %74, %58, %cst_27 {dimension_numbers = #tpu.dot_dimension_numbers<[1], [0], [0], [1], [0, 0, 1, 1], [], []>} : vector<8x8xbf16>, vector<8x8xbf16>, vector<8x8xf32> -> vector<8x8xf32>
    %76 = arith.truncf %75 : vector<8x8xf32> to vector<8x8xbf16>
    %c0_28 = arith.constant 0 : index
    %c0_29 = arith.constant 0 : index
    %c16 = arith.constant 16 : index
    %77 = vector.load %arg3[%c0_28, %c0_29, %c16] : memref<1x8x32xbf16, #tpu.memory_space<vmem>>, vector<1x8x8xbf16>
    %78 = vector.shape_cast %77 : vector<1x8x8xbf16> to vector<8x8xbf16>
    %79 = vector.shape_cast %76 : vector<8x8xbf16> to vector<1x8x8xbf16>
    tpu.vector_store %arg3[%c0_28, %c0_29, %c16], %79 {strides = array<i32>} : memref<1x8x32xbf16, #tpu.memory_space<vmem>>, vector<1x8x8xbf16>,
    %80 = vector.extract_strided_slice %1 {offsets = [0, 24], sizes = [8, 8], strides = [1, 1]} : vector<8x32xbf16> to vector<8x8xbf16>
    %81 = vector.extract_strided_slice %3 {offsets = [0, 24], sizes = [8, 8], strides = [1, 1]} : vector<8x32xbf16> to vector<8x8xbf16>
    %82 = vector.extract_strided_slice %5 {offsets = [0, 24], sizes = [8, 8], strides = [1, 1]} : vector<8x32xbf16> to vector<8x8xbf16>
    %cst_30 = arith.constant dense<0.000000e+00> : vector<8x8xf32>
    %83 = tpu.matmul %80, %81, %cst_30 {dimension_numbers = #tpu.dot_dimension_numbers<[1], [1], [0], [0], [0, 0, 1, 0], [], []>} : vector<8x8xbf16>, vector<8x8xbf16>, vector<8x8xf32> -> vector<8x8xf32>
    %cst_31 = arith.constant 0.353553385 : f32
    %84 = vector.broadcast %cst_31 : f32 to vector<8x8xf32>
    %85 = arith.mulf %83, %84 : vector<8x8xf32>
    %86 = vector.broadcast %7 : vector<1x8xf32> to vector<8x8xf32>
    %87 = arith.addf %85, %86 : vector<8x8xf32>
    %cst_32 = arith.constant dense<0xFF800000> : vector<8xf32>
    %88 = vector.multi_reduction <maximumf>, %87, %cst_32 [1] : vector<8x8xf32> to vector<8xf32>
    %89 = vector.shape_cast %88 : vector<8xf32> to vector<8x1xf32>
    %90 = vector.broadcast %89 : vector<8x1xf32> to vector<8x8xf32>
    %91 = arith.subf %87, %90 : vector<8x8xf32>
    %92 = math.exp %91 : vector<8x8xf32>
    %cst_33 = arith.constant dense<0.000000e+00> : vector<8xf32>
    %93 = vector.multi_reduction <add>, %92, %cst_33 [1] : vector<8x8xf32> to vector<8xf32>
    %94 = vector.shape_cast %93 : vector<8xf32> to vector<8x1xf32>
    %95 = tpu.reciprocal %94 {approx = true} : vector<8x1xf32> -> vector<8x1xf32>
    %96 = vector.broadcast %95 : vector<8x1xf32> to vector<8x8xf32>
    %97 = arith.mulf %92, %96 : vector<8x8xf32>
    %98 = arith.truncf %97 : vector<8x8xf32> to vector<8x8xbf16>
    %cst_34 = arith.constant dense<0.000000e+00> : vector<8x8xf32>
    %99 = tpu.matmul %98, %82, %cst_34 {dimension_numbers = #tpu.dot_dimension_numbers<[1], [0], [0], [1], [0, 0, 1, 1], [], []>} : vector<8x8xbf16>, vector<8x8xbf16>, vector<8x8xf32> -> vector<8x8xf32>
    %100 = arith.truncf %99 : vector<8x8xf32> to vector<8x8xbf16>
    %c0_35 = arith.constant 0 : index
    %c0_36 = arith.constant 0 : index
    %c24 = arith.constant 24 : index
    %101 = vector.load %arg3[%c0_35, %c0_36, %c24] : memref<1x8x32xbf16, #tpu.memory_space<vmem>>, vector<1x8x8xbf16>
    %102 = vector.shape_cast %101 : vector<1x8x8xbf16> to vector<8x8xbf16>
    %103 = vector.shape_cast %100 : vector<8x8xbf16> to vector<1x8x8xbf16>
    tpu.vector_store %arg3[%c0_35, %c0_36, %c24], %103 {strides = array<i32>} : memref<1x8x32xbf16, #tpu.memory_space<vmem>>, vector<1x8x8xbf16>,
    return
  }
  func.func @transform_0(%arg0: i32) -> (i32, i32, i32) {
    %c0_i32 = arith.constant 0 : i32
    %c0_i32_0 = arith.constant 0 : i32
    %c0_i32_1 = arith.constant 0 : i32
    return %arg0, %c0_i32, %c0_i32_0 : i32, i32, i32
  }
  func.func @transform_1(%arg0: i32) -> (i32, i32, i32) {
    %c0_i32 = arith.constant 0 : i32
    %c0_i32_0 = arith.constant 0 : i32
    %c0_i32_1 = arith.constant 0 : i32
    return %arg0, %c0_i32, %c0_i32_0 : i32, i32, i32
  }
  func.func @transform_2(%arg0: i32) -> (i32, i32, i32) {
    %c0_i32 = arith.constant 0 : i32
    %c0_i32_0 = arith.constant 0 : i32
    %c0_i32_1 = arith.constant 0 : i32
    return %arg0, %c0_i32, %c0_i32_0 : i32, i32, i32
  }
}

module attributes {stable_mosaic.version = 11 : i64} {
  func.func @_dense_kernel(%arg0: i32, %arg1: i32, %arg2: i32, %arg3: memref<16x32xbf16, #tpu.memory_space<vmem>>, %arg4: memref<32x64xbf16, #tpu.memory_space<vmem>>, %arg5: memref<1x64xf32, #tpu.memory_space<vmem>>, %arg6: memref<16x64xbf16, #tpu.memory_space<vmem>>, %arg7: memref<16x64xf32, #tpu.memory_space<vmem>>) attributes {dimension_semantics = [#tpu.dimension_semantics<parallel>, #tpu.dimension_semantics<parallel>, #tpu.dimension_semantics<arbitrary>], iteration_bounds = array<i64: 1, 1, 1>, scalar_prefetch = 0 : i64, scratch_operands = 1 : i64, tpu.core_type = #tpu.core_type<tc>, window_params = [{transform_indices = @transform_0, window_bounds = array<i64: 16, 32>}, {transform_indices = @transform_1, window_bounds = array<i64: 32, 64>}, {transform_indices = @transform_2, window_bounds = array<i64: 1, 64>}, {transform_indices = @transform_3, window_bounds = array<i64: 16, 64>}]} {
    %c0_i32 = arith.constant 0 : i32
    %0 = arith.cmpi eq, %arg2, %c0_i32 : i32
    %1 = arith.extui %0 : i1 to i32
    %c0_i32_0 = arith.constant 0 : i32
    %2 = arith.cmpi ne, %1, %c0_i32_0 : i32
    scf.if %2 {
      %cst_10 = arith.constant 0.000000e+00 : f32
      %12 = vector.broadcast %cst_10 : f32 to vector<16x64xf32>
      %c0_11 = arith.constant 0 : index
      %c0_12 = arith.constant 0 : index
      %13 = vector.load %arg7[%c0_11, %c0_12] : memref<16x64xf32, #tpu.memory_space<vmem>>, vector<16x64xf32>
      tpu.vector_store %arg7[%c0_11, %c0_12], %12 {strides = array<i32>} : memref<16x64xf32, #tpu.memory_space<vmem>>, vector<16x64xf32>,
    } else {
    }
    %c0 = arith.constant 0 : index
    %c0_1 = arith.constant 0 : index
    %3 = vector.load %arg7[%c0, %c0_1] : memref<16x64xf32, #tpu.memory_space<vmem>>, vector<16x64xf32>
    %c0_2 = arith.constant 0 : index
    %c0_3 = arith.constant 0 : index
    %4 = vector.load %arg3[%c0_2, %c0_3] : memref<16x32xbf16, #tpu.memory_space<vmem>>, vector<16x32xbf16>
    %c0_4 = arith.constant 0 : index
    %c0_5 = arith.constant 0 : index
    %5 = vector.load %arg4[%c0_4, %c0_5] : memref<32x64xbf16, #tpu.memory_space<vmem>>, vector<32x64xbf16>
    %cst = arith.constant dense<0.000000e+00> : vector<16x64xf32>
    %6 = tpu.matmul %4, %5, %cst {dimension_numbers = #tpu.dot_dimension_numbers<[1], [0], [0], [1], [0, 0, 1, 1], [], []>} : vector<16x32xbf16>, vector<32x64xbf16>, vector<16x64xf32> -> vector<16x64xf32>
    %7 = arith.addf %3, %6 : vector<16x64xf32>
    %c0_6 = arith.constant 0 : index
    %c0_7 = arith.constant 0 : index
    %8 = vector.load %arg7[%c0_6, %c0_7] : memref<16x64xf32, #tpu.memory_space<vmem>>, vector<16x64xf32>
    tpu.vector_store %arg7[%c0_6, %c0_7], %7 {strides = array<i32>} : memref<16x64xf32, #tpu.memory_space<vmem>>, vector<16x64xf32>,
    %c0_i32_8 = arith.constant 0 : i32
    %9 = arith.cmpi eq, %arg2, %c0_i32_8 : i32
    %10 = arith.extui %9 : i1 to i32
    %c0_i32_9 = arith.constant 0 : i32
    %11 = arith.cmpi ne, %10, %c0_i32_9 : i32
    scf.if %11 {
      %c0_10 = arith.constant 0 : index
      %c0_11 = arith.constant 0 : index
      %12 = vector.load %arg7[%c0_10, %c0_11] : memref<16x64xf32, #tpu.memory_space<vmem>>, vector<16x64xf32>
      %c0_12 = arith.constant 0 : index
      %c0_13 = arith.constant 0 : index
      %13 = vector.load %arg5[%c0_12, %c0_13] : memref<1x64xf32, #tpu.memory_space<vmem>>, vector<1x64xf32>
      %14 = vector.broadcast %13 : vector<1x64xf32> to vector<16x64xf32>
      %15 = arith.addf %12, %14 : vector<16x64xf32>
      %16 = arith.truncf %15 : vector<16x64xf32> to vector<16x64xbf16>
      %c0_14 = arith.constant 0 : index
      %c0_15 = arith.constant 0 : index
      %17 = vector.load %arg6[%c0_14, %c0_15] : memref<16x64xbf16, #tpu.memory_space<vmem>>, vector<16x64xbf16>
      tpu.vector_store %arg6[%c0_14, %c0_15], %16 {strides = array<i32>} : memref<16x64xbf16, #tpu.memory_space<vmem>>, vector<16x64xbf16>,
    } else {
    }
    return
  }
  func.func @transform_0(%arg0: i32, %arg1: i32, %arg2: i32) -> (i32, i32) {
    %c0_i32 = arith.constant 0 : i32
    return %arg0, %arg2 : i32, i32
  }
  func.func @transform_1(%arg0: i32, %arg1: i32, %arg2: i32) -> (i32, i32) {
    %c0_i32 = arith.constant 0 : i32
    return %arg2, %arg1 : i32, i32
  }
  func.func @transform_2(%arg0: i32, %arg1: i32, %arg2: i32) -> (i32, i32) {
    %c0_i32 = arith.constant 0 : i32
    %c0_i32_0 = arith.constant 0 : i32
    return %c0_i32, %arg1 : i32, i32
  }
  func.func @transform_3(%arg0: i32, %arg1: i32, %arg2: i32) -> (i32, i32) {
    %c0_i32 = arith.constant 0 : i32
    return %arg0, %arg1 : i32, i32
  }
}

module attributes {stable_mosaic.version = 11 : i64} {
  func.func @_mha_self_kernel(%arg0: i32, %arg1: memref<1x8x96xbf16, #tpu.memory_space<vmem>>, %arg2: memref<1x1x8xf32, #tpu.memory_space<vmem>>, %arg3: memref<1x8x32xbf16, #tpu.memory_space<vmem>>) attributes {dimension_semantics = [#tpu.dimension_semantics<parallel>], iteration_bounds = array<i64: 2>, scalar_prefetch = 0 : i64, scratch_operands = 0 : i64, tpu.core_type = #tpu.core_type<tc>, window_params = [{transform_indices = @transform_0, window_bounds = array<i64: 1, 8, 96>}, {transform_indices = @transform_1, window_bounds = array<i64: 1, 1, 8>}, {transform_indices = @transform_2, window_bounds = array<i64: 1, 8, 32>}]} {
    %c0 = arith.constant 0 : index
    %c0_0 = arith.constant 0 : index
    %c0_1 = arith.constant 0 : index
    %0 = vector.load %arg1[%c0, %c0_0, %c0_1] : memref<1x8x96xbf16, #tpu.memory_space<vmem>>, vector<1x8x32xbf16>
    %1 = vector.shape_cast %0 : vector<1x8x32xbf16> to vector<8x32xbf16>
    %c0_2 = arith.constant 0 : index
    %c0_3 = arith.constant 0 : index
    %c32 = arith.constant 32 : index
    %2 = vector.load %arg1[%c0_2, %c0_3, %c32] : memref<1x8x96xbf16, #tpu.memory_space<vmem>>, vector<1x8x32xbf16>
    %3 = vector.shape_cast %2 : vector<1x8x32xbf16> to vector<8x32xbf16>
    %c0_4 = arith.constant 0 : index
    %c0_5 = arith.constant 0 : index
    %c64 = arith.constant 64 : index
    %4 = vector.load %arg1[%c0_4, %c0_5, %c64] : memref<1x8x96xbf16, #tpu.memory_space<vmem>>, vector<1x8x32xbf16>
    %5 = vector.shape_cast %4 : vector<1x8x32xbf16> to vector<8x32xbf16>
    %c0_6 = arith.constant 0 : index
    %c0_7 = arith.constant 0 : index
    %c0_8 = arith.constant 0 : index
    %6 = vector.load %arg2[%c0_6, %c0_7, %c0_8] : memref<1x1x8xf32, #tpu.memory_space<vmem>>, vector<1x1x8xf32>
    %7 = vector.shape_cast %6 : vector<1x1x8xf32> to vector<1x8xf32>
    %8 = tpu.iota {dimensions = array<i32: 0>} : vector<8x8xi32>
    %9 = tpu.iota {dimensions = array<i32: 1>} : vector<8x8xi32>
    %10 = arith.cmpi sgt, %9, %8 : vector<8x8xi32>
    %cst = arith.constant -1.000000e+09 : f32
    %cst_9 = arith.constant 0.000000e+00 : f32
    %11 = vector.broadcast %cst : f32 to vector<8x8xf32>
    %12 = vector.broadcast %cst_9 : f32 to vector<8x8xf32>
    %13 = arith.select %10, %11, %12 : vector<8x8xi1>, vector<8x8xf32>
    %14 = vector.broadcast %7 : vector<1x8xf32> to vector<8x8xf32>
    %15 = arith.addf %14, %13 : vector<8x8xf32>
    %16 = vector.extract_strided_slice %1 {offsets = [0, 0], sizes = [8, 8], strides = [1, 1]} : vector<8x32xbf16> to vector<8x8xbf16>
    %17 = vector.extract_strided_slice %3 {offsets = [0, 0], sizes = [8, 8], strides = [1, 1]} : vector<8x32xbf16> to vector<8x8xbf16>
    %18 = vector.extract_strided_slice %5 {offsets = [0, 0], sizes = [8, 8], strides = [1, 1]} : vector<8x32xbf16> to vector<8x8xbf16>
    %cst_10 = arith.constant dense<0.000000e+00> : vector<8x8xf32>
    %19 = tpu.matmul %16, %17, %cst_10 {dimension_numbers = #tpu.dot_dimension_numbers<[1], [1], [0], [0], [0, 0, 1, 0], [], []>} : vector<8x8xbf16>, vector<8x8xbf16>, vector<8x8xf32> -> vector<8x8xf32>
    %cst_11 = arith.constant 0.353553385 : f32
    %20 = vector.broadcast %cst_11 : f32 to vector<8x8xf32>
    %21 = arith.mulf %19, %20 : vector<8x8xf32>
    %22 = arith.addf %21, %15 : vector<8x8xf32>
    %cst_12 = arith.constant dense<0xFF800000> : vector<8xf32>
    %23 = vector.multi_reduction <maximumf>, %22, %cst_12 [1] : vector<8x8xf32> to vector<8xf32>
    %24 = vector.shape_cast %23 : vector<8xf32> to vector<8x1xf32>
    %25 = vector.broadcast %24 : vector<8x1xf32> to vector<8x8xf32>
    %26 = arith.subf %22, %25 : vector<8x8xf32>
    %27 = math.exp %26 : vector<8x8xf32>
    %cst_13 = arith.constant dense<0.000000e+00> : vector<8xf32>
    %28 = vector.multi_reduction <add>, %27, %cst_13 [1] : vector<8x8xf32> to vector<8xf32>
    %29 = vector.shape_cast %28 : vector<8xf32> to vector<8x1xf32>
    %30 = tpu.reciprocal %29 {approx = true} : vector<8x1xf32> -> vector<8x1xf32>
    %31 = vector.broadcast %30 : vector<8x1xf32> to vector<8x8xf32>
    %32 = arith.mulf %27, %31 : vector<8x8xf32>
    %33 = arith.truncf %32 : vector<8x8xf32> to vector<8x8xbf16>
    %cst_14 = arith.constant dense<0.000000e+00> : vector<8x8xf32>
    %34 = tpu.matmul %33, %18, %cst_14 {dimension_numbers = #tpu.dot_dimension_numbers<[1], [0], [0], [1], [0, 0, 1, 1], [], []>} : vector<8x8xbf16>, vector<8x8xbf16>, vector<8x8xf32> -> vector<8x8xf32>
    %35 = arith.truncf %34 : vector<8x8xf32> to vector<8x8xbf16>
    %c0_15 = arith.constant 0 : index
    %c0_16 = arith.constant 0 : index
    %c0_17 = arith.constant 0 : index
    %36 = vector.load %arg3[%c0_15, %c0_16, %c0_17] : memref<1x8x32xbf16, #tpu.memory_space<vmem>>, vector<1x8x8xbf16>
    %37 = vector.shape_cast %36 : vector<1x8x8xbf16> to vector<8x8xbf16>
    %38 = vector.shape_cast %35 : vector<8x8xbf16> to vector<1x8x8xbf16>
    tpu.vector_store %arg3[%c0_15, %c0_16, %c0_17], %38 {strides = array<i32>} : memref<1x8x32xbf16, #tpu.memory_space<vmem>>, vector<1x8x8xbf16>,
    %39 = vector.extract_strided_slice %1 {offsets = [0, 8], sizes = [8, 8], strides = [1, 1]} : vector<8x32xbf16> to vector<8x8xbf16>
    %40 = vector.extract_strided_slice %3 {offsets = [0, 8], sizes = [8, 8], strides = [1, 1]} : vector<8x32xbf16> to vector<8x8xbf16>
    %41 = vector.extract_strided_slice %5 {offsets = [0, 8], sizes = [8, 8], strides = [1, 1]} : vector<8x32xbf16> to vector<8x8xbf16>
    %cst_18 = arith.constant dense<0.000000e+00> : vector<8x8xf32>
    %42 = tpu.matmul %39, %40, %cst_18 {dimension_numbers = #tpu.dot_dimension_numbers<[1], [1], [0], [0], [0, 0, 1, 0], [], []>} : vector<8x8xbf16>, vector<8x8xbf16>, vector<8x8xf32> -> vector<8x8xf32>
    %cst_19 = arith.constant 0.353553385 : f32
    %43 = vector.broadcast %cst_19 : f32 to vector<8x8xf32>
    %44 = arith.mulf %42, %43 : vector<8x8xf32>
    %45 = arith.addf %44, %15 : vector<8x8xf32>
    %cst_20 = arith.constant dense<0xFF800000> : vector<8xf32>
    %46 = vector.multi_reduction <maximumf>, %45, %cst_20 [1] : vector<8x8xf32> to vector<8xf32>
    %47 = vector.shape_cast %46 : vector<8xf32> to vector<8x1xf32>
    %48 = vector.broadcast %47 : vector<8x1xf32> to vector<8x8xf32>
    %49 = arith.subf %45, %48 : vector<8x8xf32>
    %50 = math.exp %49 : vector<8x8xf32>
    %cst_21 = arith.constant dense<0.000000e+00> : vector<8xf32>
    %51 = vector.multi_reduction <add>, %50, %cst_21 [1] : vector<8x8xf32> to vector<8xf32>
    %52 = vector.shape_cast %51 : vector<8xf32> to vector<8x1xf32>
    %53 = tpu.reciprocal %52 {approx = true} : vector<8x1xf32> -> vector<8x1xf32>
    %54 = vector.broadcast %53 : vector<8x1xf32> to vector<8x8xf32>
    %55 = arith.mulf %50, %54 : vector<8x8xf32>
    %56 = arith.truncf %55 : vector<8x8xf32> to vector<8x8xbf16>
    %cst_22 = arith.constant dense<0.000000e+00> : vector<8x8xf32>
    %57 = tpu.matmul %56, %41, %cst_22 {dimension_numbers = #tpu.dot_dimension_numbers<[1], [0], [0], [1], [0, 0, 1, 1], [], []>} : vector<8x8xbf16>, vector<8x8xbf16>, vector<8x8xf32> -> vector<8x8xf32>
    %58 = arith.truncf %57 : vector<8x8xf32> to vector<8x8xbf16>
    %c0_23 = arith.constant 0 : index
    %c0_24 = arith.constant 0 : index
    %c8 = arith.constant 8 : index
    %59 = vector.load %arg3[%c0_23, %c0_24, %c8] : memref<1x8x32xbf16, #tpu.memory_space<vmem>>, vector<1x8x8xbf16>
    %60 = vector.shape_cast %59 : vector<1x8x8xbf16> to vector<8x8xbf16>
    %61 = vector.shape_cast %58 : vector<8x8xbf16> to vector<1x8x8xbf16>
    tpu.vector_store %arg3[%c0_23, %c0_24, %c8], %61 {strides = array<i32>} : memref<1x8x32xbf16, #tpu.memory_space<vmem>>, vector<1x8x8xbf16>,
    %62 = vector.extract_strided_slice %1 {offsets = [0, 16], sizes = [8, 8], strides = [1, 1]} : vector<8x32xbf16> to vector<8x8xbf16>
    %63 = vector.extract_strided_slice %3 {offsets = [0, 16], sizes = [8, 8], strides = [1, 1]} : vector<8x32xbf16> to vector<8x8xbf16>
    %64 = vector.extract_strided_slice %5 {offsets = [0, 16], sizes = [8, 8], strides = [1, 1]} : vector<8x32xbf16> to vector<8x8xbf16>
    %cst_25 = arith.constant dense<0.000000e+00> : vector<8x8xf32>
    %65 = tpu.matmul %62, %63, %cst_25 {dimension_numbers = #tpu.dot_dimension_numbers<[1], [1], [0], [0], [0, 0, 1, 0], [], []>} : vector<8x8xbf16>, vector<8x8xbf16>, vector<8x8xf32> -> vector<8x8xf32>
    %cst_26 = arith.constant 0.353553385 : f32
    %66 = vector.broadcast %cst_26 : f32 to vector<8x8xf32>
    %67 = arith.mulf %65, %66 : vector<8x8xf32>
    %68 = arith.addf %67, %15 : vector<8x8xf32>
    %cst_27 = arith.constant dense<0xFF800000> : vector<8xf32>
    %69 = vector.multi_reduction <maximumf>, %68, %cst_27 [1] : vector<8x8xf32> to vector<8xf32>
    %70 = vector.shape_cast %69 : vector<8xf32> to vector<8x1xf32>
    %71 = vector.broadcast %70 : vector<8x1xf32> to vector<8x8xf32>
    %72 = arith.subf %68, %71 : vector<8x8xf32>
    %73 = math.exp %72 : vector<8x8xf32>
    %cst_28 = arith.constant dense<0.000000e+00> : vector<8xf32>
    %74 = vector.multi_reduction <add>, %73, %cst_28 [1] : vector<8x8xf32> to vector<8xf32>
    %75 = vector.shape_cast %74 : vector<8xf32> to vector<8x1xf32>
    %76 = tpu.reciprocal %75 {approx = true} : vector<8x1xf32> -> vector<8x1xf32>
    %77 = vector.broadcast %76 : vector<8x1xf32> to vector<8x8xf32>
    %78 = arith.mulf %73, %77 : vector<8x8xf32>
    %79 = arith.truncf %78 : vector<8x8xf32> to vector<8x8xbf16>
    %cst_29 = arith.constant dense<0.000000e+00> : vector<8x8xf32>
    %80 = tpu.matmul %79, %64, %cst_29 {dimension_numbers = #tpu.dot_dimension_numbers<[1], [0], [0], [1], [0, 0, 1, 1], [], []>} : vector<8x8xbf16>, vector<8x8xbf16>, vector<8x8xf32> -> vector<8x8xf32>
    %81 = arith.truncf %80 : vector<8x8xf32> to vector<8x8xbf16>
    %c0_30 = arith.constant 0 : index
    %c0_31 = arith.constant 0 : index
    %c16 = arith.constant 16 : index
    %82 = vector.load %arg3[%c0_30, %c0_31, %c16] : memref<1x8x32xbf16, #tpu.memory_space<vmem>>, vector<1x8x8xbf16>
    %83 = vector.shape_cast %82 : vector<1x8x8xbf16> to vector<8x8xbf16>
    %84 = vector.shape_cast %81 : vector<8x8xbf16> to vector<1x8x8xbf16>
    tpu.vector_store %arg3[%c0_30, %c0_31, %c16], %84 {strides = array<i32>} : memref<1x8x32xbf16, #tpu.memory_space<vmem>>, vector<1x8x8xbf16>,
    %85 = vector.extract_strided_slice %1 {offsets = [0, 24], sizes = [8, 8], strides = [1, 1]} : vector<8x32xbf16> to vector<8x8xbf16>
    %86 = vector.extract_strided_slice %3 {offsets = [0, 24], sizes = [8, 8], strides = [1, 1]} : vector<8x32xbf16> to vector<8x8xbf16>
    %87 = vector.extract_strided_slice %5 {offsets = [0, 24], sizes = [8, 8], strides = [1, 1]} : vector<8x32xbf16> to vector<8x8xbf16>
    %cst_32 = arith.constant dense<0.000000e+00> : vector<8x8xf32>
    %88 = tpu.matmul %85, %86, %cst_32 {dimension_numbers = #tpu.dot_dimension_numbers<[1], [1], [0], [0], [0, 0, 1, 0], [], []>} : vector<8x8xbf16>, vector<8x8xbf16>, vector<8x8xf32> -> vector<8x8xf32>
    %cst_33 = arith.constant 0.353553385 : f32
    %89 = vector.broadcast %cst_33 : f32 to vector<8x8xf32>
    %90 = arith.mulf %88, %89 : vector<8x8xf32>
    %91 = arith.addf %90, %15 : vector<8x8xf32>
    %cst_34 = arith.constant dense<0xFF800000> : vector<8xf32>
    %92 = vector.multi_reduction <maximumf>, %91, %cst_34 [1] : vector<8x8xf32> to vector<8xf32>
    %93 = vector.shape_cast %92 : vector<8xf32> to vector<8x1xf32>
    %94 = vector.broadcast %93 : vector<8x1xf32> to vector<8x8xf32>
    %95 = arith.subf %91, %94 : vector<8x8xf32>
    %96 = math.exp %95 : vector<8x8xf32>
    %cst_35 = arith.constant dense<0.000000e+00> : vector<8xf32>
    %97 = vector.multi_reduction <add>, %96, %cst_35 [1] : vector<8x8xf32> to vector<8xf32>
    %98 = vector.shape_cast %97 : vector<8xf32> to vector<8x1xf32>
    %99 = tpu.reciprocal %98 {approx = true} : vector<8x1xf32> -> vector<8x1xf32>
    %100 = vector.broadcast %99 : vector<8x1xf32> to vector<8x8xf32>
    %101 = arith.mulf %96, %100 : vector<8x8xf32>
    %102 = arith.truncf %101 : vector<8x8xf32> to vector<8x8xbf16>
    %cst_36 = arith.constant dense<0.000000e+00> : vector<8x8xf32>
    %103 = tpu.matmul %102, %87, %cst_36 {dimension_numbers = #tpu.dot_dimension_numbers<[1], [0], [0], [1], [0, 0, 1, 1], [], []>} : vector<8x8xbf16>, vector<8x8xbf16>, vector<8x8xf32> -> vector<8x8xf32>
    %104 = arith.truncf %103 : vector<8x8xf32> to vector<8x8xbf16>
    %c0_37 = arith.constant 0 : index
    %c0_38 = arith.constant 0 : index
    %c24 = arith.constant 24 : index
    %105 = vector.load %arg3[%c0_37, %c0_38, %c24] : memref<1x8x32xbf16, #tpu.memory_space<vmem>>, vector<1x8x8xbf16>
    %106 = vector.shape_cast %105 : vector<1x8x8xbf16> to vector<8x8xbf16>
    %107 = vector.shape_cast %104 : vector<8x8xbf16> to vector<1x8x8xbf16>
    tpu.vector_store %arg3[%c0_37, %c0_38, %c24], %107 {strides = array<i32>} : memref<1x8x32xbf16, #tpu.memory_space<vmem>>, vector<1x8x8xbf16>,
    return
  }
  func.func @transform_0(%arg0: i32) -> (i32, i32, i32) {
    %c0_i32 = arith.constant 0 : i32
    %c0_i32_0 = arith.constant 0 : i32
    %c0_i32_1 = arith.constant 0 : i32
    return %arg0, %c0_i32, %c0_i32_0 : i32, i32, i32
  }
  func.func @transform_1(%arg0: i32) -> (i32, i32, i32) {
    %c0_i32 = arith.constant 0 : i32
    %c0_i32_0 = arith.constant 0 : i32
    %c0_i32_1 = arith.constant 0 : i32
    return %arg0, %c0_i32, %c0_i32_0 : i32, i32, i32
  }
  func.func @transform_2(%arg0: i32) -> (i32, i32, i32) {
    %c0_i32 = arith.constant 0 : i32
    %c0_i32_0 = arith.constant 0 : i32
    %c0_i32_1 = arith.constant 0 : i32
    return %arg0, %c0_i32, %c0_i32_0 : i32, i32, i32
  }
}

module attributes {stable_mosaic.version = 11 : i64} {
  func.func @_dense_kernel(%arg0: i32, %arg1: i32, %arg2: i32, %arg3: memref<16x32xbf16, #tpu.memory_space<vmem>>, %arg4: memref<32x32xbf16, #tpu.memory_space<vmem>>, %arg5: memref<1x32xf32, #tpu.memory_space<vmem>>, %arg6: memref<16x32xbf16, #tpu.memory_space<vmem>>, %arg7: memref<16x32xf32, #tpu.memory_space<vmem>>) attributes {dimension_semantics = [#tpu.dimension_semantics<parallel>, #tpu.dimension_semantics<parallel>, #tpu.dimension_semantics<arbitrary>], iteration_bounds = array<i64: 1, 1, 1>, scalar_prefetch = 0 : i64, scratch_operands = 1 : i64, tpu.core_type = #tpu.core_type<tc>, window_params = [{transform_indices = @transform_0, window_bounds = array<i64: 16, 32>}, {transform_indices = @transform_1, window_bounds = array<i64: 32, 32>}, {transform_indices = @transform_2, window_bounds = array<i64: 1, 32>}, {transform_indices = @transform_3, window_bounds = array<i64: 16, 32>}]} {
    %c0_i32 = arith.constant 0 : i32
    %0 = arith.cmpi eq, %arg2, %c0_i32 : i32
    %1 = arith.extui %0 : i1 to i32
    %c0_i32_0 = arith.constant 0 : i32
    %2 = arith.cmpi ne, %1, %c0_i32_0 : i32
    scf.if %2 {
      %cst_10 = arith.constant 0.000000e+00 : f32
      %12 = vector.broadcast %cst_10 : f32 to vector<16x32xf32>
      %c0_11 = arith.constant 0 : index
      %c0_12 = arith.constant 0 : index
      %13 = vector.load %arg7[%c0_11, %c0_12] : memref<16x32xf32, #tpu.memory_space<vmem>>, vector<16x32xf32>
      tpu.vector_store %arg7[%c0_11, %c0_12], %12 {strides = array<i32>} : memref<16x32xf32, #tpu.memory_space<vmem>>, vector<16x32xf32>,
    } else {
    }
    %c0 = arith.constant 0 : index
    %c0_1 = arith.constant 0 : index
    %3 = vector.load %arg7[%c0, %c0_1] : memref<16x32xf32, #tpu.memory_space<vmem>>, vector<16x32xf32>
    %c0_2 = arith.constant 0 : index
    %c0_3 = arith.constant 0 : index
    %4 = vector.load %arg3[%c0_2, %c0_3] : memref<16x32xbf16, #tpu.memory_space<vmem>>, vector<16x32xbf16>
    %c0_4 = arith.constant 0 : index
    %c0_5 = arith.constant 0 : index
    %5 = vector.load %arg4[%c0_4, %c0_5] : memref<32x32xbf16, #tpu.memory_space<vmem>>, vector<32x32xbf16>
    %cst = arith.constant dense<0.000000e+00> : vector<16x32xf32>
    %6 = tpu.matmul %4, %5, %cst {dimension_numbers = #tpu.dot_dimension_numbers<[1], [0], [0], [1], [0, 0, 1, 1], [], []>} : vector<16x32xbf16>, vector<32x32xbf16>, vector<16x32xf32> -> vector<16x32xf32>
    %7 = arith.addf %3, %6 : vector<16x32xf32>
    %c0_6 = arith.constant 0 : index
    %c0_7 = arith.constant 0 : index
    %8 = vector.load %arg7[%c0_6, %c0_7] : memref<16x32xf32, #tpu.memory_space<vmem>>, vector<16x32xf32>
    tpu.vector_store %arg7[%c0_6, %c0_7], %7 {strides = array<i32>} : memref<16x32xf32, #tpu.memory_space<vmem>>, vector<16x32xf32>,
    %c0_i32_8 = arith.constant 0 : i32
    %9 = arith.cmpi eq, %arg2, %c0_i32_8 : i32
    %10 = arith.extui %9 : i1 to i32
    %c0_i32_9 = arith.constant 0 : i32
    %11 = arith.cmpi ne, %10, %c0_i32_9 : i32
    scf.if %11 {
      %c0_10 = arith.constant 0 : index
      %c0_11 = arith.constant 0 : index
      %12 = vector.load %arg7[%c0_10, %c0_11] : memref<16x32xf32, #tpu.memory_space<vmem>>, vector<16x32xf32>
      %c0_12 = arith.constant 0 : index
      %c0_13 = arith.constant 0 : index
      %13 = vector.load %arg5[%c0_12, %c0_13] : memref<1x32xf32, #tpu.memory_space<vmem>>, vector<1x32xf32>
      %14 = vector.broadcast %13 : vector<1x32xf32> to vector<16x32xf32>
      %15 = arith.addf %12, %14 : vector<16x32xf32>
      %16 = arith.truncf %15 : vector<16x32xf32> to vector<16x32xbf16>
      %c0_14 = arith.constant 0 : index
      %c0_15 = arith.constant 0 : index
      %17 = vector.load %arg6[%c0_14, %c0_15] : memref<16x32xbf16, #tpu.memory_space<vmem>>, vector<16x32xbf16>
      tpu.vector_store %arg6[%c0_14, %c0_15], %16 {strides = array<i32>} : memref<16x32xbf16, #tpu.memory_space<vmem>>, vector<16x32xbf16>,
    } else {
    }
    return
  }
  func.func @transform_0(%arg0: i32, %arg1: i32, %arg2: i32) -> (i32, i32) {
    %c0_i32 = arith.constant 0 : i32
    return %arg0, %arg2 : i32, i32
  }
  func.func @transform_1(%arg0: i32, %arg1: i32, %arg2: i32) -> (i32, i32) {
    %c0_i32 = arith.constant 0 : i32
    return %arg2, %arg1 : i32, i32
  }
  func.func @transform_2(%arg0: i32, %arg1: i32, %arg2: i32) -> (i32, i32) {
    %c0_i32 = arith.constant 0 : i32
    %c0_i32_0 = arith.constant 0 : i32
    return %c0_i32, %arg1 : i32, i32
  }
  func.func @transform_3(%arg0: i32, %arg1: i32, %arg2: i32) -> (i32, i32) {
    %c0_i32 = arith.constant 0 : i32
    return %arg0, %arg1 : i32, i32
  }
}

module attributes {stable_mosaic.version = 11 : i64} {
  func.func @_dense_kernel(%arg0: i32, %arg1: i32, %arg2: i32, %arg3: memref<16x64xbf16, #tpu.memory_space<vmem>>, %arg4: memref<64x32xbf16, #tpu.memory_space<vmem>>, %arg5: memref<1x32xf32, #tpu.memory_space<vmem>>, %arg6: memref<16x32xbf16, #tpu.memory_space<vmem>>, %arg7: memref<1x32xf32, #tpu.memory_space<vmem>>, %arg8: memref<1x32xf32, #tpu.memory_space<vmem>>, %arg9: memref<16x32xbf16, #tpu.memory_space<vmem>>, %arg10: memref<16x32xf32, #tpu.memory_space<vmem>>) attributes {dimension_semantics = [#tpu.dimension_semantics<parallel>, #tpu.dimension_semantics<parallel>, #tpu.dimension_semantics<arbitrary>], iteration_bounds = array<i64: 1, 1, 1>, scalar_prefetch = 0 : i64, scratch_operands = 1 : i64, tpu.core_type = #tpu.core_type<tc>, window_params = [{transform_indices = @transform_0, window_bounds = array<i64: 16, 64>}, {transform_indices = @transform_1, window_bounds = array<i64: 64, 32>}, {transform_indices = @transform_2, window_bounds = array<i64: 1, 32>}, {transform_indices = @transform_3, window_bounds = array<i64: 16, 32>}, {transform_indices = @transform_4, window_bounds = array<i64: 1, 32>}, {transform_indices = @transform_5, window_bounds = array<i64: 1, 32>}, {transform_indices = @transform_6, window_bounds = array<i64: 16, 32>}]} {
    %c0_i32 = arith.constant 0 : i32
    %0 = arith.cmpi eq, %arg2, %c0_i32 : i32
    %1 = arith.extui %0 : i1 to i32
    %c0_i32_0 = arith.constant 0 : i32
    %2 = arith.cmpi ne, %1, %c0_i32_0 : i32
    scf.if %2 {
      %cst_10 = arith.constant 0.000000e+00 : f32
      %12 = vector.broadcast %cst_10 : f32 to vector<16x32xf32>
      %c0_11 = arith.constant 0 : index
      %c0_12 = arith.constant 0 : index
      %13 = vector.load %arg10[%c0_11, %c0_12] : memref<16x32xf32, #tpu.memory_space<vmem>>, vector<16x32xf32>
      tpu.vector_store %arg10[%c0_11, %c0_12], %12 {strides = array<i32>} : memref<16x32xf32, #tpu.memory_space<vmem>>, vector<16x32xf32>,
    } else {
    }
    %c0 = arith.constant 0 : index
    %c0_1 = arith.constant 0 : index
    %3 = vector.load %arg10[%c0, %c0_1] : memref<16x32xf32, #tpu.memory_space<vmem>>, vector<16x32xf32>
    %c0_2 = arith.constant 0 : index
    %c0_3 = arith.constant 0 : index
    %4 = vector.load %arg3[%c0_2, %c0_3] : memref<16x64xbf16, #tpu.memory_space<vmem>>, vector<16x64xbf16>
    %c0_4 = arith.constant 0 : index
    %c0_5 = arith.constant 0 : index
    %5 = vector.load %arg4[%c0_4, %c0_5] : memref<64x32xbf16, #tpu.memory_space<vmem>>, vector<64x32xbf16>
    %cst = arith.constant dense<0.000000e+00> : vector<16x32xf32>
    %6 = tpu.matmul %4, %5, %cst {dimension_numbers = #tpu.dot_dimension_numbers<[1], [0], [0], [1], [0, 0, 1, 1], [], []>} : vector<16x64xbf16>, vector<64x32xbf16>, vector<16x32xf32> -> vector<16x32xf32>
    %7 = arith.addf %3, %6 : vector<16x32xf32>
    %c0_6 = arith.constant 0 : index
    %c0_7 = arith.constant 0 : index
    %8 = vector.load %arg10[%c0_6, %c0_7] : memref<16x32xf32, #tpu.memory_space<vmem>>, vector<16x32xf32>
    tpu.vector_store %arg10[%c0_6, %c0_7], %7 {strides = array<i32>} : memref<16x32xf32, #tpu.memory_space<vmem>>, vector<16x32xf32>,
    %c0_i32_8 = arith.constant 0 : i32
    %9 = arith.cmpi eq, %arg2, %c0_i32_8 : i32
    %10 = arith.extui %9 : i1 to i32
    %c0_i32_9 = arith.constant 0 : i32
    %11 = arith.cmpi ne, %10, %c0_i32_9 : i32
    scf.if %11 {
      %c0_10 = arith.constant 0 : index
      %c0_11 = arith.constant 0 : index
      %12 = vector.load %arg10[%c0_10, %c0_11] : memref<16x32xf32, #tpu.memory_space<vmem>>, vector<16x32xf32>
      %c0_12 = arith.constant 0 : index
      %c0_13 = arith.constant 0 : index
      %13 = vector.load %arg5[%c0_12, %c0_13] : memref<1x32xf32, #tpu.memory_space<vmem>>, vector<1x32xf32>
      %14 = vector.broadcast %13 : vector<1x32xf32> to vector<16x32xf32>
      %15 = arith.addf %12, %14 : vector<16x32xf32>
      %c0_14 = arith.constant 0 : index
      %c0_15 = arith.constant 0 : index
      %16 = vector.load %arg6[%c0_14, %c0_15] : memref<16x32xbf16, #tpu.memory_space<vmem>>, vector<16x32xbf16>
      %17 = arith.extf %16 : vector<16x32xbf16> to vector<16x32xf32>
      %18 = arith.addf %15, %17 : vector<16x32xf32>
      %cst_16 = arith.constant dense<0.000000e+00> : vector<16xf32>
      %19 = vector.multi_reduction <add>, %18, %cst_16 [1] : vector<16x32xf32> to vector<16xf32>
      %20 = vector.shape_cast %19 : vector<16xf32> to vector<16x1xf32>
      %cst_17 = arith.constant 3.200000e+01 : f32
      %21 = vector.broadcast %cst_17 : f32 to vector<16x1xf32>
      %22 = arith.divf %20, %21 : vector<16x1xf32>
      %23 = vector.broadcast %22 : vector<16x1xf32> to vector<16x32xf32>
      %24 = arith.subf %18, %23 : vector<16x32xf32>
      %25 = arith.mulf %24, %24 : vector<16x32xf32>
      %cst_18 = arith.constant dense<0.000000e+00> : vector<16xf32>
      %26 = vector.multi_reduction <add>, %25, %cst_18 [1] : vector<16x32xf32> to vector<16xf32>
      %27 = vector.shape_cast %26 : vector<16xf32> to vector<16x1xf32>
      %cst_19 = arith.constant 3.200000e+01 : f32
      %28 = vector.broadcast %cst_19 : f32 to vector<16x1xf32>
      %29 = arith.divf %27, %28 : vector<16x1xf32>
      %30 = vector.broadcast %22 : vector<16x1xf32> to vector<16x32xf32>
      %31 = arith.subf %18, %30 : vector<16x32xf32>
      %cst_20 = arith.constant 9.99999974E-6 : f32
      %32 = vector.broadcast %cst_20 : f32 to vector<16x1xf32>
      %33 = arith.addf %29, %32 : vector<16x1xf32>
      %34 = math.rsqrt %33 : vector<16x1xf32>
      %35 = vector.broadcast %34 : vector<16x1xf32> to vector<16x32xf32>
      %36 = arith.mulf %31, %35 : vector<16x32xf32>
      %c0_21 = arith.constant 0 : index
      %c0_22 = arith.constant 0 : index
      %37 = vector.load %arg7[%c0_21, %c0_22] : memref<1x32xf32, #tpu.memory_space<vmem>>, vector<1x32xf32>
      %38 = vector.broadcast %37 : vector<1x32xf32> to vector<16x32xf32>
      %39 = arith.mulf %36, %38 : vector<16x32xf32>
      %c0_23 = arith.constant 0 : index
      %c0_24 = arith.constant 0 : index
      %40 = vector.load %arg8[%c0_23, %c0_24] : memref<1x32xf32, #tpu.memory_space<vmem>>, vector<1x32xf32>
      %41 = vector.broadcast %40 : vector<1x32xf32> to vector<16x32xf32>
      %42 = arith.addf %39, %41 : vector<16x32xf32>
      %43 = arith.truncf %42 : vector<16x32xf32> to vector<16x32xbf16>
      %c0_25 = arith.constant 0 : index
      %c0_26 = arith.constant 0 : index
      %44 = vector.load %arg9[%c0_25, %c0_26] : memref<16x32xbf16, #tpu.memory_space<vmem>>, vector<16x32xbf16>
      tpu.vector_store %arg9[%c0_25, %c0_26], %43 {strides = array<i32>} : memref<16x32xbf16, #tpu.memory_space<vmem>>, vector<16x32xbf16>,
    } else {
    }
    return
  }
  func.func @transform_0(%arg0: i32, %arg1: i32, %arg2: i32) -> (i32, i32) {
    %c0_i32 = arith.constant 0 : i32
    return %arg0, %arg2 : i32, i32
  }
  func.func @transform_1(%arg0: i32, %arg1: i32, %arg2: i32) -> (i32, i32) {
    %c0_i32 = arith.constant 0 : i32
    return %arg2, %arg1 : i32, i32
  }
  func.func @transform_2(%arg0: i32, %arg1: i32, %arg2: i32) -> (i32, i32) {
    %c0_i32 = arith.constant 0 : i32
    %c0_i32_0 = arith.constant 0 : i32
    return %c0_i32, %arg1 : i32, i32
  }
  func.func @transform_3(%arg0: i32, %arg1: i32, %arg2: i32) -> (i32, i32) {
    %c0_i32 = arith.constant 0 : i32
    return %arg0, %arg1 : i32, i32
  }
  func.func @transform_4(%arg0: i32, %arg1: i32, %arg2: i32) -> (i32, i32) {
    %c0_i32 = arith.constant 0 : i32
    %c0_i32_0 = arith.constant 0 : i32
    return %c0_i32, %arg1 : i32, i32
  }
  func.func @transform_5(%arg0: i32, %arg1: i32, %arg2: i32) -> (i32, i32) {
    %c0_i32 = arith.constant 0 : i32
    %c0_i32_0 = arith.constant 0 : i32
    return %c0_i32, %arg1 : i32, i32
  }
  func.func @transform_6(%arg0: i32, %arg1: i32, %arg2: i32) -> (i32, i32) {
    %c0_i32 = arith.constant 0 : i32
    return %arg0, %arg1 : i32, i32
  }
}

module attributes {stable_mosaic.version = 11 : i64} {
  func.func @_mha_cross_kernel(%arg0: i32, %arg1: memref<1x8x32xbf16, #tpu.memory_space<vmem>>, %arg2: memref<1x8x64xbf16, #tpu.memory_space<vmem>>, %arg3: memref<1x1x8xf32, #tpu.memory_space<vmem>>, %arg4: memref<1x8x32xbf16, #tpu.memory_space<vmem>>) attributes {dimension_semantics = [#tpu.dimension_semantics<parallel>], iteration_bounds = array<i64: 2>, scalar_prefetch = 0 : i64, scratch_operands = 0 : i64, tpu.core_type = #tpu.core_type<tc>, window_params = [{transform_indices = @transform_0, window_bounds = array<i64: 1, 8, 32>}, {transform_indices = @transform_1, window_bounds = array<i64: 1, 8, 64>}, {transform_indices = @transform_2, window_bounds = array<i64: 1, 1, 8>}, {transform_indices = @transform_3, window_bounds = array<i64: 1, 8, 32>}]} {
    %c0 = arith.constant 0 : index
    %c0_0 = arith.constant 0 : index
    %c0_1 = arith.constant 0 : index
    %0 = vector.load %arg1[%c0, %c0_0, %c0_1] : memref<1x8x32xbf16, #tpu.memory_space<vmem>>, vector<1x8x32xbf16>
    %1 = vector.shape_cast %0 : vector<1x8x32xbf16> to vector<8x32xbf16>
    %c0_2 = arith.constant 0 : index
    %c0_3 = arith.constant 0 : index
    %c0_4 = arith.constant 0 : index
    %2 = vector.load %arg2[%c0_2, %c0_3, %c0_4] : memref<1x8x64xbf16, #tpu.memory_space<vmem>>, vector<1x8x32xbf16>
    %3 = vector.shape_cast %2 : vector<1x8x32xbf16> to vector<8x32xbf16>
    %c0_5 = arith.constant 0 : index
    %c0_6 = arith.constant 0 : index
    %c32 = arith.constant 32 : index
    %4 = vector.load %arg2[%c0_5, %c0_6, %c32] : memref<1x8x64xbf16, #tpu.memory_space<vmem>>, vector<1x8x32xbf16>
    %5 = vector.shape_cast %4 : vector<1x8x32xbf16> to vector<8x32xbf16>
    %c0_7 = arith.constant 0 : index
    %c0_8 = arith.constant 0 : index
    %c0_9 = arith.constant 0 : index
    %6 = vector.load %arg3[%c0_7, %c0_8, %c0_9] : memref<1x1x8xf32, #tpu.memory_space<vmem>>, vector<1x1x8xf32>
    %7 = vector.shape_cast %6 : vector<1x1x8xf32> to vector<1x8xf32>
    %8 = vector.extract_strided_slice %1 {offsets = [0, 0], sizes = [8, 8], strides = [1, 1]} : vector<8x32xbf16> to vector<8x8xbf16>
    %9 = vector.extract_strided_slice %3 {offsets = [0, 0], sizes = [8, 8], strides = [1, 1]} : vector<8x32xbf16> to vector<8x8xbf16>
    %10 = vector.extract_strided_slice %5 {offsets = [0, 0], sizes = [8, 8], strides = [1, 1]} : vector<8x32xbf16> to vector<8x8xbf16>
    %cst = arith.constant dense<0.000000e+00> : vector<8x8xf32>
    %11 = tpu.matmul %8, %9, %cst {dimension_numbers = #tpu.dot_dimension_numbers<[1], [1], [0], [0], [0, 0, 1, 0], [], []>} : vector<8x8xbf16>, vector<8x8xbf16>, vector<8x8xf32> -> vector<8x8xf32>
    %cst_10 = arith.constant 0.353553385 : f32
    %12 = vector.broadcast %cst_10 : f32 to vector<8x8xf32>
    %13 = arith.mulf %11, %12 : vector<8x8xf32>
    %14 = vector.broadcast %7 : vector<1x8xf32> to vector<8x8xf32>
    %15 = arith.addf %13, %14 : vector<8x8xf32>
    %cst_11 = arith.constant dense<0xFF800000> : vector<8xf32>
    %16 = vector.multi_reduction <maximumf>, %15, %cst_11 [1] : vector<8x8xf32> to vector<8xf32>
    %17 = vector.shape_cast %16 : vector<8xf32> to vector<8x1xf32>
    %18 = vector.broadcast %17 : vector<8x1xf32> to vector<8x8xf32>
    %19 = arith.subf %15, %18 : vector<8x8xf32>
    %20 = math.exp %19 : vector<8x8xf32>
    %cst_12 = arith.constant dense<0.000000e+00> : vector<8xf32>
    %21 = vector.multi_reduction <add>, %20, %cst_12 [1] : vector<8x8xf32> to vector<8xf32>
    %22 = vector.shape_cast %21 : vector<8xf32> to vector<8x1xf32>
    %23 = tpu.reciprocal %22 {approx = true} : vector<8x1xf32> -> vector<8x1xf32>
    %24 = vector.broadcast %23 : vector<8x1xf32> to vector<8x8xf32>
    %25 = arith.mulf %20, %24 : vector<8x8xf32>
    %26 = arith.truncf %25 : vector<8x8xf32> to vector<8x8xbf16>
    %cst_13 = arith.constant dense<0.000000e+00> : vector<8x8xf32>
    %27 = tpu.matmul %26, %10, %cst_13 {dimension_numbers = #tpu.dot_dimension_numbers<[1], [0], [0], [1], [0, 0, 1, 1], [], []>} : vector<8x8xbf16>, vector<8x8xbf16>, vector<8x8xf32> -> vector<8x8xf32>
    %28 = arith.truncf %27 : vector<8x8xf32> to vector<8x8xbf16>
    %c0_14 = arith.constant 0 : index
    %c0_15 = arith.constant 0 : index
    %c0_16 = arith.constant 0 : index
    %29 = vector.load %arg4[%c0_14, %c0_15, %c0_16] : memref<1x8x32xbf16, #tpu.memory_space<vmem>>, vector<1x8x8xbf16>
    %30 = vector.shape_cast %29 : vector<1x8x8xbf16> to vector<8x8xbf16>
    %31 = vector.shape_cast %28 : vector<8x8xbf16> to vector<1x8x8xbf16>
    tpu.vector_store %arg4[%c0_14, %c0_15, %c0_16], %31 {strides = array<i32>} : memref<1x8x32xbf16, #tpu.memory_space<vmem>>, vector<1x8x8xbf16>,
    %32 = vector.extract_strided_slice %1 {offsets = [0, 8], sizes = [8, 8], strides = [1, 1]} : vector<8x32xbf16> to vector<8x8xbf16>
    %33 = vector.extract_strided_slice %3 {offsets = [0, 8], sizes = [8, 8], strides = [1, 1]} : vector<8x32xbf16> to vector<8x8xbf16>
    %34 = vector.extract_strided_slice %5 {offsets = [0, 8], sizes = [8, 8], strides = [1, 1]} : vector<8x32xbf16> to vector<8x8xbf16>
    %cst_17 = arith.constant dense<0.000000e+00> : vector<8x8xf32>
    %35 = tpu.matmul %32, %33, %cst_17 {dimension_numbers = #tpu.dot_dimension_numbers<[1], [1], [0], [0], [0, 0, 1, 0], [], []>} : vector<8x8xbf16>, vector<8x8xbf16>, vector<8x8xf32> -> vector<8x8xf32>
    %cst_18 = arith.constant 0.353553385 : f32
    %36 = vector.broadcast %cst_18 : f32 to vector<8x8xf32>
    %37 = arith.mulf %35, %36 : vector<8x8xf32>
    %38 = vector.broadcast %7 : vector<1x8xf32> to vector<8x8xf32>
    %39 = arith.addf %37, %38 : vector<8x8xf32>
    %cst_19 = arith.constant dense<0xFF800000> : vector<8xf32>
    %40 = vector.multi_reduction <maximumf>, %39, %cst_19 [1] : vector<8x8xf32> to vector<8xf32>
    %41 = vector.shape_cast %40 : vector<8xf32> to vector<8x1xf32>
    %42 = vector.broadcast %41 : vector<8x1xf32> to vector<8x8xf32>
    %43 = arith.subf %39, %42 : vector<8x8xf32>
    %44 = math.exp %43 : vector<8x8xf32>
    %cst_20 = arith.constant dense<0.000000e+00> : vector<8xf32>
    %45 = vector.multi_reduction <add>, %44, %cst_20 [1] : vector<8x8xf32> to vector<8xf32>
    %46 = vector.shape_cast %45 : vector<8xf32> to vector<8x1xf32>
    %47 = tpu.reciprocal %46 {approx = true} : vector<8x1xf32> -> vector<8x1xf32>
    %48 = vector.broadcast %47 : vector<8x1xf32> to vector<8x8xf32>
    %49 = arith.mulf %44, %48 : vector<8x8xf32>
    %50 = arith.truncf %49 : vector<8x8xf32> to vector<8x8xbf16>
    %cst_21 = arith.constant dense<0.000000e+00> : vector<8x8xf32>
    %51 = tpu.matmul %50, %34, %cst_21 {dimension_numbers = #tpu.dot_dimension_numbers<[1], [0], [0], [1], [0, 0, 1, 1], [], []>} : vector<8x8xbf16>, vector<8x8xbf16>, vector<8x8xf32> -> vector<8x8xf32>
    %52 = arith.truncf %51 : vector<8x8xf32> to vector<8x8xbf16>
    %c0_22 = arith.constant 0 : index
    %c0_23 = arith.constant 0 : index
    %c8 = arith.constant 8 : index
    %53 = vector.load %arg4[%c0_22, %c0_23, %c8] : memref<1x8x32xbf16, #tpu.memory_space<vmem>>, vector<1x8x8xbf16>
    %54 = vector.shape_cast %53 : vector<1x8x8xbf16> to vector<8x8xbf16>
    %55 = vector.shape_cast %52 : vector<8x8xbf16> to vector<1x8x8xbf16>
    tpu.vector_store %arg4[%c0_22, %c0_23, %c8], %55 {strides = array<i32>} : memref<1x8x32xbf16, #tpu.memory_space<vmem>>, vector<1x8x8xbf16>,
    %56 = vector.extract_strided_slice %1 {offsets = [0, 16], sizes = [8, 8], strides = [1, 1]} : vector<8x32xbf16> to vector<8x8xbf16>
    %57 = vector.extract_strided_slice %3 {offsets = [0, 16], sizes = [8, 8], strides = [1, 1]} : vector<8x32xbf16> to vector<8x8xbf16>
    %58 = vector.extract_strided_slice %5 {offsets = [0, 16], sizes = [8, 8], strides = [1, 1]} : vector<8x32xbf16> to vector<8x8xbf16>
    %cst_24 = arith.constant dense<0.000000e+00> : vector<8x8xf32>
    %59 = tpu.matmul %56, %57, %cst_24 {dimension_numbers = #tpu.dot_dimension_numbers<[1], [1], [0], [0], [0, 0, 1, 0], [], []>} : vector<8x8xbf16>, vector<8x8xbf16>, vector<8x8xf32> -> vector<8x8xf32>
    %cst_25 = arith.constant 0.353553385 : f32
    %60 = vector.broadcast %cst_25 : f32 to vector<8x8xf32>
    %61 = arith.mulf %59, %60 : vector<8x8xf32>
    %62 = vector.broadcast %7 : vector<1x8xf32> to vector<8x8xf32>
    %63 = arith.addf %61, %62 : vector<8x8xf32>
    %cst_26 = arith.constant dense<0xFF800000> : vector<8xf32>
    %64 = vector.multi_reduction <maximumf>, %63, %cst_26 [1] : vector<8x8xf32> to vector<8xf32>
    %65 = vector.shape_cast %64 : vector<8xf32> to vector<8x1xf32>
    %66 = vector.broadcast %65 : vector<8x1xf32> to vector<8x8xf32>
    %67 = arith.subf %63, %66 : vector<8x8xf32>
    %68 = math.exp %67 : vector<8x8xf32>
    %cst_27 = arith.constant dense<0.000000e+00> : vector<8xf32>
    %69 = vector.multi_reduction <add>, %68, %cst_27 [1] : vector<8x8xf32> to vector<8xf32>
    %70 = vector.shape_cast %69 : vector<8xf32> to vector<8x1xf32>
    %71 = tpu.reciprocal %70 {approx = true} : vector<8x1xf32> -> vector<8x1xf32>
    %72 = vector.broadcast %71 : vector<8x1xf32> to vector<8x8xf32>
    %73 = arith.mulf %68, %72 : vector<8x8xf32>
    %74 = arith.truncf %73 : vector<8x8xf32> to vector<8x8xbf16>
    %cst_28 = arith.constant dense<0.000000e+00> : vector<8x8xf32>
    %75 = tpu.matmul %74, %58, %cst_28 {dimension_numbers = #tpu.dot_dimension_numbers<[1], [0], [0], [1], [0, 0, 1, 1], [], []>} : vector<8x8xbf16>, vector<8x8xbf16>, vector<8x8xf32> -> vector<8x8xf32>
    %76 = arith.truncf %75 : vector<8x8xf32> to vector<8x8xbf16>
    %c0_29 = arith.constant 0 : index
    %c0_30 = arith.constant 0 : index
    %c16 = arith.constant 16 : index
    %77 = vector.load %arg4[%c0_29, %c0_30, %c16] : memref<1x8x32xbf16, #tpu.memory_space<vmem>>, vector<1x8x8xbf16>
    %78 = vector.shape_cast %77 : vector<1x8x8xbf16> to vector<8x8xbf16>
    %79 = vector.shape_cast %76 : vector<8x8xbf16> to vector<1x8x8xbf16>
    tpu.vector_store %arg4[%c0_29, %c0_30, %c16], %79 {strides = array<i32>} : memref<1x8x32xbf16, #tpu.memory_space<vmem>>, vector<1x8x8xbf16>,
    %80 = vector.extract_strided_slice %1 {offsets = [0, 24], sizes = [8, 8], strides = [1, 1]} : vector<8x32xbf16> to vector<8x8xbf16>
    %81 = vector.extract_strided_slice %3 {offsets = [0, 24], sizes = [8, 8], strides = [1, 1]} : vector<8x32xbf16> to vector<8x8xbf16>
    %82 = vector.extract_strided_slice %5 {offsets = [0, 24], sizes = [8, 8], strides = [1, 1]} : vector<8x32xbf16> to vector<8x8xbf16>
    %cst_31 = arith.constant dense<0.000000e+00> : vector<8x8xf32>
    %83 = tpu.matmul %80, %81, %cst_31 {dimension_numbers = #tpu.dot_dimension_numbers<[1], [1], [0], [0], [0, 0, 1, 0], [], []>} : vector<8x8xbf16>, vector<8x8xbf16>, vector<8x8xf32> -> vector<8x8xf32>
    %cst_32 = arith.constant 0.353553385 : f32
    %84 = vector.broadcast %cst_32 : f32 to vector<8x8xf32>
    %85 = arith.mulf %83, %84 : vector<8x8xf32>
    %86 = vector.broadcast %7 : vector<1x8xf32> to vector<8x8xf32>
    %87 = arith.addf %85, %86 : vector<8x8xf32>
    %cst_33 = arith.constant dense<0xFF800000> : vector<8xf32>
    %88 = vector.multi_reduction <maximumf>, %87, %cst_33 [1] : vector<8x8xf32> to vector<8xf32>
    %89 = vector.shape_cast %88 : vector<8xf32> to vector<8x1xf32>
    %90 = vector.broadcast %89 : vector<8x1xf32> to vector<8x8xf32>
    %91 = arith.subf %87, %90 : vector<8x8xf32>
    %92 = math.exp %91 : vector<8x8xf32>
    %cst_34 = arith.constant dense<0.000000e+00> : vector<8xf32>
    %93 = vector.multi_reduction <add>, %92, %cst_34 [1] : vector<8x8xf32> to vector<8xf32>
    %94 = vector.shape_cast %93 : vector<8xf32> to vector<8x1xf32>
    %95 = tpu.reciprocal %94 {approx = true} : vector<8x1xf32> -> vector<8x1xf32>
    %96 = vector.broadcast %95 : vector<8x1xf32> to vector<8x8xf32>
    %97 = arith.mulf %92, %96 : vector<8x8xf32>
    %98 = arith.truncf %97 : vector<8x8xf32> to vector<8x8xbf16>
    %cst_35 = arith.constant dense<0.000000e+00> : vector<8x8xf32>
    %99 = tpu.matmul %98, %82, %cst_35 {dimension_numbers = #tpu.dot_dimension_numbers<[1], [0], [0], [1], [0, 0, 1, 1], [], []>} : vector<8x8xbf16>, vector<8x8xbf16>, vector<8x8xf32> -> vector<8x8xf32>
    %100 = arith.truncf %99 : vector<8x8xf32> to vector<8x8xbf16>
    %c0_36 = arith.constant 0 : index
    %c0_37 = arith.constant 0 : index
    %c24 = arith.constant 24 : index
    %101 = vector.load %arg4[%c0_36, %c0_37, %c24] : memref<1x8x32xbf16, #tpu.memory_space<vmem>>, vector<1x8x8xbf16>
    %102 = vector.shape_cast %101 : vector<1x8x8xbf16> to vector<8x8xbf16>
    %103 = vector.shape_cast %100 : vector<8x8xbf16> to vector<1x8x8xbf16>
    tpu.vector_store %arg4[%c0_36, %c0_37, %c24], %103 {strides = array<i32>} : memref<1x8x32xbf16, #tpu.memory_space<vmem>>, vector<1x8x8xbf16>,
    return
  }
  func.func @transform_0(%arg0: i32) -> (i32, i32, i32) {
    %c0_i32 = arith.constant 0 : i32
    %c0_i32_0 = arith.constant 0 : i32
    %c0_i32_1 = arith.constant 0 : i32
    return %arg0, %c0_i32, %c0_i32_0 : i32, i32, i32
  }
  func.func @transform_1(%arg0: i32) -> (i32, i32, i32) {
    %c0_i32 = arith.constant 0 : i32
    %c0_i32_0 = arith.constant 0 : i32
    %c0_i32_1 = arith.constant 0 : i32
    return %arg0, %c0_i32, %c0_i32_0 : i32, i32, i32
  }
  func.func @transform_2(%arg0: i32) -> (i32, i32, i32) {
    %c0_i32 = arith.constant 0 : i32
    %c0_i32_0 = arith.constant 0 : i32
    %c0_i32_1 = arith.constant 0 : i32
    return %arg0, %c0_i32, %c0_i32_0 : i32, i32, i32
  }
  func.func @transform_3(%arg0: i32) -> (i32, i32, i32) {
    %c0_i32 = arith.constant 0 : i32
    %c0_i32_0 = arith.constant 0 : i32
    %c0_i32_1 = arith.constant 0 : i32
    return %arg0, %c0_i32, %c0_i32_0 : i32, i32, i32
  }
}

module attributes {stable_mosaic.version = 11 : i64} {
  func.func @_dense_kernel(%arg0: i32, %arg1: i32, %arg2: i32, %arg3: memref<16x32xbf16, #tpu.memory_space<vmem>>, %arg4: memref<32x32xbf16, #tpu.memory_space<vmem>>, %arg5: memref<1x32xf32, #tpu.memory_space<vmem>>, %arg6: memref<16x32xbf16, #tpu.memory_space<vmem>>, %arg7: memref<1x32xf32, #tpu.memory_space<vmem>>, %arg8: memref<1x32xf32, #tpu.memory_space<vmem>>, %arg9: memref<16x32xbf16, #tpu.memory_space<vmem>>, %arg10: memref<16x32xf32, #tpu.memory_space<vmem>>) attributes {dimension_semantics = [#tpu.dimension_semantics<parallel>, #tpu.dimension_semantics<parallel>, #tpu.dimension_semantics<arbitrary>], iteration_bounds = array<i64: 1, 1, 1>, scalar_prefetch = 0 : i64, scratch_operands = 1 : i64, tpu.core_type = #tpu.core_type<tc>, window_params = [{transform_indices = @transform_0, window_bounds = array<i64: 16, 32>}, {transform_indices = @transform_1, window_bounds = array<i64: 32, 32>}, {transform_indices = @transform_2, window_bounds = array<i64: 1, 32>}, {transform_indices = @transform_3, window_bounds = array<i64: 16, 32>}, {transform_indices = @transform_4, window_bounds = array<i64: 1, 32>}, {transform_indices = @transform_5, window_bounds = array<i64: 1, 32>}, {transform_indices = @transform_6, window_bounds = array<i64: 16, 32>}]} {
    %c0_i32 = arith.constant 0 : i32
    %0 = arith.cmpi eq, %arg2, %c0_i32 : i32
    %1 = arith.extui %0 : i1 to i32
    %c0_i32_0 = arith.constant 0 : i32
    %2 = arith.cmpi ne, %1, %c0_i32_0 : i32
    scf.if %2 {
      %cst_10 = arith.constant 0.000000e+00 : f32
      %12 = vector.broadcast %cst_10 : f32 to vector<16x32xf32>
      %c0_11 = arith.constant 0 : index
      %c0_12 = arith.constant 0 : index
      %13 = vector.load %arg10[%c0_11, %c0_12] : memref<16x32xf32, #tpu.memory_space<vmem>>, vector<16x32xf32>
      tpu.vector_store %arg10[%c0_11, %c0_12], %12 {strides = array<i32>} : memref<16x32xf32, #tpu.memory_space<vmem>>, vector<16x32xf32>,
    } else {
    }
    %c0 = arith.constant 0 : index
    %c0_1 = arith.constant 0 : index
    %3 = vector.load %arg10[%c0, %c0_1] : memref<16x32xf32, #tpu.memory_space<vmem>>, vector<16x32xf32>
    %c0_2 = arith.constant 0 : index
    %c0_3 = arith.constant 0 : index
    %4 = vector.load %arg3[%c0_2, %c0_3] : memref<16x32xbf16, #tpu.memory_space<vmem>>, vector<16x32xbf16>
    %c0_4 = arith.constant 0 : index
    %c0_5 = arith.constant 0 : index
    %5 = vector.load %arg4[%c0_4, %c0_5] : memref<32x32xbf16, #tpu.memory_space<vmem>>, vector<32x32xbf16>
    %cst = arith.constant dense<0.000000e+00> : vector<16x32xf32>
    %6 = tpu.matmul %4, %5, %cst {dimension_numbers = #tpu.dot_dimension_numbers<[1], [0], [0], [1], [0, 0, 1, 1], [], []>} : vector<16x32xbf16>, vector<32x32xbf16>, vector<16x32xf32> -> vector<16x32xf32>
    %7 = arith.addf %3, %6 : vector<16x32xf32>
    %c0_6 = arith.constant 0 : index
    %c0_7 = arith.constant 0 : index
    %8 = vector.load %arg10[%c0_6, %c0_7] : memref<16x32xf32, #tpu.memory_space<vmem>>, vector<16x32xf32>
    tpu.vector_store %arg10[%c0_6, %c0_7], %7 {strides = array<i32>} : memref<16x32xf32, #tpu.memory_space<vmem>>, vector<16x32xf32>,
    %c0_i32_8 = arith.constant 0 : i32
    %9 = arith.cmpi eq, %arg2, %c0_i32_8 : i32
    %10 = arith.extui %9 : i1 to i32
    %c0_i32_9 = arith.constant 0 : i32
    %11 = arith.cmpi ne, %10, %c0_i32_9 : i32
    scf.if %11 {
      %c0_10 = arith.constant 0 : index
      %c0_11 = arith.constant 0 : index
      %12 = vector.load %arg10[%c0_10, %c0_11] : memref<16x32xf32, #tpu.memory_space<vmem>>, vector<16x32xf32>
      %c0_12 = arith.constant 0 : index
      %c0_13 = arith.constant 0 : index
      %13 = vector.load %arg5[%c0_12, %c0_13] : memref<1x32xf32, #tpu.memory_space<vmem>>, vector<1x32xf32>
      %14 = vector.broadcast %13 : vector<1x32xf32> to vector<16x32xf32>
      %15 = arith.addf %12, %14 : vector<16x32xf32>
      %c0_14 = arith.constant 0 : index
      %c0_15 = arith.constant 0 : index
      %16 = vector.load %arg6[%c0_14, %c0_15] : memref<16x32xbf16, #tpu.memory_space<vmem>>, vector<16x32xbf16>
      %17 = arith.extf %16 : vector<16x32xbf16> to vector<16x32xf32>
      %18 = arith.addf %15, %17 : vector<16x32xf32>
      %cst_16 = arith.constant dense<0.000000e+00> : vector<16xf32>
      %19 = vector.multi_reduction <add>, %18, %cst_16 [1] : vector<16x32xf32> to vector<16xf32>
      %20 = vector.shape_cast %19 : vector<16xf32> to vector<16x1xf32>
      %cst_17 = arith.constant 3.200000e+01 : f32
      %21 = vector.broadcast %cst_17 : f32 to vector<16x1xf32>
      %22 = arith.divf %20, %21 : vector<16x1xf32>
      %23 = vector.broadcast %22 : vector<16x1xf32> to vector<16x32xf32>
      %24 = arith.subf %18, %23 : vector<16x32xf32>
      %25 = arith.mulf %24, %24 : vector<16x32xf32>
      %cst_18 = arith.constant dense<0.000000e+00> : vector<16xf32>
      %26 = vector.multi_reduction <add>, %25, %cst_18 [1] : vector<16x32xf32> to vector<16xf32>
      %27 = vector.shape_cast %26 : vector<16xf32> to vector<16x1xf32>
      %cst_19 = arith.constant 3.200000e+01 : f32
      %28 = vector.broadcast %cst_19 : f32 to vector<16x1xf32>
      %29 = arith.divf %27, %28 : vector<16x1xf32>
      %30 = vector.broadcast %22 : vector<16x1xf32> to vector<16x32xf32>
      %31 = arith.subf %18, %30 : vector<16x32xf32>
      %cst_20 = arith.constant 9.99999974E-6 : f32
      %32 = vector.broadcast %cst_20 : f32 to vector<16x1xf32>
      %33 = arith.addf %29, %32 : vector<16x1xf32>
      %34 = math.rsqrt %33 : vector<16x1xf32>
      %35 = vector.broadcast %34 : vector<16x1xf32> to vector<16x32xf32>
      %36 = arith.mulf %31, %35 : vector<16x32xf32>
      %c0_21 = arith.constant 0 : index
      %c0_22 = arith.constant 0 : index
      %37 = vector.load %arg7[%c0_21, %c0_22] : memref<1x32xf32, #tpu.memory_space<vmem>>, vector<1x32xf32>
      %38 = vector.broadcast %37 : vector<1x32xf32> to vector<16x32xf32>
      %39 = arith.mulf %36, %38 : vector<16x32xf32>
      %c0_23 = arith.constant 0 : index
      %c0_24 = arith.constant 0 : index
      %40 = vector.load %arg8[%c0_23, %c0_24] : memref<1x32xf32, #tpu.memory_space<vmem>>, vector<1x32xf32>
      %41 = vector.broadcast %40 : vector<1x32xf32> to vector<16x32xf32>
      %42 = arith.addf %39, %41 : vector<16x32xf32>
      %43 = arith.truncf %42 : vector<16x32xf32> to vector<16x32xbf16>
      %c0_25 = arith.constant 0 : index
      %c0_26 = arith.constant 0 : index
      %44 = vector.load %arg9[%c0_25, %c0_26] : memref<16x32xbf16, #tpu.memory_space<vmem>>, vector<16x32xbf16>
      tpu.vector_store %arg9[%c0_25, %c0_26], %43 {strides = array<i32>} : memref<16x32xbf16, #tpu.memory_space<vmem>>, vector<16x32xbf16>,
    } else {
    }
    return
  }
  func.func @transform_0(%arg0: i32, %arg1: i32, %arg2: i32) -> (i32, i32) {
    %c0_i32 = arith.constant 0 : i32
    return %arg0, %arg2 : i32, i32
  }
  func.func @transform_1(%arg0: i32, %arg1: i32, %arg2: i32) -> (i32, i32) {
    %c0_i32 = arith.constant 0 : i32
    return %arg2, %arg1 : i32, i32
  }
  func.func @transform_2(%arg0: i32, %arg1: i32, %arg2: i32) -> (i32, i32) {
    %c0_i32 = arith.constant 0 : i32
    %c0_i32_0 = arith.constant 0 : i32
    return %c0_i32, %arg1 : i32, i32
  }
  func.func @transform_3(%arg0: i32, %arg1: i32, %arg2: i32) -> (i32, i32) {
    %c0_i32 = arith.constant 0 : i32
    return %arg0, %arg1 : i32, i32
  }
  func.func @transform_4(%arg0: i32, %arg1: i32, %arg2: i32) -> (i32, i32) {
    %c0_i32 = arith.constant 0 : i32
    %c0_i32_0 = arith.constant 0 : i32
    return %c0_i32, %arg1 : i32, i32
  }
  func.func @transform_5(%arg0: i32, %arg1: i32, %arg2: i32) -> (i32, i32) {
    %c0_i32 = arith.constant 0 : i32
    %c0_i32_0 = arith.constant 0 : i32
    return %c0_i32, %arg1 : i32, i32
  }
  func.func @transform_6(%arg0: i32, %arg1: i32, %arg2: i32) -> (i32, i32) {
    %c0_i32 = arith.constant 0 : i32
    return %arg0, %arg1 : i32, i32
  }
}

module attributes {stable_mosaic.version = 11 : i64} {
  func.func @_dense_kernel(%arg0: i32, %arg1: i32, %arg2: i32, %arg3: memref<16x32xbf16, #tpu.memory_space<vmem>>, %arg4: memref<32x32xbf16, #tpu.memory_space<vmem>>, %arg5: memref<1x32xf32, #tpu.memory_space<vmem>>, %arg6: memref<16x32xbf16, #tpu.memory_space<vmem>>, %arg7: memref<16x32xf32, #tpu.memory_space<vmem>>) attributes {dimension_semantics = [#tpu.dimension_semantics<parallel>, #tpu.dimension_semantics<parallel>, #tpu.dimension_semantics<arbitrary>], iteration_bounds = array<i64: 1, 1, 1>, scalar_prefetch = 0 : i64, scratch_operands = 1 : i64, tpu.core_type = #tpu.core_type<tc>, window_params = [{transform_indices = @transform_0, window_bounds = array<i64: 16, 32>}, {transform_indices = @transform_1, window_bounds = array<i64: 32, 32>}, {transform_indices = @transform_2, window_bounds = array<i64: 1, 32>}, {transform_indices = @transform_3, window_bounds = array<i64: 16, 32>}]} {
    %c0_i32 = arith.constant 0 : i32
    %0 = arith.cmpi eq, %arg2, %c0_i32 : i32
    %1 = arith.extui %0 : i1 to i32
    %c0_i32_0 = arith.constant 0 : i32
    %2 = arith.cmpi ne, %1, %c0_i32_0 : i32
    scf.if %2 {
      %cst_10 = arith.constant 0.000000e+00 : f32
      %12 = vector.broadcast %cst_10 : f32 to vector<16x32xf32>
      %c0_11 = arith.constant 0 : index
      %c0_12 = arith.constant 0 : index
      %13 = vector.load %arg7[%c0_11, %c0_12] : memref<16x32xf32, #tpu.memory_space<vmem>>, vector<16x32xf32>
      tpu.vector_store %arg7[%c0_11, %c0_12], %12 {strides = array<i32>} : memref<16x32xf32, #tpu.memory_space<vmem>>, vector<16x32xf32>,
    } else {
    }
    %c0 = arith.constant 0 : index
    %c0_1 = arith.constant 0 : index
    %3 = vector.load %arg7[%c0, %c0_1] : memref<16x32xf32, #tpu.memory_space<vmem>>, vector<16x32xf32>
    %c0_2 = arith.constant 0 : index
    %c0_3 = arith.constant 0 : index
    %4 = vector.load %arg3[%c0_2, %c0_3] : memref<16x32xbf16, #tpu.memory_space<vmem>>, vector<16x32xbf16>
    %c0_4 = arith.constant 0 : index
    %c0_5 = arith.constant 0 : index
    %5 = vector.load %arg4[%c0_4, %c0_5] : memref<32x32xbf16, #tpu.memory_space<vmem>>, vector<32x32xbf16>
    %cst = arith.constant dense<0.000000e+00> : vector<16x32xf32>
    %6 = tpu.matmul %4, %5, %cst {dimension_numbers = #tpu.dot_dimension_numbers<[1], [0], [0], [1], [0, 0, 1, 1], [], []>} : vector<16x32xbf16>, vector<32x32xbf16>, vector<16x32xf32> -> vector<16x32xf32>
    %7 = arith.addf %3, %6 : vector<16x32xf32>
    %c0_6 = arith.constant 0 : index
    %c0_7 = arith.constant 0 : index
    %8 = vector.load %arg7[%c0_6, %c0_7] : memref<16x32xf32, #tpu.memory_space<vmem>>, vector<16x32xf32>
    tpu.vector_store %arg7[%c0_6, %c0_7], %7 {strides = array<i32>} : memref<16x32xf32, #tpu.memory_space<vmem>>, vector<16x32xf32>,
    %c0_i32_8 = arith.constant 0 : i32
    %9 = arith.cmpi eq, %arg2, %c0_i32_8 : i32
    %10 = arith.extui %9 : i1 to i32
    %c0_i32_9 = arith.constant 0 : i32
    %11 = arith.cmpi ne, %10, %c0_i32_9 : i32
    scf.if %11 {
      %c0_10 = arith.constant 0 : index
      %c0_11 = arith.constant 0 : index
      %12 = vector.load %arg7[%c0_10, %c0_11] : memref<16x32xf32, #tpu.memory_space<vmem>>, vector<16x32xf32>
      %c0_12 = arith.constant 0 : index
      %c0_13 = arith.constant 0 : index
      %13 = vector.load %arg5[%c0_12, %c0_13] : memref<1x32xf32, #tpu.memory_space<vmem>>, vector<1x32xf32>
      %14 = vector.broadcast %13 : vector<1x32xf32> to vector<16x32xf32>
      %15 = arith.addf %12, %14 : vector<16x32xf32>
      %16 = arith.truncf %15 : vector<16x32xf32> to vector<16x32xbf16>
      %c0_14 = arith.constant 0 : index
      %c0_15 = arith.constant 0 : index
      %17 = vector.load %arg6[%c0_14, %c0_15] : memref<16x32xbf16, #tpu.memory_space<vmem>>, vector<16x32xbf16>
      tpu.vector_store %arg6[%c0_14, %c0_15], %16 {strides = array<i32>} : memref<16x32xbf16, #tpu.memory_space<vmem>>, vector<16x32xbf16>,
    } else {
    }
    return
  }
  func.func @transform_0(%arg0: i32, %arg1: i32, %arg2: i32) -> (i32, i32) {
    %c0_i32 = arith.constant 0 : i32
    return %arg0, %arg2 : i32, i32
  }
  func.func @transform_1(%arg0: i32, %arg1: i32, %arg2: i32) -> (i32, i32) {
    %c0_i32 = arith.constant 0 : i32
    return %arg2, %arg1 : i32, i32
  }
  func.func @transform_2(%arg0: i32, %arg1: i32, %arg2: i32) -> (i32, i32) {
    %c0_i32 = arith.constant 0 : i32
    %c0_i32_0 = arith.constant 0 : i32
    return %c0_i32, %arg1 : i32, i32
  }
  func.func @transform_3(%arg0: i32, %arg1: i32, %arg2: i32) -> (i32, i32) {
    %c0_i32 = arith.constant 0 : i32
    return %arg0, %arg1 : i32, i32
  }
}

module attributes {stable_mosaic.version = 11 : i64} {
  func.func @_dense_kernel(%arg0: i32, %arg1: i32, %arg2: i32, %arg3: memref<16x32xbf16, #tpu.memory_space<vmem>>, %arg4: memref<32x64xbf16, #tpu.memory_space<vmem>>, %arg5: memref<1x64xf32, #tpu.memory_space<vmem>>, %arg6: memref<16x64xbf16, #tpu.memory_space<vmem>>, %arg7: memref<16x64xf32, #tpu.memory_space<vmem>>) attributes {dimension_semantics = [#tpu.dimension_semantics<parallel>, #tpu.dimension_semantics<parallel>, #tpu.dimension_semantics<arbitrary>], iteration_bounds = array<i64: 1, 1, 1>, scalar_prefetch = 0 : i64, scratch_operands = 1 : i64, tpu.core_type = #tpu.core_type<tc>, window_params = [{transform_indices = @transform_0, window_bounds = array<i64: 16, 32>}, {transform_indices = @transform_1, window_bounds = array<i64: 32, 64>}, {transform_indices = @transform_2, window_bounds = array<i64: 1, 64>}, {transform_indices = @transform_3, window_bounds = array<i64: 16, 64>}]} {
    %c0_i32 = arith.constant 0 : i32
    %0 = arith.cmpi eq, %arg2, %c0_i32 : i32
    %1 = arith.extui %0 : i1 to i32
    %c0_i32_0 = arith.constant 0 : i32
    %2 = arith.cmpi ne, %1, %c0_i32_0 : i32
    scf.if %2 {
      %cst_10 = arith.constant 0.000000e+00 : f32
      %12 = vector.broadcast %cst_10 : f32 to vector<16x64xf32>
      %c0_11 = arith.constant 0 : index
      %c0_12 = arith.constant 0 : index
      %13 = vector.load %arg7[%c0_11, %c0_12] : memref<16x64xf32, #tpu.memory_space<vmem>>, vector<16x64xf32>
      tpu.vector_store %arg7[%c0_11, %c0_12], %12 {strides = array<i32>} : memref<16x64xf32, #tpu.memory_space<vmem>>, vector<16x64xf32>,
    } else {
    }
    %c0 = arith.constant 0 : index
    %c0_1 = arith.constant 0 : index
    %3 = vector.load %arg7[%c0, %c0_1] : memref<16x64xf32, #tpu.memory_space<vmem>>, vector<16x64xf32>
    %c0_2 = arith.constant 0 : index
    %c0_3 = arith.constant 0 : index
    %4 = vector.load %arg3[%c0_2, %c0_3] : memref<16x32xbf16, #tpu.memory_space<vmem>>, vector<16x32xbf16>
    %c0_4 = arith.constant 0 : index
    %c0_5 = arith.constant 0 : index
    %5 = vector.load %arg4[%c0_4, %c0_5] : memref<32x64xbf16, #tpu.memory_space<vmem>>, vector<32x64xbf16>
    %cst = arith.constant dense<0.000000e+00> : vector<16x64xf32>
    %6 = tpu.matmul %4, %5, %cst {dimension_numbers = #tpu.dot_dimension_numbers<[1], [0], [0], [1], [0, 0, 1, 1], [], []>} : vector<16x32xbf16>, vector<32x64xbf16>, vector<16x64xf32> -> vector<16x64xf32>
    %7 = arith.addf %3, %6 : vector<16x64xf32>
    %c0_6 = arith.constant 0 : index
    %c0_7 = arith.constant 0 : index
    %8 = vector.load %arg7[%c0_6, %c0_7] : memref<16x64xf32, #tpu.memory_space<vmem>>, vector<16x64xf32>
    tpu.vector_store %arg7[%c0_6, %c0_7], %7 {strides = array<i32>} : memref<16x64xf32, #tpu.memory_space<vmem>>, vector<16x64xf32>,
    %c0_i32_8 = arith.constant 0 : i32
    %9 = arith.cmpi eq, %arg2, %c0_i32_8 : i32
    %10 = arith.extui %9 : i1 to i32
    %c0_i32_9 = arith.constant 0 : i32
    %11 = arith.cmpi ne, %10, %c0_i32_9 : i32
    scf.if %11 {
      %c0_10 = arith.constant 0 : index
      %c0_11 = arith.constant 0 : index
      %12 = vector.load %arg7[%c0_10, %c0_11] : memref<16x64xf32, #tpu.memory_space<vmem>>, vector<16x64xf32>
      %c0_12 = arith.constant 0 : index
      %c0_13 = arith.constant 0 : index
      %13 = vector.load %arg5[%c0_12, %c0_13] : memref<1x64xf32, #tpu.memory_space<vmem>>, vector<1x64xf32>
      %14 = vector.broadcast %13 : vector<1x64xf32> to vector<16x64xf32>
      %15 = arith.addf %12, %14 : vector<16x64xf32>
      %cst_14 = arith.constant 0.000000e+00 : f32
      %16 = vector.broadcast %cst_14 : f32 to vector<16x64xf32>
      %17 = arith.maximumf %15, %16 : vector<16x64xf32>
      %18 = arith.truncf %17 : vector<16x64xf32> to vector<16x64xbf16>
      %c0_15 = arith.constant 0 : index
      %c0_16 = arith.constant 0 : index
      %19 = vector.load %arg6[%c0_15, %c0_16] : memref<16x64xbf16, #tpu.memory_space<vmem>>, vector<16x64xbf16>
      tpu.vector_store %arg6[%c0_15, %c0_16], %18 {strides = array<i32>} : memref<16x64xbf16, #tpu.memory_space<vmem>>, vector<16x64xbf16>,
    } else {
    }
    return
  }
  func.func @transform_0(%arg0: i32, %arg1: i32, %arg2: i32) -> (i32, i32) {
    %c0_i32 = arith.constant 0 : i32
    return %arg0, %arg2 : i32, i32
  }
  func.func @transform_1(%arg0: i32, %arg1: i32, %arg2: i32) -> (i32, i32) {
    %c0_i32 = arith.constant 0 : i32
    return %arg2, %arg1 : i32, i32
  }
  func.func @transform_2(%arg0: i32, %arg1: i32, %arg2: i32) -> (i32, i32) {
    %c0_i32 = arith.constant 0 : i32
    %c0_i32_0 = arith.constant 0 : i32
    return %c0_i32, %arg1 : i32, i32
  }
  func.func @transform_3(%arg0: i32, %arg1: i32, %arg2: i32) -> (i32, i32) {
    %c0_i32 = arith.constant 0 : i32
    return %arg0, %arg1 : i32, i32
  }
}

module attributes {stable_mosaic.version = 11 : i64} {
  func.func @_dense_kernel(%arg0: i32, %arg1: i32, %arg2: i32, %arg3: memref<16x32xbf16, #tpu.memory_space<vmem>>, %arg4: memref<32x32xbf16, #tpu.memory_space<vmem>>, %arg5: memref<1x32xf32, #tpu.memory_space<vmem>>, %arg6: memref<16x32xbf16, #tpu.memory_space<vmem>>, %arg7: memref<1x32xf32, #tpu.memory_space<vmem>>, %arg8: memref<1x32xf32, #tpu.memory_space<vmem>>, %arg9: memref<16x32xbf16, #tpu.memory_space<vmem>>, %arg10: memref<16x32xf32, #tpu.memory_space<vmem>>) attributes {dimension_semantics = [#tpu.dimension_semantics<parallel>, #tpu.dimension_semantics<parallel>, #tpu.dimension_semantics<arbitrary>], iteration_bounds = array<i64: 1, 1, 1>, scalar_prefetch = 0 : i64, scratch_operands = 1 : i64, tpu.core_type = #tpu.core_type<tc>, window_params = [{transform_indices = @transform_0, window_bounds = array<i64: 16, 32>}, {transform_indices = @transform_1, window_bounds = array<i64: 32, 32>}, {transform_indices = @transform_2, window_bounds = array<i64: 1, 32>}, {transform_indices = @transform_3, window_bounds = array<i64: 16, 32>}, {transform_indices = @transform_4, window_bounds = array<i64: 1, 32>}, {transform_indices = @transform_5, window_bounds = array<i64: 1, 32>}, {transform_indices = @transform_6, window_bounds = array<i64: 16, 32>}]} {
    %c0_i32 = arith.constant 0 : i32
    %0 = arith.cmpi eq, %arg2, %c0_i32 : i32
    %1 = arith.extui %0 : i1 to i32
    %c0_i32_0 = arith.constant 0 : i32
    %2 = arith.cmpi ne, %1, %c0_i32_0 : i32
    scf.if %2 {
      %cst_10 = arith.constant 0.000000e+00 : f32
      %12 = vector.broadcast %cst_10 : f32 to vector<16x32xf32>
      %c0_11 = arith.constant 0 : index
      %c0_12 = arith.constant 0 : index
      %13 = vector.load %arg10[%c0_11, %c0_12] : memref<16x32xf32, #tpu.memory_space<vmem>>, vector<16x32xf32>
      tpu.vector_store %arg10[%c0_11, %c0_12], %12 {strides = array<i32>} : memref<16x32xf32, #tpu.memory_space<vmem>>, vector<16x32xf32>,
    } else {
    }
    %c0 = arith.constant 0 : index
    %c0_1 = arith.constant 0 : index
    %3 = vector.load %arg10[%c0, %c0_1] : memref<16x32xf32, #tpu.memory_space<vmem>>, vector<16x32xf32>
    %c0_2 = arith.constant 0 : index
    %c0_3 = arith.constant 0 : index
    %4 = vector.load %arg3[%c0_2, %c0_3] : memref<16x32xbf16, #tpu.memory_space<vmem>>, vector<16x32xbf16>
    %c0_4 = arith.constant 0 : index
    %c0_5 = arith.constant 0 : index
    %5 = vector.load %arg4[%c0_4, %c0_5] : memref<32x32xbf16, #tpu.memory_space<vmem>>, vector<32x32xbf16>
    %cst = arith.constant dense<0.000000e+00> : vector<16x32xf32>
    %6 = tpu.matmul %4, %5, %cst {dimension_numbers = #tpu.dot_dimension_numbers<[1], [0], [0], [1], [0, 0, 1, 1], [], []>} : vector<16x32xbf16>, vector<32x32xbf16>, vector<16x32xf32> -> vector<16x32xf32>
    %7 = arith.addf %3, %6 : vector<16x32xf32>
    %c0_6 = arith.constant 0 : index
    %c0_7 = arith.constant 0 : index
    %8 = vector.load %arg10[%c0_6, %c0_7] : memref<16x32xf32, #tpu.memory_space<vmem>>, vector<16x32xf32>
    tpu.vector_store %arg10[%c0_6, %c0_7], %7 {strides = array<i32>} : memref<16x32xf32, #tpu.memory_space<vmem>>, vector<16x32xf32>,
    %c0_i32_8 = arith.constant 0 : i32
    %9 = arith.cmpi eq, %arg2, %c0_i32_8 : i32
    %10 = arith.extui %9 : i1 to i32
    %c0_i32_9 = arith.constant 0 : i32
    %11 = arith.cmpi ne, %10, %c0_i32_9 : i32
    scf.if %11 {
      %c0_10 = arith.constant 0 : index
      %c0_11 = arith.constant 0 : index
      %12 = vector.load %arg10[%c0_10, %c0_11] : memref<16x32xf32, #tpu.memory_space<vmem>>, vector<16x32xf32>
      %c0_12 = arith.constant 0 : index
      %c0_13 = arith.constant 0 : index
      %13 = vector.load %arg5[%c0_12, %c0_13] : memref<1x32xf32, #tpu.memory_space<vmem>>, vector<1x32xf32>
      %14 = vector.broadcast %13 : vector<1x32xf32> to vector<16x32xf32>
      %15 = arith.addf %12, %14 : vector<16x32xf32>
      %c0_14 = arith.constant 0 : index
      %c0_15 = arith.constant 0 : index
      %16 = vector.load %arg6[%c0_14, %c0_15] : memref<16x32xbf16, #tpu.memory_space<vmem>>, vector<16x32xbf16>
      %17 = arith.extf %16 : vector<16x32xbf16> to vector<16x32xf32>
      %18 = arith.addf %15, %17 : vector<16x32xf32>
      %cst_16 = arith.constant dense<0.000000e+00> : vector<16xf32>
      %19 = vector.multi_reduction <add>, %18, %cst_16 [1] : vector<16x32xf32> to vector<16xf32>
      %20 = vector.shape_cast %19 : vector<16xf32> to vector<16x1xf32>
      %cst_17 = arith.constant 3.200000e+01 : f32
      %21 = vector.broadcast %cst_17 : f32 to vector<16x1xf32>
      %22 = arith.divf %20, %21 : vector<16x1xf32>
      %23 = vector.broadcast %22 : vector<16x1xf32> to vector<16x32xf32>
      %24 = arith.subf %18, %23 : vector<16x32xf32>
      %25 = arith.mulf %24, %24 : vector<16x32xf32>
      %cst_18 = arith.constant dense<0.000000e+00> : vector<16xf32>
      %26 = vector.multi_reduction <add>, %25, %cst_18 [1] : vector<16x32xf32> to vector<16xf32>
      %27 = vector.shape_cast %26 : vector<16xf32> to vector<16x1xf32>
      %cst_19 = arith.constant 3.200000e+01 : f32
      %28 = vector.broadcast %cst_19 : f32 to vector<16x1xf32>
      %29 = arith.divf %27, %28 : vector<16x1xf32>
      %30 = vector.broadcast %22 : vector<16x1xf32> to vector<16x32xf32>
      %31 = arith.subf %18, %30 : vector<16x32xf32>
      %cst_20 = arith.constant 9.99999974E-6 : f32
      %32 = vector.broadcast %cst_20 : f32 to vector<16x1xf32>
      %33 = arith.addf %29, %32 : vector<16x1xf32>
      %34 = math.rsqrt %33 : vector<16x1xf32>
      %35 = vector.broadcast %34 : vector<16x1xf32> to vector<16x32xf32>
      %36 = arith.mulf %31, %35 : vector<16x32xf32>
      %c0_21 = arith.constant 0 : index
      %c0_22 = arith.constant 0 : index
      %37 = vector.load %arg7[%c0_21, %c0_22] : memref<1x32xf32, #tpu.memory_space<vmem>>, vector<1x32xf32>
      %38 = vector.broadcast %37 : vector<1x32xf32> to vector<16x32xf32>
      %39 = arith.mulf %36, %38 : vector<16x32xf32>
      %c0_23 = arith.constant 0 : index
      %c0_24 = arith.constant 0 : index
      %40 = vector.load %arg8[%c0_23, %c0_24] : memref<1x32xf32, #tpu.memory_space<vmem>>, vector<1x32xf32>
      %41 = vector.broadcast %40 : vector<1x32xf32> to vector<16x32xf32>
      %42 = arith.addf %39, %41 : vector<16x32xf32>
      %43 = arith.truncf %42 : vector<16x32xf32> to vector<16x32xbf16>
      %c0_25 = arith.constant 0 : index
      %c0_26 = arith.constant 0 : index
      %44 = vector.load %arg9[%c0_25, %c0_26] : memref<16x32xbf16, #tpu.memory_space<vmem>>, vector<16x32xbf16>
      tpu.vector_store %arg9[%c0_25, %c0_26], %43 {strides = array<i32>} : memref<16x32xbf16, #tpu.memory_space<vmem>>, vector<16x32xbf16>,
    } else {
    }
    return
  }
  func.func @transform_0(%arg0: i32, %arg1: i32, %arg2: i32) -> (i32, i32) {
    %c0_i32 = arith.constant 0 : i32
    return %arg0, %arg2 : i32, i32
  }
  func.func @transform_1(%arg0: i32, %arg1: i32, %arg2: i32) -> (i32, i32) {
    %c0_i32 = arith.constant 0 : i32
    return %arg2, %arg1 : i32, i32
  }
  func.func @transform_2(%arg0: i32, %arg1: i32, %arg2: i32) -> (i32, i32) {
    %c0_i32 = arith.constant 0 : i32
    %c0_i32_0 = arith.constant 0 : i32
    return %c0_i32, %arg1 : i32, i32
  }
  func.func @transform_3(%arg0: i32, %arg1: i32, %arg2: i32) -> (i32, i32) {
    %c0_i32 = arith.constant 0 : i32
    return %arg0, %arg1 : i32, i32
  }
  func.func @transform_4(%arg0: i32, %arg1: i32, %arg2: i32) -> (i32, i32) {
    %c0_i32 = arith.constant 0 : i32
    %c0_i32_0 = arith.constant 0 : i32
    return %c0_i32, %arg1 : i32, i32
  }
  func.func @transform_5(%arg0: i32, %arg1: i32, %arg2: i32) -> (i32, i32) {
    %c0_i32 = arith.constant 0 : i32
    %c0_i32_0 = arith.constant 0 : i32
    return %c0_i32, %arg1 : i32, i32
  }
  func.func @transform_6(%arg0: i32, %arg1: i32, %arg2: i32) -> (i32, i32) {
    %c0_i32 = arith.constant 0 : i32
    return %arg0, %arg1 : i32, i32
  }
}

</mosaic_0001>

<llo_original>
// kernel: transformer_forward.28
$region0: #{transformer_forward.28}
  #allocation0 [shape = 'u32[]', space=smem, size = 0x4, offset = 0x4, fixed_abs, tag = 'smem constant byte address 0x4 - core index']
  #allocation1 [shape = 'u32[72,128]{1,0:T(1,128)}', space=vmem, size = 0x9000, scoped, tag = 'internal scratch']
  #allocation2 [shape = 'f32[16,96]{1,0:T(8,128)}', space=vmem, size = 0x2000, scoped, tag = 'scratch operand']
  %s0 = inlined_call_operand.vmem [shape: bf16[16,32], index: 0, kind: input, shape index: {}]
  %s1 = inlined_call_operand.vmem [shape: bf16[32,96], index: 1, kind: input, shape index: {}]
  %s2 = inlined_call_operand.vmem [shape: f32[1,96], index: 2, kind: input, shape index: {}]
  %s3 = inlined_call_operand.vmem [shape: bf16[16,96], index: 3, kind: output, shape index: {}]
  %s4 = sld [smem:[#allocation0]]
  $region30: #{transformer_forward.28} parent=0
    _
  %s6 = ssub.s32 1, %s4
  %s7 = scalar_select 0, %s6, %s4
  // Predicated region
  $region2: #{transformer_forward.28} parent=0 // pred_check
    _
  $region3: #{transformer_forward.28} parent=0 // pred_check_branch
    %9 = sbr.rel (0) target = $region5
  $region4: #{transformer_forward.28} parent=0 // pred_region
    _
  $region5: #{transformer_forward.28} parent=0 // pred_fallthru
    _
  // Predicated region
  $region6: #{transformer_forward.28} parent=0 // pred_check
    _
  $region7: #{transformer_forward.28} parent=0 // pred_check_branch
    %11 = sbr.rel (0) target = $region9
  $region8: #{transformer_forward.28} parent=0 // pred_region
    _
  $region9: #{transformer_forward.28} parent=0 // pred_fallthru
    _
  // Predicated region
  $region10: #{transformer_forward.28} parent=0 // pred_check
    _
  $region11: #{transformer_forward.28} parent=0 // pred_check_branch
    %13 = sbr.rel (0) target = $region13
  $region12: #{transformer_forward.28} parent=0 // pred_region
    _
  $region13: #{transformer_forward.28} parent=0 // pred_fallthru
    _
  %p15 = scmp.eq.s32.totalorder 0, 0
  // Predicated region
  $region14: #{transformer_forward.28} parent=0 // pred_check
    %p16 = pneg %p15
  $region15: #{transformer_forward.28} parent=0 // pred_check_branch
    %18 = sbr.rel (%p16) target = $region17
  $region16: #{transformer_forward.28} parent=0 // pred_region
    %vm19 = vcmask 785408
    %20 = vst.msk [vmem:[#allocation2] sm:$0xff] %vm19, 0.0
    %21 = vst.msk [vmem:[#allocation2 + $0x8] sm:$0xff] %vm19, 0.0
  $region17: #{transformer_forward.28} parent=0 // pred_fallthru
    _
  %v22 = vld [vmem:[#allocation2] sm:$0xff]
  %v23 = vld [vmem:[#allocation2 + $0x8] sm:$0xff]
  %v24 = vld [vmem:[%s0] sm:$0xf]
  %v25 = vld [vmem:[%s0 + $0x4] sm:$0xf]
  %v26 = vld [vmem:[%s1] sm:$0xf]
  %v27 = vld [vmem:[%s1 + $0x4] sm:$0xf]
  %v28 = vld [vmem:[%s1 + $0x8] sm:$0xf]
  %v29 = vld [vmem:[%s1 + $0xc] sm:$0xf]
  %v32 = vunpack.c.l.b16 %v24
  %v33 = vunpack.c.l.b16 %v25
  %v34 = vpack.c.b16 %v33, %v32
  %v39 = vunpack.c.l.b16 %v26
  %v40 = vunpack.c.l.b16 %v27
  %v41 = vunpack.c.l.b16 %v28
  %v42 = vunpack.c.l.b16 %v29
  %v43 = vpack.c.b16 %v40, %v39
  %v44 = vpack.c.b16 %v42, %v41
  %vm47 = vcmask 261120
  %v49 = vsel %vm47, %v34, 0
  %51 = vmatpush.bf16.msra.mxu0 0
  %52 = vmatpush.bf16.msra.mxu0 0
  %53 = vmatpush.bf16.msra.mxu0 0
  %54 = vmatpush.bf16.msra.mxu0 0
  %55 = vmatpush.bf16.msra.mxu0 0
  %56 = vmatpush.bf16.msra.mxu0 0
  %57 = vmatpush.bf16.msra.mxu0 %v44
  %58 = vmatpush.bf16.msra.mxu0 %v43
  %59 = vmatmul.bf16.gmra.mxu0 %v49
  %v60 = vpop.f32.mrf.mxu0
  %v61 = vadd.f32 0.0, %v60
  %v62 = vpop.f32.mrf.mxu0
  %v63 = vadd.f32 0.0, %v62
  %64 = vdwg.mxu0
  %v65 = vadd.f32 %v22, %v61
  %v66 = vadd.f32 %v23, %v63
  %vm67 = vcmask 785408
  %68 = vst.msk [vmem:[#allocation2] sm:$0xff] %vm67, %v65
  %69 = vst.msk [vmem:[#allocation2 + $0x8] sm:$0xff] %vm67, %v66
  // Predicated region
  $region18: #{transformer_forward.28} parent=0 // pred_check
    %p70 = pneg %p15
  $region19: #{transformer_forward.28} parent=0 // pred_check_branch
    %72 = sbr.rel (%p70) target = $region21
  $region20: #{transformer_forward.28} parent=0 // pred_region
    %v73 = vld [vmem:[#allocation2] sm:$0xff]
    %v74 = vld [vmem:[#allocation2 + $0x8] sm:$0xff]
    %v75 = vld [vmem:[%s2] sm:$0x1]
    %v77 = vperm.slane %v75, 0
    %v79 = vadd.f32 %v73, %v77
    %v80 = vadd.f32 %v74, %v77
    %v81 = vpack.c.bf16 %v79, %v79
    %v82 = vpack.c.bf16 %v80, %v80
    %vm83 = vcmask 781312
    %84 = vst.msk [vmem:[%s3] sm:$0xf] %vm83, %v81
    %85 = vst.msk [vmem:[%s3 + $0x4] sm:$0xf] %vm83, %v82
  $region21: #{transformer_forward.28} parent=0 // pred_fallthru
    _
  // Predicated region
  $region22: #{transformer_forward.28} parent=0 // pred_check
    _
  $region23: #{transformer_forward.28} parent=0 // pred_check_branch
    %87 = sbr.rel (0) target = $region25
  $region24: #{transformer_forward.28} parent=0 // pred_region
    _
  $region25: #{transformer_forward.28} parent=0 // pred_fallthru
    _
  // Predicated region
  $region26: #{transformer_forward.28} parent=0 // pred_check
    _
  $region27: #{transformer_forward.28} parent=0 // pred_check_branch
    %89 = sbr.rel (0) target = $region29
  $region28: #{transformer_forward.28} parent=0 // pred_region
    _
  $region29: #{transformer_forward.28} parent=0 // pred_fallthru
    _

// kernel: transformer_forward.31
$region0: #{transformer_forward.31}
  #allocation0 [shape = 'u32[]', space=smem, size = 0x4, offset = 0x4, fixed_abs, tag = 'smem constant byte address 0x4 - core index']
  #allocation1 [shape = 'u32[72,128]{1,0:T(1,128)}', space=vmem, size = 0x9000, scoped, tag = 'internal scratch']
  #allocation2 [shape = 'f32[16,64]{1,0:T(8,128)}', space=vmem, size = 0x2000, scoped, tag = 'scratch operand']
  %s0 = inlined_call_operand.vmem [shape: bf16[16,32], index: 0, kind: input, shape index: {}]
  %s1 = inlined_call_operand.vmem [shape: bf16[32,64], index: 1, kind: input, shape index: {}]
  %s2 = inlined_call_operand.vmem [shape: f32[1,64], index: 2, kind: input, shape index: {}]
  %s3 = inlined_call_operand.vmem [shape: bf16[16,64], index: 3, kind: output, shape index: {}]
  %s4 = sld [smem:[#allocation0]]
  $region30: #{transformer_forward.31} parent=0
    _
  %s6 = ssub.s32 1, %s4
  %s7 = scalar_select 0, %s6, %s4
  // Predicated region
  $region2: #{transformer_forward.31} parent=0 // pred_check
    _
  $region3: #{transformer_forward.31} parent=0 // pred_check_branch
    %9 = sbr.rel (0) target = $region5
  $region4: #{transformer_forward.31} parent=0 // pred_region
    _
  $region5: #{transformer_forward.31} parent=0 // pred_fallthru
    _
  // Predicated region
  $region6: #{transformer_forward.31} parent=0 // pred_check
    _
  $region7: #{transformer_forward.31} parent=0 // pred_check_branch
    %11 = sbr.rel (0) target = $region9
  $region8: #{transformer_forward.31} parent=0 // pred_region
    _
  $region9: #{transformer_forward.31} parent=0 // pred_fallthru
    _
  // Predicated region
  $region10: #{transformer_forward.31} parent=0 // pred_check
    _
  $region11: #{transformer_forward.31} parent=0 // pred_check_branch
    %13 = sbr.rel (0) target = $region13
  $region12: #{transformer_forward.31} parent=0 // pred_region
    _
  $region13: #{transformer_forward.31} parent=0 // pred_fallthru
    _
  %p15 = scmp.eq.s32.totalorder 0, 0
  // Predicated region
  $region14: #{transformer_forward.31} parent=0 // pred_check
    %p16 = pneg %p15
  $region15: #{transformer_forward.31} parent=0 // pred_check_branch
    %18 = sbr.rel (%p16) target = $region17
  $region16: #{transformer_forward.31} parent=0 // pred_region
    %vm19 = vcmask 523264
    %20 = vst.msk [vmem:[#allocation2] sm:$0xff] %vm19, 0.0
    %21 = vst.msk [vmem:[#allocation2 + $0x8] sm:$0xff] %vm19, 0.0
  $region17: #{transformer_forward.31} parent=0 // pred_fallthru
    _
  %v22 = vld [vmem:[#allocation2] sm:$0xff]
  %v23 = vld [vmem:[#allocation2 + $0x8] sm:$0xff]
  %v24 = vld [vmem:[%s0] sm:$0xf]
  %v25 = vld [vmem:[%s0 + $0x4] sm:$0xf]
  %v26 = vld [vmem:[%s1] sm:$0xf]
  %v27 = vld [vmem:[%s1 + $0x4] sm:$0xf]
  %v28 = vld [vmem:[%s1 + $0x8] sm:$0xf]
  %v29 = vld [vmem:[%s1 + $0xc] sm:$0xf]
  %v32 = vunpack.c.l.b16 %v24
  %v33 = vunpack.c.l.b16 %v25
  %v34 = vpack.c.b16 %v33, %v32
  %v39 = vunpack.c.l.b16 %v26
  %v40 = vunpack.c.l.b16 %v27
  %v41 = vunpack.c.l.b16 %v28
  %v42 = vunpack.c.l.b16 %v29
  %v43 = vpack.c.b16 %v40, %v39
  %v44 = vpack.c.b16 %v42, %v41
  %vm47 = vcmask 261120
  %v49 = vsel %vm47, %v34, 0
  %51 = vmatpush.bf16.msra.mxu0 0
  %52 = vmatpush.bf16.msra.mxu0 0
  %53 = vmatpush.bf16.msra.mxu0 0
  %54 = vmatpush.bf16.msra.mxu0 0
  %55 = vmatpush.bf16.msra.mxu0 0
  %56 = vmatpush.bf16.msra.mxu0 0
  %57 = vmatpush.bf16.msra.mxu0 %v44
  %58 = vmatpush.bf16.msra.mxu0 %v43
  %59 = vmatmul.bf16.gmra.mxu0 %v49
  %v60 = vpop.f32.mrf.mxu0
  %v61 = vadd.f32 0.0, %v60
  %v62 = vpop.f32.mrf.mxu0
  %v63 = vadd.f32 0.0, %v62
  %64 = vdwg.mxu0
  %v65 = vadd.f32 %v22, %v61
  %v66 = vadd.f32 %v23, %v63
  %vm67 = vcmask 523264
  %68 = vst.msk [vmem:[#allocation2] sm:$0xff] %vm67, %v65
  %69 = vst.msk [vmem:[#allocation2 + $0x8] sm:$0xff] %vm67, %v66
  // Predicated region
  $region18: #{transformer_forward.31} parent=0 // pred_check
    %p70 = pneg %p15
  $region19: #{transformer_forward.31} parent=0 // pred_check_branch
    %72 = sbr.rel (%p70) target = $region21
  $region20: #{transformer_forward.31} parent=0 // pred_region
    %v73 = vld [vmem:[#allocation2] sm:$0xff]
    %v74 = vld [vmem:[#allocation2 + $0x8] sm:$0xff]
    %v75 = vld [vmem:[%s2] sm:$0x1]
    %v77 = vperm.slane %v75, 0
    %v79 = vadd.f32 %v73, %v77
    %v80 = vadd.f32 %v74, %v77
    %v81 = vmax.f32 %v79, 0.0
    %v82 = vmax.f32 %v80, 0.0
    %v83 = vpack.c.bf16 %v81, %v81
    %v84 = vpack.c.bf16 %v82, %v82
    %vm85 = vcmask 519168
    %86 = vst.msk [vmem:[%s3] sm:$0xf] %vm85, %v83
    %87 = vst.msk [vmem:[%s3 + $0x4] sm:$0xf] %vm85, %v84
  $region21: #{transformer_forward.31} parent=0 // pred_fallthru
    _
  // Predicated region
  $region22: #{transformer_forward.31} parent=0 // pred_check
    _
  $region23: #{transformer_forward.31} parent=0 // pred_check_branch
    %89 = sbr.rel (0) target = $region25
  $region24: #{transformer_forward.31} parent=0 // pred_region
    _
  $region25: #{transformer_forward.31} parent=0 // pred_fallthru
    _
  // Predicated region
  $region26: #{transformer_forward.31} parent=0 // pred_check
    _
  $region27: #{transformer_forward.31} parent=0 // pred_check_branch
    %91 = sbr.rel (0) target = $region29
  $region28: #{transformer_forward.31} parent=0 // pred_region
    _
  $region29: #{transformer_forward.31} parent=0 // pred_fallthru
    _

// kernel: transformer_forward.30
$region0: #{transformer_forward.30}
  #allocation0 [shape = 'u32[]', space=smem, size = 0x4, offset = 0x4, fixed_abs, tag = 'smem constant byte address 0x4 - core index']
  #allocation1 [shape = 'u32[72,128]{1,0:T(1,128)}', space=vmem, size = 0x9000, scoped, tag = 'internal scratch']
  #allocation2 [shape = 'f32[16,32]{1,0:T(8,128)}', space=vmem, size = 0x2000, scoped, tag = 'scratch operand']
  %s0 = inlined_call_operand.vmem [shape: bf16[16,32], index: 0, kind: input, shape index: {}]
  %s1 = inlined_call_operand.vmem [shape: bf16[32,32], index: 1, kind: input, shape index: {}]
  %s2 = inlined_call_operand.vmem [shape: f32[1,32], index: 2, kind: input, shape index: {}]
  %s3 = inlined_call_operand.vmem [shape: bf16[16,32], index: 3, kind: input, shape index: {}]
  %s4 = inlined_call_operand.vmem [shape: f32[1,32], index: 4, kind: input, shape index: {}]
  %s5 = inlined_call_operand.vmem [shape: f32[1,32], index: 5, kind: input, shape index: {}]
  %s6 = inlined_call_operand.vmem [shape: bf16[16,32], index: 6, kind: output, shape index: {}]
  %s7 = sld [smem:[#allocation0]]
  $region42: #{transformer_forward.30} parent=0
    _
  %s9 = ssub.s32 1, %s7
  %s10 = scalar_select 0, %s9, %s7
  // Predicated region
  $region2: #{transformer_forward.30} parent=0 // pred_check
    _
  $region3: #{transformer_forward.30} parent=0 // pred_check_branch
    %12 = sbr.rel (0) target = $region5
  $region4: #{transformer_forward.30} parent=0 // pred_region
    _
  $region5: #{transformer_forward.30} parent=0 // pred_fallthru
    _
  // Predicated region
  $region6: #{transformer_forward.30} parent=0 // pred_check
    _
  $region7: #{transformer_forward.30} parent=0 // pred_check_branch
    %14 = sbr.rel (0) target = $region9
  $region8: #{transformer_forward.30} parent=0 // pred_region
    _
  $region9: #{transformer_forward.30} parent=0 // pred_fallthru
    _
  // Predicated region
  $region10: #{transformer_forward.30} parent=0 // pred_check
    _
  $region11: #{transformer_forward.30} parent=0 // pred_check_branch
    %16 = sbr.rel (0) target = $region13
  $region12: #{transformer_forward.30} parent=0 // pred_region
    _
  $region13: #{transformer_forward.30} parent=0 // pred_fallthru
    _
  // Predicated region
  $region14: #{transformer_forward.30} parent=0 // pred_check
    _
  $region15: #{transformer_forward.30} parent=0 // pred_check_branch
    %18 = sbr.rel (0) target = $region17
  $region16: #{transformer_forward.30} parent=0 // pred_region
    _
  $region17: #{transformer_forward.30} parent=0 // pred_fallthru
    _
  // Predicated region
  $region18: #{transformer_forward.30} parent=0 // pred_check
    _
  $region19: #{transformer_forward.30} parent=0 // pred_check_branch
    %20 = sbr.rel (0) target = $region21
  $region20: #{transformer_forward.30} parent=0 // pred_region
    _
  $region21: #{transformer_forward.30} parent=0 // pred_fallthru
    _
  // Predicated region
  $region22: #{transformer_forward.30} parent=0 // pred_check
    _
  $region23: #{transformer_forward.30} parent=0 // pred_check_branch
    %22 = sbr.rel (0) target = $region25
  $region24: #{transformer_forward.30} parent=0 // pred_region
    _
  $region25: #{transformer_forward.30} parent=0 // pred_fallthru
    _
  %p24 = scmp.eq.s32.totalorder 0, 0
  // Predicated region
  $region26: #{transformer_forward.30} parent=0 // pred_check
    %p25 = pneg %p24
  $region27: #{transformer_forward.30} parent=0 // pred_check_branch
    %27 = sbr.rel (%p25) target = $region29
  $region28: #{transformer_forward.30} parent=0 // pred_region
    %vm28 = vcmask 261120
    %29 = vst.msk [vmem:[#allocation2] sm:$0xff] %vm28, 0.0
    %30 = vst.msk [vmem:[#allocation2 + $0x8] sm:$0xff] %vm28, 0.0
  $region29: #{transformer_forward.30} parent=0 // pred_fallthru
    _
  %v31 = vld [vmem:[#allocation2] sm:$0xff]
  %v32 = vld [vmem:[#allocation2 + $0x8] sm:$0xff]
  %v33 = vld [vmem:[%s0] sm:$0xf]
  %v34 = vld [vmem:[%s0 + $0x4] sm:$0xf]
  %v35 = vld [vmem:[%s1] sm:$0xf]
  %v36 = vld [vmem:[%s1 + $0x4] sm:$0xf]
  %v37 = vld [vmem:[%s1 + $0x8] sm:$0xf]
  %v38 = vld [vmem:[%s1 + $0xc] sm:$0xf]
  %v41 = vunpack.c.l.b16 %v33
  %v42 = vunpack.c.l.b16 %v34
  %v43 = vpack.c.b16 %v42, %v41
  %v48 = vunpack.c.l.b16 %v35
  %v49 = vunpack.c.l.b16 %v36
  %v50 = vunpack.c.l.b16 %v37
  %v51 = vunpack.c.l.b16 %v38
  %v52 = vpack.c.b16 %v49, %v48
  %v53 = vpack.c.b16 %v51, %v50
  %vm56 = vcmask 261120
  %v58 = vsel %vm56, %v43, 0
  %60 = vmatpush.bf16.msra.mxu0 0
  %61 = vmatpush.bf16.msra.mxu0 0
  %62 = vmatpush.bf16.msra.mxu0 0
  %63 = vmatpush.bf16.msra.mxu0 0
  %64 = vmatpush.bf16.msra.mxu0 0
  %65 = vmatpush.bf16.msra.mxu0 0
  %66 = vmatpush.bf16.msra.mxu0 %v53
  %67 = vmatpush.bf16.msra.mxu0 %v52
  %68 = vmatmul.bf16.gmra.mxu0 %v58
  %v69 = vpop.f32.mrf.mxu0
  %v70 = vadd.f32 0.0, %v69
  %v71 = vpop.f32.mrf.mxu0
  %v72 = vadd.f32 0.0, %v71
  %73 = vdwg.mxu0
  %v74 = vadd.f32 %v31, %v70
  %v75 = vadd.f32 %v32, %v72
  %76 = vst.msk [vmem:[#allocation2] sm:$0xff] %vm56, %v74
  %77 = vst.msk [vmem:[#allocation2 + $0x8] sm:$0xff] %vm56, %v75
  // Predicated region
  $region30: #{transformer_forward.30} parent=0 // pred_check
    %p78 = pneg %p24
  $region31: #{transformer_forward.30} parent=0 // pred_check_branch
    %80 = sbr.rel (%p78) target = $region33
  $region32: #{transformer_forward.30} parent=0 // pred_region
    %v81 = vld [vmem:[#allocation2] sm:$0xff]
    %v82 = vld [vmem:[#allocation2 + $0x8] sm:$0xff]
    %v83 = vld [vmem:[%s2] sm:$0x1]
    %v85 = vperm.slane %v83, 0
    %v87 = vadd.f32 %v81, %v85
    %v88 = vadd.f32 %v82, %v85
    %v89 = vld [vmem:[%s3] sm:$0xf]
    %v90 = vld [vmem:[%s3 + $0x4] sm:$0xf]
    %v91 = vunpack.c.l.bf16 %v89
    %v92 = vunpack.c.l.bf16 %v90
    %v93 = vadd.f32 %v87, %v91
    %v94 = vadd.f32 %v88, %v92
    %v95 = vsel %vm56, %v93, 0.0
    %96 = vadd.xlane.f32.xlu0 %v95
    %v97 = vpop.xlane.xlu0 %96
    %v98 = vsel %vm56, %v94, 0.0
    %99 = vadd.xlane.f32.xlu0 %v98
    %v100 = vpop.xlane.xlu0 %99
    %v101 = vrcp.pop 32.0
    %v102 = vmul.f32 32.0, %v101
    %v103 = vsub.f32 1.0, %v102
    %v104 = vmul.f32 %v101, %v103
    %v105 = vadd.f32 %v101, %v104
    %vm106 = vweird.f32 %v101
    %v107 = vsel %vm106, %v101, %v105
    %v108 = vmul.f32 %v97, %v107
    %v109 = vmul.f32 %v100, %v107
    %v110 = vsub.f32 %v93, %v108
    %v111 = vsub.f32 %v94, %v109
    %v112 = vmul.f32 %v110, %v110
    %v113 = vmul.f32 %v111, %v111
    %v114 = vsel %vm56, %v112, 0.0
    %115 = vadd.xlane.f32.xlu0 %v114
    %v116 = vpop.xlane.xlu0 %115
    %v117 = vsel %vm56, %v113, 0.0
    %118 = vadd.xlane.f32.xlu0 %v117
    %v119 = vpop.xlane.xlu0 %118
    %v120 = vmul.f32 %v116, %v107
    %v121 = vmul.f32 %v119, %v107
    %v122 = vadd.f32 %v120, 1e-05
    %v123 = vadd.f32 %v121, 1e-05
    %v124 = vrsqrt.pop %v122
    %v125 = vmul.f32 %v124, %v122
    %v126 = vmul.f32 %v125, %v124
    %v127 = vmul.f32 0.5, %v126
    %v128 = vsub.f32 1.5, %v127
    %v129 = vmul.f32 %v124, %v128
    %vm130 = vweird.f32 %v122
    %vm131 = vweird.f32 %v124
    %vm132 = vmor %vm130, %vm131
    %v133 = vsel %vm132, %v124, %v129
    %v134 = vrsqrt.pop %v123
    %v135 = vmul.f32 %v134, %v123
    %v136 = vmul.f32 %v135, %v134
    %v137 = vmul.f32 0.5, %v136
    %v138 = vsub.f32 1.5, %v137
    %v139 = vmul.f32 %v134, %v138
    %vm140 = vweird.f32 %v123
    %vm141 = vweird.f32 %v134
    %vm142 = vmor %vm140, %vm141
    %v143 = vsel %vm142, %v134, %v139
    %v144 = vmul.f32 %v110, %v133
    %v145 = vmul.f32 %v111, %v143
    %v146 = vld [vmem:[%s4] sm:$0x1]
    %v148 = vperm.slane %v146, 0
    %v150 = vmul.f32 %v144, %v148
    %v151 = vmul.f32 %v145, %v148
    %v152 = vld [vmem:[%s5] sm:$0x1]
    %v154 = vperm.slane %v152, 0
    %v156 = vadd.f32 %v150, %v154
    %v157 = vadd.f32 %v151, %v154
    %v158 = vpack.c.bf16 %v156, %v156
    %v159 = vpack.c.bf16 %v157, %v157
    %vm160 = vcmask 257024
    %161 = vst.msk [vmem:[%s6] sm:$0xf] %vm160, %v158
    %162 = vst.msk [vmem:[%s6 + $0x4] sm:$0xf] %vm160, %v159
  $region33: #{transformer_forward.30} parent=0 // pred_fallthru
    _
  // Predicated region
  $region34: #{transformer_forward.30} parent=0 // pred_check
    _
  $region35: #{transformer_forward.30} parent=0 // pred_check_branch
    %164 = sbr.rel (0) target = $region37
  $region36: #{transformer_forward.30} parent=0 // pred_region
    _
  $region37: #{transformer_forward.30} parent=0 // pred_fallthru
    _
  // Predicated region
  $region38: #{transformer_forward.30} parent=0 // pred_check
    _
  $region39: #{transformer_forward.30} parent=0 // pred_check_branch
    %166 = sbr.rel (0) target = $region41
  $region40: #{transformer_forward.30} parent=0 // pred_region
    _
  $region41: #{transformer_forward.30} parent=0 // pred_fallthru
    _

// kernel: transformer_forward.29
$region0: #{transformer_forward.29}
  #allocation0 [shape = 'u32[]', space=smem, size = 0x4, offset = 0x4, fixed_abs, tag = 'smem constant byte address 0x4 - core index']
  #allocation1 [shape = 'u32[72,128]{1,0:T(1,128)}', space=vmem, size = 0x9000, scoped, tag = 'internal scratch']
  %s0 = inlined_call_operand.vmem [shape: bf16[2,8,96], index: 0, kind: input, shape index: {}]
  %s1 = inlined_call_operand.vmem [shape: f32[2,1,8], index: 1, kind: input, shape index: {}]
  %s2 = inlined_call_operand.vmem [shape: bf16[2,8,32], index: 2, kind: output, shape index: {}]
  %s3 = sld [smem:[#allocation0]]
  $region41: #{transformer_forward.29} parent=0
    _
  %s5 = ssub.s32 1, %s3
  %s6 = scalar_select 0, %s5, %s3
  loop: start=0, step=1, limit=4
  $region2: #{transformer_forward.29} parent=0 // loop_pre_header
    _
  $region3: #{transformer_forward.29} parent=0 // loop_header
    %s8 = sphi 0, %s12
    %p9 = scmp.ge.s32.totalorder %s8, 4
    %s18 = sphi 0, %s20
    %s21 = sphi 0, %s18
    %s22 = sphi 0, %s21
    %s38 = sphi 0, %s22
    %s44 = sphi 0, %s46
    %s47 = sphi 0, %s44
    %s48 = sphi 0, %s47
    %s64 = sphi 0, %s48
    %s70 = sphi 0, %s72
    %s73 = sphi 0, %s70
    %s74 = sphi 0, %s73
    %s90 = sphi 0, %s74
  $region4: #{transformer_forward.29} parent=0 // loop_header_branch
    %11 = sbr.rel (%p9) target = $region8
  $region5: #{transformer_forward.29} parent=0 // loop_body
    %s13 = ssub.s32 %s8, 1
    %s14 = ssub.s32 %s8, 2
    %s15 = sadd.s32 %s8, 1
    %s16 = ssub.s32 %s8, %s15
    %p17 = scmp.eq.s32.totalorder %s16, 0
    %s19 = sadd.s32 %s18, 1
    %s20 = scalar_select %p17, %s18, %s19
    %p23 = pneg %p17
    %p24 = scmp.eq.s32.totalorder %s8, 1
    %p25 = por %p23, %p24
    %p26 = scmp.ne.s32.totalorder %s18, %s21
    %p27 = scmp.eq.s32.totalorder %s8, 0
    %p28 = por %p26, %p27
    %p29 = scmp.ne.s32.totalorder %s18, %s21
    %p30 = scmp.eq.s32.totalorder %s13, 1
    %p31 = por %p29, %p30
    %p32 = scmp.ne.s32.totalorder %s21, %s22
    %p33 = scmp.eq.s32.totalorder %s13, 0
    %p34 = por %p32, %p33
    %p35 = scmp.ne.s32.totalorder %s21, %s22
    %p36 = scmp.eq.s32.totalorder %s14, 1
    %p37 = por %p35, %p36
    %p39 = scmp.ne.s32.totalorder %s22, %s38
    %p40 = scmp.eq.s32.totalorder %s14, 0
    %p41 = por %p39, %p40
    %s42 = ssub.s32 %s8, %s15
    %p43 = scmp.eq.s32.totalorder %s42, 0
    %s45 = sadd.s32 %s44, 1
    %s46 = scalar_select %p43, %s44, %s45
    %p49 = pneg %p43
    %p50 = scmp.eq.s32.totalorder %s8, 1
    %p51 = por %p49, %p50
    %p52 = scmp.ne.s32.totalorder %s44, %s47
    %p53 = scmp.eq.s32.totalorder %s8, 0
    %p54 = por %p52, %p53
    %p55 = scmp.ne.s32.totalorder %s44, %s47
    %p56 = scmp.eq.s32.totalorder %s13, 1
    %p57 = por %p55, %p56
    %p58 = scmp.ne.s32.totalorder %s47, %s48
    %p59 = scmp.eq.s32.totalorder %s13, 0
    %p60 = por %p58, %p59
    %p61 = scmp.ne.s32.totalorder %s47, %s48
    %p62 = scmp.eq.s32.totalorder %s14, 1
    %p63 = por %p61, %p62
    %p65 = scmp.ne.s32.totalorder %s48, %s64
    %p66 = scmp.eq.s32.totalorder %s14, 0
    %p67 = por %p65, %p66
    %s68 = ssub.s32 %s8, %s15
    %p69 = scmp.eq.s32.totalorder %s68, 0
    %s71 = sadd.s32 %s70, 1
    %s72 = scalar_select %p69, %s70, %s71
    %p75 = pneg %p69
    %p76 = scmp.eq.s32.totalorder %s8, 1
    %p77 = por %p75, %p76
    %p78 = scmp.ne.s32.totalorder %s70, %s73
    %p79 = scmp.eq.s32.totalorder %s8, 0
    %p80 = por %p78, %p79
    %p81 = scmp.ne.s32.totalorder %s70, %s73
    %p82 = scmp.eq.s32.totalorder %s13, 1
    %p83 = por %p81, %p82
    %p84 = scmp.ne.s32.totalorder %s73, %s74
    %p85 = scmp.eq.s32.totalorder %s13, 0
    %p86 = por %p84, %p85
    %p87 = scmp.ne.s32.totalorder %s73, %s74
    %p88 = scmp.eq.s32.totalorder %s14, 1
    %p89 = por %p87, %p88
    %p91 = scmp.ne.s32.totalorder %s74, %s90
    %p92 = scmp.eq.s32.totalorder %s14, 0
    %p93 = por %p91, %p92
    %p94 = scmp.le.s32.totalorder 1, %s8
    %p95 = scmp.lt.s32.totalorder %s8, 3
    %p96 = pnand %p94, %p95
    %p97 = pneg %p96
    // Predicated region
    $region9: #{transformer_forward.29} parent=5 // pred_check
      _
    $region10: #{transformer_forward.29} parent=5 // pred_check_branch
      %99 = sbr.rel (%p96) target = $region12
    $region11: #{transformer_forward.29} parent=5 // pred_region
      %s100 = ssub.s32 %s8, 1
    $region12: #{transformer_forward.29} parent=5 // pred_fallthru
      _
    %p101 = scmp.lt.s32.totalorder %s8, 2
    // Predicated region
    $region13: #{transformer_forward.29} parent=5 // pred_check
      %p102 = pneg %p101
    $region14: #{transformer_forward.29} parent=5 // pred_check_branch
      %104 = sbr.rel (%p102) target = $region16
    $region15: #{transformer_forward.29} parent=5 // pred_region
      // Predicated region
      $region17: #{transformer_forward.29} parent=15 // pred_check
        %p105 = pneg %p28
      $region18: #{transformer_forward.29} parent=15 // pred_check_branch
        %107 = sbr.rel (%p105) target = $region20
      $region19: #{transformer_forward.29} parent=15 // pred_region
        %p108 = scmp.lt.s32.totalorder %s8, 1
        %s109 = scalar_select %p108, %s8, 1
        %s110 = smul.addr %s109, 4
        %s111 = scalar_lea.vmem %s0, %s110
      $region20: #{transformer_forward.29} parent=15 // pred_fallthru
        _
      // Predicated region
      $region21: #{transformer_forward.29} parent=15 // pred_check
        %p112 = pneg %p54
      $region22: #{transformer_forward.29} parent=15 // pred_check_branch
        %114 = sbr.rel (%p112) target = $region24
      $region23: #{transformer_forward.29} parent=15 // pred_region
        %p115 = scmp.lt.s32.totalorder %s8, 1
        %s116 = scalar_select %p115, %s8, 1
        %s117 = scalar_lea.vmem %s1, %s116
      $region24: #{transformer_forward.29} parent=15 // pred_fallthru
        _
    $region16: #{transformer_forward.29} parent=5 // pred_fallthru
      _
    %p118 = scmp.le.s32.totalorder 1, %s8
    %p119 = scmp.lt.s32.totalorder %s8, 3
    %p120 = pnand %p118, %p119
    %p121 = pneg %p120
    // Predicated region
    $region25: #{transformer_forward.29} parent=5 // pred_check
      _
    $region26: #{transformer_forward.29} parent=5 // pred_check_branch
      %123 = sbr.rel (%p120) target = $region28
    $region27: #{transformer_forward.29} parent=5 // pred_region
      %s124 = ssub.s32 %s8, 1
      %p125 = scmp.lt.s32.totalorder %s13, 1
      %s126 = scalar_select %p125, %s13, 1
      %s127 = smul.addr %s126, 4
      %s128 = scalar_lea.vmem %s0, %s127
      %p129 = pneg %p34
      %p130 = pneg %p31
      %p131 = scmp.lt.s32.totalorder %s13, 1
      %s132 = scalar_select %p131, %s13, 1
      %s133 = scalar_lea.vmem %s1, %s132
      %p134 = pneg %p60
      %p135 = pneg %p57
      %p136 = pneg %p86
      %p137 = pneg %p83
      %p138 = scmp.lt.s32.totalorder %s13, 1
      %s139 = scalar_select %p138, %s13, 1
      %s140 = smul.addr %s139, 4
      %s141 = scalar_lea.vmem %s2, %s140
      %p142 = scmp.lt.s32.totalorder %s13, 1
      %s143 = scalar_select %p142, %s13, 1
      %s144 = smul.addr %s143, 4
      %s145 = scalar_lea.vmem %s0, %s144
      %p146 = scmp.lt.s32.totalorder %s13, 1
      %s147 = scalar_select %p146, %s13, 1
      %s148 = scalar_lea.vmem %s1, %s147
      %p149 = scmp.lt.s32.totalorder %s13, 1
      %s150 = scalar_select %p149, %s13, 1
      %s151 = smul.addr %s150, 4
      %s152 = scalar_lea.vmem %s2, %s151
      %v154 = vld [vmem:[%s145] sm:$0xf]
      %v155 = vld [vmem:[%s148] sm:$0x1]
      %v157 = vunpack.c.l.b16 %v154
      %v158 = vpack.c.b16 %v157, %v157
      %159 = vrot.lane.b32.xlu0 %v158, 96
      %v160 = vpop.permute.xlu0 %159
      %vm161 = vcmask 64512
      %v163 = vsel %vm161, %v154, 0
      %v166 = vsel %vm161, %v160, 0
      %168 = vmatpush.bf16.xpose.msra.mxu0 0
      %169 = vmatpush.bf16.xpose.msra.mxu0 0
      %170 = vmatpush.bf16.xpose.msra.mxu0 0
      %171 = vmatpush.bf16.xpose.msra.mxu0 0
      %172 = vmatpush.bf16.xpose.msra.mxu0 0
      %173 = vmatpush.bf16.xpose.msra.mxu0 0
      %174 = vmatpush.bf16.xpose.msra.mxu0 0
      %175 = vmatpush.bf16.xpose.msra.mxu0 %v166
      %176 = vmatmul.bf16.gmra.mxu0 %v163
      %v177 = vpop.f32.mrf.mxu0
      %v178 = vadd.f32 0.0, %v177
      %v179 = vpop.f32.mrf.mxu0
      %180 = vdwg.mxu0
      %v181 = vmul.f32 %v178, 0.35355338
      %v183 = vperm.slane %v155, 0
      %v185 = vadd.f32 %v181, %v183
      %v186 = vsel %vm161, %v185, -inf
      %187 = vmax.xlane.f32.xlu0 %v186
      %v188 = vpop.xlane.xlu0 %187
      %v189 = vsub.f32 %v185, %v188
      %v190 = vmul.f32 %v189, 1.442695
      %v191 = vpow.pop %v190
      %v192 = vsel %vm161, %v191, 0.0
      %193 = vadd.xlane.f32.xlu0 %v192
      %v194 = vpop.xlane.xlu0 %193
      %v195 = vrcp.pop %v194
      %v196 = vmul.f32 %v191, %v195
      %v197 = vpack.c.bf16 %v196, %v196
      %198 = vrot.lane.b32.xlu0 %v158, 64
      %v199 = vpop.permute.xlu0 %198
      %v201 = vsel %vm161, %v197, 0
      %vm203 = vcmask 1043456
      %v205 = vsel %vm203, %v199, 0
      %207 = vmatpush.bf16.msra.mxu0 0
      %208 = vmatpush.bf16.msra.mxu0 0
      %209 = vmatpush.bf16.msra.mxu0 0
      %210 = vmatpush.bf16.msra.mxu0 0
      %211 = vmatpush.bf16.msra.mxu0 0
      %212 = vmatpush.bf16.msra.mxu0 0
      %213 = vmatpush.bf16.msra.mxu0 0
      %214 = vmatpush.bf16.msra.mxu0 %v205
      %215 = vmatmul.bf16.gmra.mxu0 %v201
      %v216 = vpop.f32.mrf.mxu0
      %v217 = vadd.f32 0.0, %v216
      %v218 = vpop.f32.mrf.mxu0
      %219 = vdwg.mxu0
      %v220 = vpack.c.bf16 %v217, %v217
      %vm221 = vcmask 60416
      %222 = vst.msk [vmem:[%s152] sm:$0xf] %vm221, %v220
      %223 = vrot.lane.b32.xlu0 %v158, 120
      %v224 = vpop.permute.xlu0 %223
      %225 = vrot.lane.b32.xlu0 %v158, 88
      %v226 = vpop.permute.xlu0 %225
      %v228 = vsel %vm161, %v224, 0
      %v231 = vsel %vm161, %v226, 0
      %233 = vmatpush.bf16.xpose.msra.mxu0 0
      %234 = vmatpush.bf16.xpose.msra.mxu0 0
      %235 = vmatpush.bf16.xpose.msra.mxu0 0
      %236 = vmatpush.bf16.xpose.msra.mxu0 0
      %237 = vmatpush.bf16.xpose.msra.mxu0 0
      %238 = vmatpush.bf16.xpose.msra.mxu0 0
      %239 = vmatpush.bf16.xpose.msra.mxu0 0
      %240 = vmatpush.bf16.xpose.msra.mxu0 %v231
      %241 = vmatmul.bf16.gmra.mxu0 %v228
      %v242 = vpop.f32.mrf.mxu0
      %v243 = vadd.f32 0.0, %v242
      %v244 = vpop.f32.mrf.mxu0
      %245 = vdwg.mxu0
      %v246 = vmul.f32 %v243, 0.35355338
      %v247 = vadd.f32 %v246, %v183
      %v248 = vsel %vm161, %v247, -inf
      %249 = vmax.xlane.f32.xlu0 %v248
      %v250 = vpop.xlane.xlu0 %249
      %v251 = vsub.f32 %v247, %v250
      %v252 = vmul.f32 %v251, 1.442695
      %v253 = vpow.pop %v252
      %v254 = vsel %vm161, %v253, 0.0
      %255 = vadd.xlane.f32.xlu0 %v254
      %v256 = vpop.xlane.xlu0 %255
      %v257 = vrcp.pop %v256
      %v258 = vmul.f32 %v253, %v257
      %v259 = vpack.c.bf16 %v258, %v258
      %260 = vrot.lane.b32.xlu0 %v158, 56
      %v261 = vpop.permute.xlu0 %260
      %v263 = vsel %vm161, %v259, 0
      %v266 = vsel %vm203, %v261, 0
      %268 = vmatpush.bf16.msra.mxu0 0
      %269 = vmatpush.bf16.msra.mxu0 0
      %270 = vmatpush.bf16.msra.mxu0 0
      %271 = vmatpush.bf16.msra.mxu0 0
      %272 = vmatpush.bf16.msra.mxu0 0
      %273 = vmatpush.bf16.msra.mxu0 0
      %274 = vmatpush.bf16.msra.mxu0 0
      %275 = vmatpush.bf16.msra.mxu0 %v266
      %276 = vmatmul.bf16.gmra.mxu0 %v263
      %v277 = vpop.f32.mrf.mxu0
      %v278 = vadd.f32 0.0, %v277
      %v279 = vpop.f32.mrf.mxu0
      %280 = vdwg.mxu0
      %v281 = vpack.c.bf16 %v278, %v278
      %283 = vrot.lane.b32.xlu0 %v281, 8
      %v284 = vpop.permute.xlu0 %283
      %vm286 = vcmask 126016
      %287 = vst.msk [vmem:[%s152] sm:$0xf] %vm286, %v284
      %288 = vrot.lane.b32.xlu0 %v158, 112
      %v289 = vpop.permute.xlu0 %288
      %290 = vrot.lane.b32.xlu0 %v158, 80
      %v291 = vpop.permute.xlu0 %290
      %v293 = vsel %vm161, %v289, 0
      %v296 = vsel %vm161, %v291, 0
      %298 = vmatpush.bf16.xpose.msra.mxu0 0
      %299 = vmatpush.bf16.xpose.msra.mxu0 0
      %300 = vmatpush.bf16.xpose.msra.mxu0 0
      %301 = vmatpush.bf16.xpose.msra.mxu0 0
      %302 = vmatpush.bf16.xpose.msra.mxu0 0
      %303 = vmatpush.bf16.xpose.msra.mxu0 0
      %304 = vmatpush.bf16.xpose.msra.mxu0 0
      %305 = vmatpush.bf16.xpose.msra.mxu0 %v296
      %306 = vmatmul.bf16.gmra.mxu0 %v293
      %v307 = vpop.f32.mrf.mxu0
      %v308 = vadd.f32 0.0, %v307
      %v309 = vpop.f32.mrf.mxu0
      %310 = vdwg.mxu0
      %v311 = vmul.f32 %v308, 0.35355338
      %v312 = vadd.f32 %v311, %v183
      %v313 = vsel %vm161, %v312, -inf
      %314 = vmax.xlane.f32.xlu0 %v313
      %v315 = vpop.xlane.xlu0 %314
      %v316 = vsub.f32 %v312, %v315
      %v317 = vmul.f32 %v316, 1.442695
      %v318 = vpow.pop %v317
      %v319 = vsel %vm161, %v318, 0.0
      %320 = vadd.xlane.f32.xlu0 %v319
      %v321 = vpop.xlane.xlu0 %320
      %v322 = vrcp.pop %v321
      %v323 = vmul.f32 %v318, %v322
      %v324 = vpack.c.bf16 %v323, %v323
      %325 = vrot.lane.b32.xlu0 %v158, 48
      %v326 = vpop.permute.xlu0 %325
      %v328 = vsel %vm161, %v324, 0
      %v331 = vsel %vm203, %v326, 0
      %333 = vmatpush.bf16.msra.mxu0 0
      %334 = vmatpush.bf16.msra.mxu0 0
      %335 = vmatpush.bf16.msra.mxu0 0
      %336 = vmatpush.bf16.msra.mxu0 0
      %337 = vmatpush.bf16.msra.mxu0 0
      %338 = vmatpush.bf16.msra.mxu0 0
      %339 = vmatpush.bf16.msra.mxu0 0
      %340 = vmatpush.bf16.msra.mxu0 %v331
      %341 = vmatmul.bf16.gmra.mxu0 %v328
      %v342 = vpop.f32.mrf.mxu0
      %v343 = vadd.f32 0.0, %v342
      %v344 = vpop.f32.mrf.mxu0
      %345 = vdwg.mxu0
      %v346 = vpack.c.bf16 %v343, %v343
      %348 = vrot.lane.b32.xlu0 %v346, 16
      %v349 = vpop.permute.xlu0 %348
      %vm351 = vcmask 191616
      %352 = vst.msk [vmem:[%s152] sm:$0xf] %vm351, %v349
      %353 = vrot.lane.b32.xlu0 %v158, 104
      %v354 = vpop.permute.xlu0 %353
      %355 = vrot.lane.b32.xlu0 %v158, 72
      %v356 = vpop.permute.xlu0 %355
      %v358 = vsel %vm161, %v354, 0
      %v361 = vsel %vm161, %v356, 0
      %363 = vmatpush.bf16.xpose.msra.mxu0 0
      %364 = vmatpush.bf16.xpose.msra.mxu0 0
      %365 = vmatpush.bf16.xpose.msra.mxu0 0
      %366 = vmatpush.bf16.xpose.msra.mxu0 0
      %367 = vmatpush.bf16.xpose.msra.mxu0 0
      %368 = vmatpush.bf16.xpose.msra.mxu0 0
      %369 = vmatpush.bf16.xpose.msra.mxu0 0
      %370 = vmatpush.bf16.xpose.msra.mxu0 %v361
      %371 = vmatmul.bf16.gmra.mxu0 %v358
      %v372 = vpop.f32.mrf.mxu0
      %v373 = vadd.f32 0.0, %v372
      %v374 = vpop.f32.mrf.mxu0
      %375 = vdwg.mxu0
      %v376 = vmul.f32 %v373, 0.35355338
      %v377 = vadd.f32 %v376, %v183
      %v378 = vsel %vm161, %v377, -inf
      %379 = vmax.xlane.f32.xlu0 %v378
      %v380 = vpop.xlane.xlu0 %379
      %v381 = vsub.f32 %v377, %v380
      %v382 = vmul.f32 %v381, 1.442695
      %v383 = vpow.pop %v382
      %v384 = vsel %vm161, %v383, 0.0
      %385 = vadd.xlane.f32.xlu0 %v384
      %v386 = vpop.xlane.xlu0 %385
      %v387 = vrcp.pop %v386
      %v388 = vmul.f32 %v383, %v387
      %v389 = vpack.c.bf16 %v388, %v388
      %390 = vrot.lane.b32.xlu0 %v158, 40
      %v391 = vpop.permute.xlu0 %390
      %v393 = vsel %vm161, %v389, 0
      %v396 = vsel %vm203, %v391, 0
      %398 = vmatpush.bf16.msra.mxu0 0
      %399 = vmatpush.bf16.msra.mxu0 0
      %400 = vmatpush.bf16.msra.mxu0 0
      %401 = vmatpush.bf16.msra.mxu0 0
      %402 = vmatpush.bf16.msra.mxu0 0
      %403 = vmatpush.bf16.msra.mxu0 0
      %404 = vmatpush.bf16.msra.mxu0 0
      %405 = vmatpush.bf16.msra.mxu0 %v396
      %406 = vmatmul.bf16.gmra.mxu0 %v393
      %v407 = vpop.f32.mrf.mxu0
      %v408 = vadd.f32 0.0, %v407
      %v409 = vpop.f32.mrf.mxu0
      %410 = vdwg.mxu0
      %v411 = vpack.c.bf16 %v408, %v408
      %413 = vrot.lane.b32.xlu0 %v411, 24
      %v414 = vpop.permute.xlu0 %413
      %vm416 = vcmask 257216
      %417 = vst.msk [vmem:[%s152] sm:$0xf] %vm416, %v414
      %p418 = scmp.lt.s32.totalorder %s13, 1
      %s419 = scalar_select %p418, %s13, 1
      %s420 = smul.addr %s419, 4
      %s421 = scalar_lea.vmem %s2, %s420
      // Predicated region
      $region29: #{transformer_forward.29} parent=27 // pred_check
        %p422 = pneg %p83
      $region30: #{transformer_forward.29} parent=27 // pred_check_branch
        %424 = sbr.rel (%p422) target = $region32
      $region31: #{transformer_forward.29} parent=27 // pred_region
        _
      $region32: #{transformer_forward.29} parent=27 // pred_fallthru
        _
    $region28: #{transformer_forward.29} parent=5 // pred_fallthru
      _
    %p425 = scmp.le.s32.totalorder 2, %s8
    // Predicated region
    $region33: #{transformer_forward.29} parent=5 // pred_check
      %p426 = pneg %p425
    $region34: #{transformer_forward.29} parent=5 // pred_check_branch
      %428 = sbr.rel (%p426) target = $region36
    $region35: #{transformer_forward.29} parent=5 // pred_region
      %s429 = ssub.s32 %s8, 2
      // Predicated region
      $region37: #{transformer_forward.29} parent=35 // pred_check
        %p430 = pneg %p89
      $region38: #{transformer_forward.29} parent=35 // pred_check_branch
        %432 = sbr.rel (%p430) target = $region40
      $region39: #{transformer_forward.29} parent=35 // pred_region
        %p433 = scmp.lt.s32.totalorder %s14, 1
        %s434 = scalar_select %p433, %s14, 1
        %s435 = smul.addr %s434, 4
        %s436 = scalar_lea.vmem %s2, %s435
      $region40: #{transformer_forward.29} parent=35 // pred_fallthru
        _
    $region36: #{transformer_forward.29} parent=5 // pred_fallthru
      _
  $region6: #{transformer_forward.29} parent=0 // loop_footer
    %s12 = sadd.s32 1, %s8
  $region7: #{transformer_forward.29} parent=0 // loop_footer_branch
    %7 = sbr.rel target = $region3
  $region8: #{transformer_forward.29} parent=0 // loop_exit
    _

// kernel: transformer_forward.42
$region0: #{transformer_forward.42}
  #allocation0 [shape = 'u32[]', space=smem, size = 0x4, offset = 0x4, fixed_abs, tag = 'smem constant byte address 0x4 - core index']
  #allocation1 [shape = 'u32[72,128]{1,0:T(1,128)}', space=vmem, size = 0x9000, scoped, tag = 'internal scratch']
  #allocation2 [shape = 'f32[16,64]{1,0:T(8,128)}', space=vmem, size = 0x2000, scoped, tag = 'scratch operand']
  %s0 = inlined_call_operand.vmem [shape: bf16[16,32], index: 0, kind: input, shape index: {}]
  %s1 = inlined_call_operand.vmem [shape: bf16[32,64], index: 1, kind: input, shape index: {}]
  %s2 = inlined_call_operand.vmem [shape: f32[1,64], index: 2, kind: input, shape index: {}]
  %s3 = inlined_call_operand.vmem [shape: bf16[16,64], index: 3, kind: output, shape index: {}]
  %s4 = sld [smem:[#allocation0]]
  $region30: #{transformer_forward.42} parent=0
    _
  %s6 = ssub.s32 1, %s4
  %s7 = scalar_select 0, %s6, %s4
  // Predicated region
  $region2: #{transformer_forward.42} parent=0 // pred_check
    _
  $region3: #{transformer_forward.42} parent=0 // pred_check_branch
    %9 = sbr.rel (0) target = $region5
  $region4: #{transformer_forward.42} parent=0 // pred_region
    _
  $region5: #{transformer_forward.42} parent=0 // pred_fallthru
    _
  // Predicated region
  $region6: #{transformer_forward.42} parent=0 // pred_check
    _
  $region7: #{transformer_forward.42} parent=0 // pred_check_branch
    %11 = sbr.rel (0) target = $region9
  $region8: #{transformer_forward.42} parent=0 // pred_region
    _
  $region9: #{transformer_forward.42} parent=0 // pred_fallthru
    _
  // Predicated region
  $region10: #{transformer_forward.42} parent=0 // pred_check
    _
  $region11: #{transformer_forward.42} parent=0 // pred_check_branch
    %13 = sbr.rel (0) target = $region13
  $region12: #{transformer_forward.42} parent=0 // pred_region
    _
  $region13: #{transformer_forward.42} parent=0 // pred_fallthru
    _
  %p15 = scmp.eq.s32.totalorder 0, 0
  // Predicated region
  $region14: #{transformer_forward.42} parent=0 // pred_check
    %p16 = pneg %p15
  $region15: #{transformer_forward.42} parent=0 // pred_check_branch
    %18 = sbr.rel (%p16) target = $region17
  $region16: #{transformer_forward.42} parent=0 // pred_region
    %vm19 = vcmask 523264
    %20 = vst.msk [vmem:[#allocation2] sm:$0xff] %vm19, 0.0
    %21 = vst.msk [vmem:[#allocation2 + $0x8] sm:$0xff] %vm19, 0.0
  $region17: #{transformer_forward.42} parent=0 // pred_fallthru
    _
  %v22 = vld [vmem:[#allocation2] sm:$0xff]
  %v23 = vld [vmem:[#allocation2 + $0x8] sm:$0xff]
  %v24 = vld [vmem:[%s0] sm:$0xf]
  %v25 = vld [vmem:[%s0 + $0x4] sm:$0xf]
  %v26 = vld [vmem:[%s1] sm:$0xf]
  %v27 = vld [vmem:[%s1 + $0x4] sm:$0xf]
  %v28 = vld [vmem:[%s1 + $0x8] sm:$0xf]
  %v29 = vld [vmem:[%s1 + $0xc] sm:$0xf]
  %v32 = vunpack.c.l.b16 %v24
  %v33 = vunpack.c.l.b16 %v25
  %v34 = vpack.c.b16 %v33, %v32
  %v39 = vunpack.c.l.b16 %v26
  %v40 = vunpack.c.l.b16 %v27
  %v41 = vunpack.c.l.b16 %v28
  %v42 = vunpack.c.l.b16 %v29
  %v43 = vpack.c.b16 %v40, %v39
  %v44 = vpack.c.b16 %v42, %v41
  %vm47 = vcmask 261120
  %v49 = vsel %vm47, %v34, 0
  %51 = vmatpush.bf16.msra.mxu0 0
  %52 = vmatpush.bf16.msra.mxu0 0
  %53 = vmatpush.bf16.msra.mxu0 0
  %54 = vmatpush.bf16.msra.mxu0 0
  %55 = vmatpush.bf16.msra.mxu0 0
  %56 = vmatpush.bf16.msra.mxu0 0
  %57 = vmatpush.bf16.msra.mxu0 %v44
  %58 = vmatpush.bf16.msra.mxu0 %v43
  %59 = vmatmul.bf16.gmra.mxu0 %v49
  %v60 = vpop.f32.mrf.mxu0
  %v61 = vadd.f32 0.0, %v60
  %v62 = vpop.f32.mrf.mxu0
  %v63 = vadd.f32 0.0, %v62
  %64 = vdwg.mxu0
  %v65 = vadd.f32 %v22, %v61
  %v66 = vadd.f32 %v23, %v63
  %vm67 = vcmask 523264
  %68 = vst.msk [vmem:[#allocation2] sm:$0xff] %vm67, %v65
  %69 = vst.msk [vmem:[#allocation2 + $0x8] sm:$0xff] %vm67, %v66
  // Predicated region
  $region18: #{transformer_forward.42} parent=0 // pred_check
    %p70 = pneg %p15
  $region19: #{transformer_forward.42} parent=0 // pred_check_branch
    %72 = sbr.rel (%p70) target = $region21
  $region20: #{transformer_forward.42} parent=0 // pred_region
    %v73 = vld [vmem:[#allocation2] sm:$0xff]
    %v74 = vld [vmem:[#allocation2 + $0x8] sm:$0xff]
    %v75 = vld [vmem:[%s2] sm:$0x1]
    %v77 = vperm.slane %v75, 0
    %v79 = vadd.f32 %v73, %v77
    %v80 = vadd.f32 %v74, %v77
    %v81 = vpack.c.bf16 %v79, %v79
    %v82 = vpack.c.bf16 %v80, %v80
    %vm83 = vcmask 519168
    %84 = vst.msk [vmem:[%s3] sm:$0xf] %vm83, %v81
    %85 = vst.msk [vmem:[%s3 + $0x4] sm:$0xf] %vm83, %v82
  $region21: #{transformer_forward.42} parent=0 // pred_fallthru
    _
  // Predicated region
  $region22: #{transformer_forward.42} parent=0 // pred_check
    _
  $region23: #{transformer_forward.42} parent=0 // pred_check_branch
    %87 = sbr.rel (0) target = $region25
  $region24: #{transformer_forward.42} parent=0 // pred_region
    _
  $region25: #{transformer_forward.42} parent=0 // pred_fallthru
    _
  // Predicated region
  $region26: #{transformer_forward.42} parent=0 // pred_check
    _
  $region27: #{transformer_forward.42} parent=0 // pred_check_branch
    %89 = sbr.rel (0) target = $region29
  $region28: #{transformer_forward.42} parent=0 // pred_region
    _
  $region29: #{transformer_forward.42} parent=0 // pred_fallthru
    _

// kernel: transformer_forward.32
$region0: #{transformer_forward.32}
  #allocation0 [shape = 'u32[]', space=smem, size = 0x4, offset = 0x4, fixed_abs, tag = 'smem constant byte address 0x4 - core index']
  #allocation1 [shape = 'u32[72,128]{1,0:T(1,128)}', space=vmem, size = 0x9000, scoped, tag = 'internal scratch']
  #allocation2 [shape = 'f32[16,32]{1,0:T(8,128)}', space=vmem, size = 0x2000, scoped, tag = 'scratch operand']
  %s0 = inlined_call_operand.vmem [shape: bf16[16,64], index: 0, kind: input, shape index: {}]
  %s1 = inlined_call_operand.vmem [shape: bf16[64,32], index: 1, kind: input, shape index: {}]
  %s2 = inlined_call_operand.vmem [shape: f32[1,32], index: 2, kind: input, shape index: {}]
  %s3 = inlined_call_operand.vmem [shape: bf16[16,32], index: 3, kind: input, shape index: {}]
  %s4 = inlined_call_operand.vmem [shape: f32[1,32], index: 4, kind: input, shape index: {}]
  %s5 = inlined_call_operand.vmem [shape: f32[1,32], index: 5, kind: input, shape index: {}]
  %s6 = inlined_call_operand.vmem [shape: bf16[16,32], index: 6, kind: output, shape index: {}]
  %s7 = sld [smem:[#allocation0]]
  $region42: #{transformer_forward.32} parent=0
    _
  %s9 = ssub.s32 1, %s7
  %s10 = scalar_select 0, %s9, %s7
  // Predicated region
  $region2: #{transformer_forward.32} parent=0 // pred_check
    _
  $region3: #{transformer_forward.32} parent=0 // pred_check_branch
    %12 = sbr.rel (0) target = $region5
  $region4: #{transformer_forward.32} parent=0 // pred_region
    _
  $region5: #{transformer_forward.32} parent=0 // pred_fallthru
    _
  // Predicated region
  $region6: #{transformer_forward.32} parent=0 // pred_check
    _
  $region7: #{transformer_forward.32} parent=0 // pred_check_branch
    %14 = sbr.rel (0) target = $region9
  $region8: #{transformer_forward.32} parent=0 // pred_region
    _
  $region9: #{transformer_forward.32} parent=0 // pred_fallthru
    _
  // Predicated region
  $region10: #{transformer_forward.32} parent=0 // pred_check
    _
  $region11: #{transformer_forward.32} parent=0 // pred_check_branch
    %16 = sbr.rel (0) target = $region13
  $region12: #{transformer_forward.32} parent=0 // pred_region
    _
  $region13: #{transformer_forward.32} parent=0 // pred_fallthru
    _
  // Predicated region
  $region14: #{transformer_forward.32} parent=0 // pred_check
    _
  $region15: #{transformer_forward.32} parent=0 // pred_check_branch
    %18 = sbr.rel (0) target = $region17
  $region16: #{transformer_forward.32} parent=0 // pred_region
    _
  $region17: #{transformer_forward.32} parent=0 // pred_fallthru
    _
  // Predicated region
  $region18: #{transformer_forward.32} parent=0 // pred_check
    _
  $region19: #{transformer_forward.32} parent=0 // pred_check_branch
    %20 = sbr.rel (0) target = $region21
  $region20: #{transformer_forward.32} parent=0 // pred_region
    _
  $region21: #{transformer_forward.32} parent=0 // pred_fallthru
    _
  // Predicated region
  $region22: #{transformer_forward.32} parent=0 // pred_check
    _
  $region23: #{transformer_forward.32} parent=0 // pred_check_branch
    %22 = sbr.rel (0) target = $region25
  $region24: #{transformer_forward.32} parent=0 // pred_region
    _
  $region25: #{transformer_forward.32} parent=0 // pred_fallthru
    _
  %p24 = scmp.eq.s32.totalorder 0, 0
  // Predicated region
  $region26: #{transformer_forward.32} parent=0 // pred_check
    %p25 = pneg %p24
  $region27: #{transformer_forward.32} parent=0 // pred_check_branch
    %27 = sbr.rel (%p25) target = $region29
  $region28: #{transformer_forward.32} parent=0 // pred_region
    %vm28 = vcmask 261120
    %29 = vst.msk [vmem:[#allocation2] sm:$0xff] %vm28, 0.0
    %30 = vst.msk [vmem:[#allocation2 + $0x8] sm:$0xff] %vm28, 0.0
  $region29: #{transformer_forward.32} parent=0 // pred_fallthru
    _
  %v31 = vld [vmem:[#allocation2] sm:$0xff]
  %v32 = vld [vmem:[#allocation2 + $0x8] sm:$0xff]
  %v33 = vld [vmem:[%s0] sm:$0xf]
  %v34 = vld [vmem:[%s0 + $0x4] sm:$0xf]
  %v35 = vld [vmem:[%s1] sm:$0xf]
  %v36 = vld [vmem:[%s1 + $0x4] sm:$0xf]
  %v37 = vld [vmem:[%s1 + $0x8] sm:$0xf]
  %v38 = vld [vmem:[%s1 + $0xc] sm:$0xf]
  %v39 = vld [vmem:[%s1 + $0x10] sm:$0xf]
  %v40 = vld [vmem:[%s1 + $0x14] sm:$0xf]
  %v41 = vld [vmem:[%s1 + $0x18] sm:$0xf]
  %v42 = vld [vmem:[%s1 + $0x1c] sm:$0xf]
  %v45 = vunpack.c.l.b16 %v33
  %v46 = vunpack.c.l.b16 %v34
  %v47 = vpack.c.b16 %v46, %v45
  %v56 = vunpack.c.l.b16 %v35
  %v57 = vunpack.c.l.b16 %v36
  %v58 = vunpack.c.l.b16 %v37
  %v59 = vunpack.c.l.b16 %v38
  %v60 = vunpack.c.l.b16 %v39
  %v61 = vunpack.c.l.b16 %v40
  %v62 = vunpack.c.l.b16 %v41
  %v63 = vunpack.c.l.b16 %v42
  %v64 = vpack.c.b16 %v57, %v56
  %v65 = vpack.c.b16 %v59, %v58
  %v66 = vpack.c.b16 %v61, %v60
  %v67 = vpack.c.b16 %v63, %v62
  %vm72 = vcmask 523264
  %v74 = vsel %vm72, %v47, 0
  %76 = vmatpush.bf16.msra.mxu0 0
  %77 = vmatpush.bf16.msra.mxu0 0
  %78 = vmatpush.bf16.msra.mxu0 0
  %79 = vmatpush.bf16.msra.mxu0 0
  %80 = vmatpush.bf16.msra.mxu0 %v67
  %81 = vmatpush.bf16.msra.mxu0 %v66
  %82 = vmatpush.bf16.msra.mxu0 %v65
  %83 = vmatpush.bf16.msra.mxu0 %v64
  %84 = vmatmul.bf16.gmra.mxu0 %v74
  %v85 = vpop.f32.mrf.mxu0
  %v86 = vadd.f32 0.0, %v85
  %v87 = vpop.f32.mrf.mxu0
  %v88 = vadd.f32 0.0, %v87
  %89 = vdwg.mxu0
  %v90 = vadd.f32 %v31, %v86
  %v91 = vadd.f32 %v32, %v88
  %vm92 = vcmask 261120
  %93 = vst.msk [vmem:[#allocation2] sm:$0xff] %vm92, %v90
  %94 = vst.msk [vmem:[#allocation2 + $0x8] sm:$0xff] %vm92, %v91
  // Predicated region
  $region30: #{transformer_forward.32} parent=0 // pred_check
    %p95 = pneg %p24
  $region31: #{transformer_forward.32} parent=0 // pred_check_branch
    %97 = sbr.rel (%p95) target = $region33
  $region32: #{transformer_forward.32} parent=0 // pred_region
    %v98 = vld [vmem:[#allocation2] sm:$0xff]
    %v99 = vld [vmem:[#allocation2 + $0x8] sm:$0xff]
    %v100 = vld [vmem:[%s2] sm:$0x1]
    %v102 = vperm.slane %v100, 0
    %v104 = vadd.f32 %v98, %v102
    %v105 = vadd.f32 %v99, %v102
    %v106 = vld [vmem:[%s3] sm:$0xf]
    %v107 = vld [vmem:[%s3 + $0x4] sm:$0xf]
    %v108 = vunpack.c.l.bf16 %v106
    %v109 = vunpack.c.l.bf16 %v107
    %v110 = vadd.f32 %v104, %v108
    %v111 = vadd.f32 %v105, %v109
    %v112 = vsel %vm92, %v110, 0.0
    %113 = vadd.xlane.f32.xlu0 %v112
    %v114 = vpop.xlane.xlu0 %113
    %v115 = vsel %vm92, %v111, 0.0
    %116 = vadd.xlane.f32.xlu0 %v115
    %v117 = vpop.xlane.xlu0 %116
    %v118 = vrcp.pop 32.0
    %v119 = vmul.f32 32.0, %v118
    %v120 = vsub.f32 1.0, %v119
    %v121 = vmul.f32 %v118, %v120
    %v122 = vadd.f32 %v118, %v121
    %vm123 = vweird.f32 %v118
    %v124 = vsel %vm123, %v118, %v122
    %v125 = vmul.f32 %v114, %v124
    %v126 = vmul.f32 %v117, %v124
    %v127 = vsub.f32 %v110, %v125
    %v128 = vsub.f32 %v111, %v126
    %v129 = vmul.f32 %v127, %v127
    %v130 = vmul.f32 %v128, %v128
    %v131 = vsel %vm92, %v129, 0.0
    %132 = vadd.xlane.f32.xlu0 %v131
    %v133 = vpop.xlane.xlu0 %132
    %v134 = vsel %vm92, %v130, 0.0
    %135 = vadd.xlane.f32.xlu0 %v134
    %v136 = vpop.xlane.xlu0 %135
    %v137 = vmul.f32 %v133, %v124
    %v138 = vmul.f32 %v136, %v124
    %v139 = vadd.f32 %v137, 1e-05
    %v140 = vadd.f32 %v138, 1e-05
    %v141 = vrsqrt.pop %v139
    %v142 = vmul.f32 %v141, %v139
    %v143 = vmul.f32 %v142, %v141
    %v144 = vmul.f32 0.5, %v143
    %v145 = vsub.f32 1.5, %v144
    %v146 = vmul.f32 %v141, %v145
    %vm147 = vweird.f32 %v139
    %vm148 = vweird.f32 %v141
    %vm149 = vmor %vm147, %vm148
    %v150 = vsel %vm149, %v141, %v146
    %v151 = vrsqrt.pop %v140
    %v152 = vmul.f32 %v151, %v140
    %v153 = vmul.f32 %v152, %v151
    %v154 = vmul.f32 0.5, %v153
    %v155 = vsub.f32 1.5, %v154
    %v156 = vmul.f32 %v151, %v155
    %vm157 = vweird.f32 %v140
    %vm158 = vweird.f32 %v151
    %vm159 = vmor %vm157, %vm158
    %v160 = vsel %vm159, %v151, %v156
    %v161 = vmul.f32 %v127, %v150
    %v162 = vmul.f32 %v128, %v160
    %v163 = vld [vmem:[%s4] sm:$0x1]
    %v165 = vperm.slane %v163, 0
    %v167 = vmul.f32 %v161, %v165
    %v168 = vmul.f32 %v162, %v165
    %v169 = vld [vmem:[%s5] sm:$0x1]
    %v171 = vperm.slane %v169, 0
    %v173 = vadd.f32 %v167, %v171
    %v174 = vadd.f32 %v168, %v171
    %v175 = vpack.c.bf16 %v173, %v173
    %v176 = vpack.c.bf16 %v174, %v174
    %vm177 = vcmask 257024
    %178 = vst.msk [vmem:[%s6] sm:$0xf] %vm177, %v175
    %179 = vst.msk [vmem:[%s6 + $0x4] sm:$0xf] %vm177, %v176
  $region33: #{transformer_forward.32} parent=0 // pred_fallthru
    _
  // Predicated region
  $region34: #{transformer_forward.32} parent=0 // pred_check
    _
  $region35: #{transformer_forward.32} parent=0 // pred_check_branch
    %181 = sbr.rel (0) target = $region37
  $region36: #{transformer_forward.32} parent=0 // pred_region
    _
  $region37: #{transformer_forward.32} parent=0 // pred_fallthru
    _
  // Predicated region
  $region38: #{transformer_forward.32} parent=0 // pred_check
    _
  $region39: #{transformer_forward.32} parent=0 // pred_check_branch
    %183 = sbr.rel (0) target = $region41
  $region40: #{transformer_forward.32} parent=0 // pred_region
    _
  $region41: #{transformer_forward.32} parent=0 // pred_fallthru
    _

// kernel: transformer_forward.41
$region0: #{transformer_forward.41}
  #allocation0 [shape = 'u32[]', space=smem, size = 0x4, offset = 0x4, fixed_abs, tag = 'smem constant byte address 0x4 - core index']
  #allocation1 [shape = 'u32[72,128]{1,0:T(1,128)}', space=vmem, size = 0x9000, scoped, tag = 'internal scratch']
  #allocation2 [shape = 'f32[16,32]{1,0:T(8,128)}', space=vmem, size = 0x2000, scoped, tag = 'scratch operand']
  %s0 = inlined_call_operand.vmem [shape: bf16[16,32], index: 0, kind: input, shape index: {}]
  %s1 = inlined_call_operand.vmem [shape: bf16[32,32], index: 1, kind: input, shape index: {}]
  %s2 = inlined_call_operand.hbm [shape: f32[1,32], index: 2, kind: input, shape index: {}]
  %s3 = inlined_call_operand.vmem [shape: bf16[16,32], index: 3, kind: output, shape index: {}]
  %s4 = sld [smem:[#allocation0]]
  $region34: #{transformer_forward.41} parent=0
    _
  %s6 = ssub.s32 1, %s4
  %s7 = scalar_select 0, %s6, %s4
  $region1: #{transformer_forward.41} parent=0
    #allocation3 [shape = 'u8[512]{0}', space=vmem, size = 0x400, scoped, tag = 'input window, operand 2, single buffered']
    #allocation4 [shape = 's32[1]{0}', space=sflag, size = 0x4, scoped, tag = 'scoped memory for transformer_forward.41']
    %8 = vsyncpa [#allocation4], 0
    // Predicated region
    $region2: #{transformer_forward.41} parent=1 // pred_check
      _
    $region3: #{transformer_forward.41} parent=1 // pred_check_branch
      %10 = sbr.rel (0) target = $region5
    $region4: #{transformer_forward.41} parent=1 // pred_region
      _
    $region5: #{transformer_forward.41} parent=1 // pred_fallthru
      _
    // Predicated region
    $region6: #{transformer_forward.41} parent=1 // pred_check
      _
    $region7: #{transformer_forward.41} parent=1 // pred_check_branch
      %12 = sbr.rel (0) target = $region9
    $region8: #{transformer_forward.41} parent=1 // pred_region
      _
    $region9: #{transformer_forward.41} parent=1 // pred_fallthru
      _
    // Predicated region
    $region10: #{transformer_forward.41} parent=1 // pred_check
      _
    $region11: #{transformer_forward.41} parent=1 // pred_check_branch
      %14 = sbr.rel (0) target = $region13
    $region12: #{transformer_forward.41} parent=1 // pred_region
      %16 = vsyncadd [#allocation4], 0
      %s18 = sshll.u32 %s2, 4
      %s19 = int_to_ptr.hbm [resolvable:$true] %s18
      %s20 = sshll.u32 [#allocation3], 4
      %s21 = int_to_ptr.vmem [resolvable:$true] %s20
      %23 = dma.hbm_to_vmem [thread:$0]  %s19, 16, %s21, [#allocation4]
    $region13: #{transformer_forward.41} parent=1 // pred_fallthru
      _
    // Predicated region
    $region14: #{transformer_forward.41} parent=1 // pred_check
      _
    $region15: #{transformer_forward.41} parent=1 // pred_check_branch
      %25 = sbr.rel (0) target = $region17
    $region16: #{transformer_forward.41} parent=1 // pred_region
      %27 = dma.done [#allocation4], 16
    $region17: #{transformer_forward.41} parent=1 // pred_fallthru
      _
    %p29 = scmp.eq.s32.totalorder 0, 0
    // Predicated region
    $region18: #{transformer_forward.41} parent=1 // pred_check
      %p30 = pneg %p29
    $region19: #{transformer_forward.41} parent=1 // pred_check_branch
      %32 = sbr.rel (%p30) target = $region21
    $region20: #{transformer_forward.41} parent=1 // pred_region
      %vm33 = vcmask 261120
      %34 = vst.msk [vmem:[#allocation2] sm:$0xff] %vm33, 0.0
      %35 = vst.msk [vmem:[#allocation2 + $0x8] sm:$0xff] %vm33, 0.0
    $region21: #{transformer_forward.41} parent=1 // pred_fallthru
      _
    %v36 = vld [vmem:[#allocation2] sm:$0xff]
    %v37 = vld [vmem:[#allocation2 + $0x8] sm:$0xff]
    %v38 = vld [vmem:[%s0] sm:$0xf]
    %v39 = vld [vmem:[%s0 + $0x4] sm:$0xf]
    %v40 = vld [vmem:[%s1] sm:$0xf]
    %v41 = vld [vmem:[%s1 + $0x4] sm:$0xf]
    %v42 = vld [vmem:[%s1 + $0x8] sm:$0xf]
    %v43 = vld [vmem:[%s1 + $0xc] sm:$0xf]
    %v46 = vunpack.c.l.b16 %v38
    %v47 = vunpack.c.l.b16 %v39
    %v48 = vpack.c.b16 %v47, %v46
    %v53 = vunpack.c.l.b16 %v40
    %v54 = vunpack.c.l.b16 %v41
    %v55 = vunpack.c.l.b16 %v42
    %v56 = vunpack.c.l.b16 %v43
    %v57 = vpack.c.b16 %v54, %v53
    %v58 = vpack.c.b16 %v56, %v55
    %vm61 = vcmask 261120
    %v63 = vsel %vm61, %v48, 0
    %65 = vmatpush.bf16.msra.mxu0 0
    %66 = vmatpush.bf16.msra.mxu0 0
    %67 = vmatpush.bf16.msra.mxu0 0
    %68 = vmatpush.bf16.msra.mxu0 0
    %69 = vmatpush.bf16.msra.mxu0 0
    %70 = vmatpush.bf16.msra.mxu0 0
    %71 = vmatpush.bf16.msra.mxu0 %v58
    %72 = vmatpush.bf16.msra.mxu0 %v57
    %73 = vmatmul.bf16.gmra.mxu0 %v63
    %v74 = vpop.f32.mrf.mxu0
    %v75 = vadd.f32 0.0, %v74
    %v76 = vpop.f32.mrf.mxu0
    %v77 = vadd.f32 0.0, %v76
    %78 = vdwg.mxu0
    %v79 = vadd.f32 %v36, %v75
    %v80 = vadd.f32 %v37, %v77
    %81 = vst.msk [vmem:[#allocation2] sm:$0xff] %vm61, %v79
    %82 = vst.msk [vmem:[#allocation2 + $0x8] sm:$0xff] %vm61, %v80
    // Predicated region
    $region22: #{transformer_forward.41} parent=1 // pred_check
      %p83 = pneg %p29
    $region23: #{transformer_forward.41} parent=1 // pred_check_branch
      %85 = sbr.rel (%p83) target = $region25
    $region24: #{transformer_forward.41} parent=1 // pred_region
      %v86 = vld [vmem:[#allocation2] sm:$0xff]
      %v87 = vld [vmem:[#allocation2 + $0x8] sm:$0xff]
      %v88 = vld [vmem:[#allocation3] sm:$0x1]
      %v90 = vperm.slane %v88, 0
      %v92 = vadd.f32 %v86, %v90
      %v93 = vadd.f32 %v87, %v90
      %v94 = vpack.c.bf16 %v92, %v92
      %v95 = vpack.c.bf16 %v93, %v93
      %vm96 = vcmask 257024
      %97 = vst.msk [vmem:[%s3] sm:$0xf] %vm96, %v94
      %98 = vst.msk [vmem:[%s3 + $0x4] sm:$0xf] %vm96, %v95
    $region25: #{transformer_forward.41} parent=1 // pred_fallthru
      _
    // Predicated region
    $region26: #{transformer_forward.41} parent=1 // pred_check
      _
    $region27: #{transformer_forward.41} parent=1 // pred_check_branch
      %100 = sbr.rel (0) target = $region29
    $region28: #{transformer_forward.41} parent=1 // pred_region
      _
    $region29: #{transformer_forward.41} parent=1 // pred_fallthru
      _
    // Predicated region
    $region30: #{transformer_forward.41} parent=1 // pred_check
      _
    $region31: #{transformer_forward.41} parent=1 // pred_check_branch
      %102 = sbr.rel (0) target = $region33
    $region32: #{transformer_forward.41} parent=1 // pred_region
      _
    $region33: #{transformer_forward.41} parent=1 // pred_fallthru
      _
    %103 = vsyncpa [#allocation4], 1

// kernel: transformer_forward.39
$region0: #{transformer_forward.39}
  #allocation0 [shape = 'u32[]', space=smem, size = 0x4, offset = 0x4, fixed_abs, tag = 'smem constant byte address 0x4 - core index']
  #allocation1 [shape = 'u32[72,128]{1,0:T(1,128)}', space=vmem, size = 0x9000, scoped, tag = 'internal scratch']
  %s0 = inlined_call_operand.vmem [shape: bf16[2,8,96], index: 0, kind: input, shape index: {}]
  %s1 = inlined_call_operand.vmem [shape: f32[2,1,8], index: 1, kind: input, shape index: {}]
  %s2 = inlined_call_operand.vmem [shape: bf16[2,8,32], index: 2, kind: output, shape index: {}]
  %s3 = sld [smem:[#allocation0]]
  $region41: #{transformer_forward.39} parent=0
    _
  %s5 = ssub.s32 1, %s3
  %s6 = scalar_select 0, %s5, %s3
  loop: start=0, step=1, limit=4
  $region2: #{transformer_forward.39} parent=0 // loop_pre_header
    _
  $region3: #{transformer_forward.39} parent=0 // loop_header
    %s8 = sphi 0, %s12
    %p9 = scmp.ge.s32.totalorder %s8, 4
    %s18 = sphi 0, %s20
    %s21 = sphi 0, %s18
    %s22 = sphi 0, %s21
    %s38 = sphi 0, %s22
    %s44 = sphi 0, %s46
    %s47 = sphi 0, %s44
    %s48 = sphi 0, %s47
    %s64 = sphi 0, %s48
    %s70 = sphi 0, %s72
    %s73 = sphi 0, %s70
    %s74 = sphi 0, %s73
    %s90 = sphi 0, %s74
  $region4: #{transformer_forward.39} parent=0 // loop_header_branch
    %11 = sbr.rel (%p9) target = $region8
  $region5: #{transformer_forward.39} parent=0 // loop_body
    %s13 = ssub.s32 %s8, 1
    %s14 = ssub.s32 %s8, 2
    %s15 = sadd.s32 %s8, 1
    %s16 = ssub.s32 %s8, %s15
    %p17 = scmp.eq.s32.totalorder %s16, 0
    %s19 = sadd.s32 %s18, 1
    %s20 = scalar_select %p17, %s18, %s19
    %p23 = pneg %p17
    %p24 = scmp.eq.s32.totalorder %s8, 1
    %p25 = por %p23, %p24
    %p26 = scmp.ne.s32.totalorder %s18, %s21
    %p27 = scmp.eq.s32.totalorder %s8, 0
    %p28 = por %p26, %p27
    %p29 = scmp.ne.s32.totalorder %s18, %s21
    %p30 = scmp.eq.s32.totalorder %s13, 1
    %p31 = por %p29, %p30
    %p32 = scmp.ne.s32.totalorder %s21, %s22
    %p33 = scmp.eq.s32.totalorder %s13, 0
    %p34 = por %p32, %p33
    %p35 = scmp.ne.s32.totalorder %s21, %s22
    %p36 = scmp.eq.s32.totalorder %s14, 1
    %p37 = por %p35, %p36
    %p39 = scmp.ne.s32.totalorder %s22, %s38
    %p40 = scmp.eq.s32.totalorder %s14, 0
    %p41 = por %p39, %p40
    %s42 = ssub.s32 %s8, %s15
    %p43 = scmp.eq.s32.totalorder %s42, 0
    %s45 = sadd.s32 %s44, 1
    %s46 = scalar_select %p43, %s44, %s45
    %p49 = pneg %p43
    %p50 = scmp.eq.s32.totalorder %s8, 1
    %p51 = por %p49, %p50
    %p52 = scmp.ne.s32.totalorder %s44, %s47
    %p53 = scmp.eq.s32.totalorder %s8, 0
    %p54 = por %p52, %p53
    %p55 = scmp.ne.s32.totalorder %s44, %s47
    %p56 = scmp.eq.s32.totalorder %s13, 1
    %p57 = por %p55, %p56
    %p58 = scmp.ne.s32.totalorder %s47, %s48
    %p59 = scmp.eq.s32.totalorder %s13, 0
    %p60 = por %p58, %p59
    %p61 = scmp.ne.s32.totalorder %s47, %s48
    %p62 = scmp.eq.s32.totalorder %s14, 1
    %p63 = por %p61, %p62
    %p65 = scmp.ne.s32.totalorder %s48, %s64
    %p66 = scmp.eq.s32.totalorder %s14, 0
    %p67 = por %p65, %p66
    %s68 = ssub.s32 %s8, %s15
    %p69 = scmp.eq.s32.totalorder %s68, 0
    %s71 = sadd.s32 %s70, 1
    %s72 = scalar_select %p69, %s70, %s71
    %p75 = pneg %p69
    %p76 = scmp.eq.s32.totalorder %s8, 1
    %p77 = por %p75, %p76
    %p78 = scmp.ne.s32.totalorder %s70, %s73
    %p79 = scmp.eq.s32.totalorder %s8, 0
    %p80 = por %p78, %p79
    %p81 = scmp.ne.s32.totalorder %s70, %s73
    %p82 = scmp.eq.s32.totalorder %s13, 1
    %p83 = por %p81, %p82
    %p84 = scmp.ne.s32.totalorder %s73, %s74
    %p85 = scmp.eq.s32.totalorder %s13, 0
    %p86 = por %p84, %p85
    %p87 = scmp.ne.s32.totalorder %s73, %s74
    %p88 = scmp.eq.s32.totalorder %s14, 1
    %p89 = por %p87, %p88
    %p91 = scmp.ne.s32.totalorder %s74, %s90
    %p92 = scmp.eq.s32.totalorder %s14, 0
    %p93 = por %p91, %p92
    %p94 = scmp.le.s32.totalorder 1, %s8
    %p95 = scmp.lt.s32.totalorder %s8, 3
    %p96 = pnand %p94, %p95
    %p97 = pneg %p96
    // Predicated region
    $region9: #{transformer_forward.39} parent=5 // pred_check
      _
    $region10: #{transformer_forward.39} parent=5 // pred_check_branch
      %99 = sbr.rel (%p96) target = $region12
    $region11: #{transformer_forward.39} parent=5 // pred_region
      %s100 = ssub.s32 %s8, 1
    $region12: #{transformer_forward.39} parent=5 // pred_fallthru
      _
    %p101 = scmp.lt.s32.totalorder %s8, 2
    // Predicated region
    $region13: #{transformer_forward.39} parent=5 // pred_check
      %p102 = pneg %p101
    $region14: #{transformer_forward.39} parent=5 // pred_check_branch
      %104 = sbr.rel (%p102) target = $region16
    $region15: #{transformer_forward.39} parent=5 // pred_region
      // Predicated region
      $region17: #{transformer_forward.39} parent=15 // pred_check
        %p105 = pneg %p28
      $region18: #{transformer_forward.39} parent=15 // pred_check_branch
        %107 = sbr.rel (%p105) target = $region20
      $region19: #{transformer_forward.39} parent=15 // pred_region
        %p108 = scmp.lt.s32.totalorder %s8, 1
        %s109 = scalar_select %p108, %s8, 1
        %s110 = smul.addr %s109, 4
        %s111 = scalar_lea.vmem %s0, %s110
      $region20: #{transformer_forward.39} parent=15 // pred_fallthru
        _
      // Predicated region
      $region21: #{transformer_forward.39} parent=15 // pred_check
        %p112 = pneg %p54
      $region22: #{transformer_forward.39} parent=15 // pred_check_branch
        %114 = sbr.rel (%p112) target = $region24
      $region23: #{transformer_forward.39} parent=15 // pred_region
        %p115 = scmp.lt.s32.totalorder %s8, 1
        %s116 = scalar_select %p115, %s8, 1
        %s117 = scalar_lea.vmem %s1, %s116
      $region24: #{transformer_forward.39} parent=15 // pred_fallthru
        _
    $region16: #{transformer_forward.39} parent=5 // pred_fallthru
      _
    %p118 = scmp.le.s32.totalorder 1, %s8
    %p119 = scmp.lt.s32.totalorder %s8, 3
    %p120 = pnand %p118, %p119
    %p121 = pneg %p120
    // Predicated region
    $region25: #{transformer_forward.39} parent=5 // pred_check
      _
    $region26: #{transformer_forward.39} parent=5 // pred_check_branch
      %123 = sbr.rel (%p120) target = $region28
    $region27: #{transformer_forward.39} parent=5 // pred_region
      %s124 = ssub.s32 %s8, 1
      %p125 = scmp.lt.s32.totalorder %s13, 1
      %s126 = scalar_select %p125, %s13, 1
      %s127 = smul.addr %s126, 4
      %s128 = scalar_lea.vmem %s0, %s127
      %p129 = pneg %p34
      %p130 = pneg %p31
      %p131 = scmp.lt.s32.totalorder %s13, 1
      %s132 = scalar_select %p131, %s13, 1
      %s133 = scalar_lea.vmem %s1, %s132
      %p134 = pneg %p60
      %p135 = pneg %p57
      %p136 = pneg %p86
      %p137 = pneg %p83
      %p138 = scmp.lt.s32.totalorder %s13, 1
      %s139 = scalar_select %p138, %s13, 1
      %s140 = smul.addr %s139, 4
      %s141 = scalar_lea.vmem %s2, %s140
      %p142 = scmp.lt.s32.totalorder %s13, 1
      %s143 = scalar_select %p142, %s13, 1
      %s144 = smul.addr %s143, 4
      %s145 = scalar_lea.vmem %s0, %s144
      %p146 = scmp.lt.s32.totalorder %s13, 1
      %s147 = scalar_select %p146, %s13, 1
      %s148 = scalar_lea.vmem %s1, %s147
      %p149 = scmp.lt.s32.totalorder %s13, 1
      %s150 = scalar_select %p149, %s13, 1
      %s151 = smul.addr %s150, 4
      %s152 = scalar_lea.vmem %s2, %s151
      %v154 = vld [vmem:[%s145] sm:$0xf]
      %v155 = vld [vmem:[%s148] sm:$0x1]
      %v156 = vlaneseq
      %v157 = vshrl.u32 %v156, 7
      %v158 = vlaneseq
      %v159 = vand.u32 %v158, 127
      %vm160 = vcmp.gt.s32.totalorder %v159, %v157
      %v161 = vsel %vm160, -1e+09, 0.0
      %v163 = vperm.slane %v155, 0
      %v165 = vadd.f32 %v163, %v161
      %v167 = vunpack.c.l.b16 %v154
      %v168 = vpack.c.b16 %v167, %v167
      %169 = vrot.lane.b32.xlu0 %v168, 96
      %v170 = vpop.permute.xlu0 %169
      %vm171 = vcmask 64512
      %v173 = vsel %vm171, %v154, 0
      %v176 = vsel %vm171, %v170, 0
      %178 = vmatpush.bf16.xpose.msra.mxu0 0
      %179 = vmatpush.bf16.xpose.msra.mxu0 0
      %180 = vmatpush.bf16.xpose.msra.mxu0 0
      %181 = vmatpush.bf16.xpose.msra.mxu0 0
      %182 = vmatpush.bf16.xpose.msra.mxu0 0
      %183 = vmatpush.bf16.xpose.msra.mxu0 0
      %184 = vmatpush.bf16.xpose.msra.mxu0 0
      %185 = vmatpush.bf16.xpose.msra.mxu0 %v176
      %186 = vmatmul.bf16.gmra.mxu0 %v173
      %v187 = vpop.f32.mrf.mxu0
      %v188 = vadd.f32 0.0, %v187
      %v189 = vpop.f32.mrf.mxu0
      %190 = vdwg.mxu0
      %v191 = vmul.f32 %v188, 0.35355338
      %v192 = vadd.f32 %v191, %v165
      %v193 = vsel %vm171, %v192, -inf
      %194 = vmax.xlane.f32.xlu0 %v193
      %v195 = vpop.xlane.xlu0 %194
      %v196 = vsub.f32 %v192, %v195
      %v197 = vmul.f32 %v196, 1.442695
      %v198 = vpow.pop %v197
      %v199 = vsel %vm171, %v198, 0.0
      %200 = vadd.xlane.f32.xlu0 %v199
      %v201 = vpop.xlane.xlu0 %200
      %v202 = vrcp.pop %v201
      %v203 = vmul.f32 %v198, %v202
      %v204 = vpack.c.bf16 %v203, %v203
      %205 = vrot.lane.b32.xlu0 %v168, 64
      %v206 = vpop.permute.xlu0 %205
      %v208 = vsel %vm171, %v204, 0
      %vm210 = vcmask 1043456
      %v212 = vsel %vm210, %v206, 0
      %214 = vmatpush.bf16.msra.mxu0 0
      %215 = vmatpush.bf16.msra.mxu0 0
      %216 = vmatpush.bf16.msra.mxu0 0
      %217 = vmatpush.bf16.msra.mxu0 0
      %218 = vmatpush.bf16.msra.mxu0 0
      %219 = vmatpush.bf16.msra.mxu0 0
      %220 = vmatpush.bf16.msra.mxu0 0
      %221 = vmatpush.bf16.msra.mxu0 %v212
      %222 = vmatmul.bf16.gmra.mxu0 %v208
      %v223 = vpop.f32.mrf.mxu0
      %v224 = vadd.f32 0.0, %v223
      %v225 = vpop.f32.mrf.mxu0
      %226 = vdwg.mxu0
      %v227 = vpack.c.bf16 %v224, %v224
      %vm228 = vcmask 60416
      %229 = vst.msk [vmem:[%s152] sm:$0xf] %vm228, %v227
      %230 = vrot.lane.b32.xlu0 %v168, 120
      %v231 = vpop.permute.xlu0 %230
      %232 = vrot.lane.b32.xlu0 %v168, 88
      %v233 = vpop.permute.xlu0 %232
      %v235 = vsel %vm171, %v231, 0
      %v238 = vsel %vm171, %v233, 0
      %240 = vmatpush.bf16.xpose.msra.mxu0 0
      %241 = vmatpush.bf16.xpose.msra.mxu0 0
      %242 = vmatpush.bf16.xpose.msra.mxu0 0
      %243 = vmatpush.bf16.xpose.msra.mxu0 0
      %244 = vmatpush.bf16.xpose.msra.mxu0 0
      %245 = vmatpush.bf16.xpose.msra.mxu0 0
      %246 = vmatpush.bf16.xpose.msra.mxu0 0
      %247 = vmatpush.bf16.xpose.msra.mxu0 %v238
      %248 = vmatmul.bf16.gmra.mxu0 %v235
      %v249 = vpop.f32.mrf.mxu0
      %v250 = vadd.f32 0.0, %v249
      %v251 = vpop.f32.mrf.mxu0
      %252 = vdwg.mxu0
      %v253 = vmul.f32 %v250, 0.35355338
      %v254 = vadd.f32 %v253, %v165
      %v255 = vsel %vm171, %v254, -inf
      %256 = vmax.xlane.f32.xlu0 %v255
      %v257 = vpop.xlane.xlu0 %256
      %v258 = vsub.f32 %v254, %v257
      %v259 = vmul.f32 %v258, 1.442695
      %v260 = vpow.pop %v259
      %v261 = vsel %vm171, %v260, 0.0
      %262 = vadd.xlane.f32.xlu0 %v261
      %v263 = vpop.xlane.xlu0 %262
      %v264 = vrcp.pop %v263
      %v265 = vmul.f32 %v260, %v264
      %v266 = vpack.c.bf16 %v265, %v265
      %267 = vrot.lane.b32.xlu0 %v168, 56
      %v268 = vpop.permute.xlu0 %267
      %v270 = vsel %vm171, %v266, 0
      %v273 = vsel %vm210, %v268, 0
      %275 = vmatpush.bf16.msra.mxu0 0
      %276 = vmatpush.bf16.msra.mxu0 0
      %277 = vmatpush.bf16.msra.mxu0 0
      %278 = vmatpush.bf16.msra.mxu0 0
      %279 = vmatpush.bf16.msra.mxu0 0
      %280 = vmatpush.bf16.msra.mxu0 0
      %281 = vmatpush.bf16.msra.mxu0 0
      %282 = vmatpush.bf16.msra.mxu0 %v273
      %283 = vmatmul.bf16.gmra.mxu0 %v270
      %v284 = vpop.f32.mrf.mxu0
      %v285 = vadd.f32 0.0, %v284
      %v286 = vpop.f32.mrf.mxu0
      %287 = vdwg.mxu0
      %v288 = vpack.c.bf16 %v285, %v285
      %290 = vrot.lane.b32.xlu0 %v288, 8
      %v291 = vpop.permute.xlu0 %290
      %vm293 = vcmask 126016
      %294 = vst.msk [vmem:[%s152] sm:$0xf] %vm293, %v291
      %295 = vrot.lane.b32.xlu0 %v168, 112
      %v296 = vpop.permute.xlu0 %295
      %297 = vrot.lane.b32.xlu0 %v168, 80
      %v298 = vpop.permute.xlu0 %297
      %v300 = vsel %vm171, %v296, 0
      %v303 = vsel %vm171, %v298, 0
      %305 = vmatpush.bf16.xpose.msra.mxu0 0
      %306 = vmatpush.bf16.xpose.msra.mxu0 0
      %307 = vmatpush.bf16.xpose.msra.mxu0 0
      %308 = vmatpush.bf16.xpose.msra.mxu0 0
      %309 = vmatpush.bf16.xpose.msra.mxu0 0
      %310 = vmatpush.bf16.xpose.msra.mxu0 0
      %311 = vmatpush.bf16.xpose.msra.mxu0 0
      %312 = vmatpush.bf16.xpose.msra.mxu0 %v303
      %313 = vmatmul.bf16.gmra.mxu0 %v300
      %v314 = vpop.f32.mrf.mxu0
      %v315 = vadd.f32 0.0, %v314
      %v316 = vpop.f32.mrf.mxu0
      %317 = vdwg.mxu0
      %v318 = vmul.f32 %v315, 0.35355338
      %v319 = vadd.f32 %v318, %v165
      %v320 = vsel %vm171, %v319, -inf
      %321 = vmax.xlane.f32.xlu0 %v320
      %v322 = vpop.xlane.xlu0 %321
      %v323 = vsub.f32 %v319, %v322
      %v324 = vmul.f32 %v323, 1.442695
      %v325 = vpow.pop %v324
      %v326 = vsel %vm171, %v325, 0.0
      %327 = vadd.xlane.f32.xlu0 %v326
      %v328 = vpop.xlane.xlu0 %327
      %v329 = vrcp.pop %v328
      %v330 = vmul.f32 %v325, %v329
      %v331 = vpack.c.bf16 %v330, %v330
      %332 = vrot.lane.b32.xlu0 %v168, 48
      %v333 = vpop.permute.xlu0 %332
      %v335 = vsel %vm171, %v331, 0
      %v338 = vsel %vm210, %v333, 0
      %340 = vmatpush.bf16.msra.mxu0 0
      %341 = vmatpush.bf16.msra.mxu0 0
      %342 = vmatpush.bf16.msra.mxu0 0
      %343 = vmatpush.bf16.msra.mxu0 0
      %344 = vmatpush.bf16.msra.mxu0 0
      %345 = vmatpush.bf16.msra.mxu0 0
      %346 = vmatpush.bf16.msra.mxu0 0
      %347 = vmatpush.bf16.msra.mxu0 %v338
      %348 = vmatmul.bf16.gmra.mxu0 %v335
      %v349 = vpop.f32.mrf.mxu0
      %v350 = vadd.f32 0.0, %v349
      %v351 = vpop.f32.mrf.mxu0
      %352 = vdwg.mxu0
      %v353 = vpack.c.bf16 %v350, %v350
      %355 = vrot.lane.b32.xlu0 %v353, 16
      %v356 = vpop.permute.xlu0 %355
      %vm358 = vcmask 191616
      %359 = vst.msk [vmem:[%s152] sm:$0xf] %vm358, %v356
      %360 = vrot.lane.b32.xlu0 %v168, 104
      %v361 = vpop.permute.xlu0 %360
      %362 = vrot.lane.b32.xlu0 %v168, 72
      %v363 = vpop.permute.xlu0 %362
      %v365 = vsel %vm171, %v361, 0
      %v368 = vsel %vm171, %v363, 0
      %370 = vmatpush.bf16.xpose.msra.mxu0 0
      %371 = vmatpush.bf16.xpose.msra.mxu0 0
      %372 = vmatpush.bf16.xpose.msra.mxu0 0
      %373 = vmatpush.bf16.xpose.msra.mxu0 0
      %374 = vmatpush.bf16.xpose.msra.mxu0 0
      %375 = vmatpush.bf16.xpose.msra.mxu0 0
      %376 = vmatpush.bf16.xpose.msra.mxu0 0
      %377 = vmatpush.bf16.xpose.msra.mxu0 %v368
      %378 = vmatmul.bf16.gmra.mxu0 %v365
      %v379 = vpop.f32.mrf.mxu0
      %v380 = vadd.f32 0.0, %v379
      %v381 = vpop.f32.mrf.mxu0
      %382 = vdwg.mxu0
      %v383 = vmul.f32 %v380, 0.35355338
      %v384 = vadd.f32 %v383, %v165
      %v385 = vsel %vm171, %v384, -inf
      %386 = vmax.xlane.f32.xlu0 %v385
      %v387 = vpop.xlane.xlu0 %386
      %v388 = vsub.f32 %v384, %v387
      %v389 = vmul.f32 %v388, 1.442695
      %v390 = vpow.pop %v389
      %v391 = vsel %vm171, %v390, 0.0
      %392 = vadd.xlane.f32.xlu0 %v391
      %v393 = vpop.xlane.xlu0 %392
      %v394 = vrcp.pop %v393
      %v395 = vmul.f32 %v390, %v394
      %v396 = vpack.c.bf16 %v395, %v395
      %397 = vrot.lane.b32.xlu0 %v168, 40
      %v398 = vpop.permute.xlu0 %397
      %v400 = vsel %vm171, %v396, 0
      %v403 = vsel %vm210, %v398, 0
      %405 = vmatpush.bf16.msra.mxu0 0
      %406 = vmatpush.bf16.msra.mxu0 0
      %407 = vmatpush.bf16.msra.mxu0 0
      %408 = vmatpush.bf16.msra.mxu0 0
      %409 = vmatpush.bf16.msra.mxu0 0
      %410 = vmatpush.bf16.msra.mxu0 0
      %411 = vmatpush.bf16.msra.mxu0 0
      %412 = vmatpush.bf16.msra.mxu0 %v403
      %413 = vmatmul.bf16.gmra.mxu0 %v400
      %v414 = vpop.f32.mrf.mxu0
      %v415 = vadd.f32 0.0, %v414
      %v416 = vpop.f32.mrf.mxu0
      %417 = vdwg.mxu0
      %v418 = vpack.c.bf16 %v415, %v415
      %420 = vrot.lane.b32.xlu0 %v418, 24
      %v421 = vpop.permute.xlu0 %420
      %vm423 = vcmask 257216
      %424 = vst.msk [vmem:[%s152] sm:$0xf] %vm423, %v421
      %p425 = scmp.lt.s32.totalorder %s13, 1
      %s426 = scalar_select %p425, %s13, 1
      %s427 = smul.addr %s426, 4
      %s428 = scalar_lea.vmem %s2, %s427
      // Predicated region
      $region29: #{transformer_forward.39} parent=27 // pred_check
        %p429 = pneg %p83
      $region30: #{transformer_forward.39} parent=27 // pred_check_branch
        %431 = sbr.rel (%p429) target = $region32
      $region31: #{transformer_forward.39} parent=27 // pred_region
        _
      $region32: #{transformer_forward.39} parent=27 // pred_fallthru
        _
    $region28: #{transformer_forward.39} parent=5 // pred_fallthru
      _
    %p432 = scmp.le.s32.totalorder 2, %s8
    // Predicated region
    $region33: #{transformer_forward.39} parent=5 // pred_check
      %p433 = pneg %p432
    $region34: #{transformer_forward.39} parent=5 // pred_check_branch
      %435 = sbr.rel (%p433) target = $region36
    $region35: #{transformer_forward.39} parent=5 // pred_region
      %s436 = ssub.s32 %s8, 2
      // Predicated region
      $region37: #{transformer_forward.39} parent=35 // pred_check
        %p437 = pneg %p89
      $region38: #{transformer_forward.39} parent=35 // pred_check_branch
        %439 = sbr.rel (%p437) target = $region40
      $region39: #{transformer_forward.39} parent=35 // pred_region
        %p440 = scmp.lt.s32.totalorder %s14, 1
        %s441 = scalar_select %p440, %s14, 1
        %s442 = smul.addr %s441, 4
        %s443 = scalar_lea.vmem %s2, %s442
      $region40: #{transformer_forward.39} parent=35 // pred_fallthru
        _
    $region36: #{transformer_forward.39} parent=5 // pred_fallthru
      _
  $region6: #{transformer_forward.39} parent=0 // loop_footer
    %s12 = sadd.s32 1, %s8
  $region7: #{transformer_forward.39} parent=0 // loop_footer_branch
    %7 = sbr.rel target = $region3
  $region8: #{transformer_forward.39} parent=0 // loop_exit
    _

// kernel: transformer_forward.43
$region0: #{transformer_forward.43}
  #allocation0 [shape = 'u32[]', space=smem, size = 0x4, offset = 0x4, fixed_abs, tag = 'smem constant byte address 0x4 - core index']
  #allocation1 [shape = 'u32[72,128]{1,0:T(1,128)}', space=vmem, size = 0x9000, scoped, tag = 'internal scratch']
  %s0 = inlined_call_operand.vmem [shape: bf16[2,8,32], index: 0, kind: input, shape index: {}]
  %s1 = inlined_call_operand.vmem [shape: bf16[2,8,64], index: 1, kind: input, shape index: {}]
  %s2 = inlined_call_operand.vmem [shape: f32[2,1,8], index: 2, kind: input, shape index: {}]
  %s3 = inlined_call_operand.vmem [shape: bf16[2,8,32], index: 3, kind: output, shape index: {}]
  %s4 = sld [smem:[#allocation0]]
  $region45: #{transformer_forward.43} parent=0
    _
  %s6 = ssub.s32 1, %s4
  %s7 = scalar_select 0, %s6, %s4
  loop: start=0, step=1, limit=4
  $region2: #{transformer_forward.43} parent=0 // loop_pre_header
    _
  $region3: #{transformer_forward.43} parent=0 // loop_header
    %s9 = sphi 0, %s13
    %p10 = scmp.ge.s32.totalorder %s9, 4
    %s19 = sphi 0, %s21
    %s22 = sphi 0, %s19
    %s23 = sphi 0, %s22
    %s39 = sphi 0, %s23
    %s45 = sphi 0, %s47
    %s48 = sphi 0, %s45
    %s49 = sphi 0, %s48
    %s65 = sphi 0, %s49
    %s71 = sphi 0, %s73
    %s74 = sphi 0, %s71
    %s75 = sphi 0, %s74
    %s91 = sphi 0, %s75
    %s97 = sphi 0, %s99
    %s100 = sphi 0, %s97
    %s101 = sphi 0, %s100
    %s117 = sphi 0, %s101
  $region4: #{transformer_forward.43} parent=0 // loop_header_branch
    %12 = sbr.rel (%p10) target = $region8
  $region5: #{transformer_forward.43} parent=0 // loop_body
    %s14 = ssub.s32 %s9, 1
    %s15 = ssub.s32 %s9, 2
    %s16 = sadd.s32 %s9, 1
    %s17 = ssub.s32 %s9, %s16
    %p18 = scmp.eq.s32.totalorder %s17, 0
    %s20 = sadd.s32 %s19, 1
    %s21 = scalar_select %p18, %s19, %s20
    %p24 = pneg %p18
    %p25 = scmp.eq.s32.totalorder %s9, 1
    %p26 = por %p24, %p25
    %p27 = scmp.ne.s32.totalorder %s19, %s22
    %p28 = scmp.eq.s32.totalorder %s9, 0
    %p29 = por %p27, %p28
    %p30 = scmp.ne.s32.totalorder %s19, %s22
    %p31 = scmp.eq.s32.totalorder %s14, 1
    %p32 = por %p30, %p31
    %p33 = scmp.ne.s32.totalorder %s22, %s23
    %p34 = scmp.eq.s32.totalorder %s14, 0
    %p35 = por %p33, %p34
    %p36 = scmp.ne.s32.totalorder %s22, %s23
    %p37 = scmp.eq.s32.totalorder %s15, 1
    %p38 = por %p36, %p37
    %p40 = scmp.ne.s32.totalorder %s23, %s39
    %p41 = scmp.eq.s32.totalorder %s15, 0
    %p42 = por %p40, %p41
    %s43 = ssub.s32 %s9, %s16
    %p44 = scmp.eq.s32.totalorder %s43, 0
    %s46 = sadd.s32 %s45, 1
    %s47 = scalar_select %p44, %s45, %s46
    %p50 = pneg %p44
    %p51 = scmp.eq.s32.totalorder %s9, 1
    %p52 = por %p50, %p51
    %p53 = scmp.ne.s32.totalorder %s45, %s48
    %p54 = scmp.eq.s32.totalorder %s9, 0
    %p55 = por %p53, %p54
    %p56 = scmp.ne.s32.totalorder %s45, %s48
    %p57 = scmp.eq.s32.totalorder %s14, 1
    %p58 = por %p56, %p57
    %p59 = scmp.ne.s32.totalorder %s48, %s49
    %p60 = scmp.eq.s32.totalorder %s14, 0
    %p61 = por %p59, %p60
    %p62 = scmp.ne.s32.totalorder %s48, %s49
    %p63 = scmp.eq.s32.totalorder %s15, 1
    %p64 = por %p62, %p63
    %p66 = scmp.ne.s32.totalorder %s49, %s65
    %p67 = scmp.eq.s32.totalorder %s15, 0
    %p68 = por %p66, %p67
    %s69 = ssub.s32 %s9, %s16
    %p70 = scmp.eq.s32.totalorder %s69, 0
    %s72 = sadd.s32 %s71, 1
    %s73 = scalar_select %p70, %s71, %s72
    %p76 = pneg %p70
    %p77 = scmp.eq.s32.totalorder %s9, 1
    %p78 = por %p76, %p77
    %p79 = scmp.ne.s32.totalorder %s71, %s74
    %p80 = scmp.eq.s32.totalorder %s9, 0
    %p81 = por %p79, %p80
    %p82 = scmp.ne.s32.totalorder %s71, %s74
    %p83 = scmp.eq.s32.totalorder %s14, 1
    %p84 = por %p82, %p83
    %p85 = scmp.ne.s32.totalorder %s74, %s75
    %p86 = scmp.eq.s32.totalorder %s14, 0
    %p87 = por %p85, %p86
    %p88 = scmp.ne.s32.totalorder %s74, %s75
    %p89 = scmp.eq.s32.totalorder %s15, 1
    %p90 = por %p88, %p89
    %p92 = scmp.ne.s32.totalorder %s75, %s91
    %p93 = scmp.eq.s32.totalorder %s15, 0
    %p94 = por %p92, %p93
    %s95 = ssub.s32 %s9, %s16
    %p96 = scmp.eq.s32.totalorder %s95, 0
    %s98 = sadd.s32 %s97, 1
    %s99 = scalar_select %p96, %s97, %s98
    %p102 = pneg %p96
    %p103 = scmp.eq.s32.totalorder %s9, 1
    %p104 = por %p102, %p103
    %p105 = scmp.ne.s32.totalorder %s97, %s100
    %p106 = scmp.eq.s32.totalorder %s9, 0
    %p107 = por %p105, %p106
    %p108 = scmp.ne.s32.totalorder %s97, %s100
    %p109 = scmp.eq.s32.totalorder %s14, 1
    %p110 = por %p108, %p109
    %p111 = scmp.ne.s32.totalorder %s100, %s101
    %p112 = scmp.eq.s32.totalorder %s14, 0
    %p113 = por %p111, %p112
    %p114 = scmp.ne.s32.totalorder %s100, %s101
    %p115 = scmp.eq.s32.totalorder %s15, 1
    %p116 = por %p114, %p115
    %p118 = scmp.ne.s32.totalorder %s101, %s117
    %p119 = scmp.eq.s32.totalorder %s15, 0
    %p120 = por %p118, %p119
    %p121 = scmp.le.s32.totalorder 1, %s9
    %p122 = scmp.lt.s32.totalorder %s9, 3
    %p123 = pnand %p121, %p122
    %p124 = pneg %p123
    // Predicated region
    $region9: #{transformer_forward.43} parent=5 // pred_check
      _
    $region10: #{transformer_forward.43} parent=5 // pred_check_branch
      %126 = sbr.rel (%p123) target = $region12
    $region11: #{transformer_forward.43} parent=5 // pred_region
      %s127 = ssub.s32 %s9, 1
    $region12: #{transformer_forward.43} parent=5 // pred_fallthru
      _
    %p128 = scmp.lt.s32.totalorder %s9, 2
    // Predicated region
    $region13: #{transformer_forward.43} parent=5 // pred_check
      %p129 = pneg %p128
    $region14: #{transformer_forward.43} parent=5 // pred_check_branch
      %131 = sbr.rel (%p129) target = $region16
    $region15: #{transformer_forward.43} parent=5 // pred_region
      // Predicated region
      $region17: #{transformer_forward.43} parent=15 // pred_check
        %p132 = pneg %p29
      $region18: #{transformer_forward.43} parent=15 // pred_check_branch
        %134 = sbr.rel (%p132) target = $region20
      $region19: #{transformer_forward.43} parent=15 // pred_region
        %p135 = scmp.lt.s32.totalorder %s9, 1
        %s136 = scalar_select %p135, %s9, 1
        %s137 = smul.addr %s136, 4
        %s138 = scalar_lea.vmem %s0, %s137
      $region20: #{transformer_forward.43} parent=15 // pred_fallthru
        _
      // Predicated region
      $region21: #{transformer_forward.43} parent=15 // pred_check
        %p139 = pneg %p55
      $region22: #{transformer_forward.43} parent=15 // pred_check_branch
        %141 = sbr.rel (%p139) target = $region24
      $region23: #{transformer_forward.43} parent=15 // pred_region
        %p142 = scmp.lt.s32.totalorder %s9, 1
        %s143 = scalar_select %p142, %s9, 1
        %s144 = smul.addr %s143, 4
        %s145 = scalar_lea.vmem %s1, %s144
      $region24: #{transformer_forward.43} parent=15 // pred_fallthru
        _
      // Predicated region
      $region25: #{transformer_forward.43} parent=15 // pred_check
        %p146 = pneg %p81
      $region26: #{transformer_forward.43} parent=15 // pred_check_branch
        %148 = sbr.rel (%p146) target = $region28
      $region27: #{transformer_forward.43} parent=15 // pred_region
        %p149 = scmp.lt.s32.totalorder %s9, 1
        %s150 = scalar_select %p149, %s9, 1
        %s151 = scalar_lea.vmem %s2, %s150
      $region28: #{transformer_forward.43} parent=15 // pred_fallthru
        _
    $region16: #{transformer_forward.43} parent=5 // pred_fallthru
      _
    %p152 = scmp.le.s32.totalorder 1, %s9
    %p153 = scmp.lt.s32.totalorder %s9, 3
    %p154 = pnand %p152, %p153
    %p155 = pneg %p154
    // Predicated region
    $region29: #{transformer_forward.43} parent=5 // pred_check
      _
    $region30: #{transformer_forward.43} parent=5 // pred_check_branch
      %157 = sbr.rel (%p154) target = $region32
    $region31: #{transformer_forward.43} parent=5 // pred_region
      %s158 = ssub.s32 %s9, 1
      %p159 = scmp.lt.s32.totalorder %s14, 1
      %s160 = scalar_select %p159, %s14, 1
      %s161 = smul.addr %s160, 4
      %s162 = scalar_lea.vmem %s0, %s161
      %p163 = pneg %p35
      %p164 = pneg %p32
      %p165 = scmp.lt.s32.totalorder %s14, 1
      %s166 = scalar_select %p165, %s14, 1
      %s167 = smul.addr %s166, 4
      %s168 = scalar_lea.vmem %s1, %s167
      %p169 = pneg %p61
      %p170 = pneg %p58
      %p171 = scmp.lt.s32.totalorder %s14, 1
      %s172 = scalar_select %p171, %s14, 1
      %s173 = scalar_lea.vmem %s2, %s172
      %p174 = pneg %p87
      %p175 = pneg %p84
      %p176 = pneg %p113
      %p177 = pneg %p110
      %p178 = scmp.lt.s32.totalorder %s14, 1
      %s179 = scalar_select %p178, %s14, 1
      %s180 = smul.addr %s179, 4
      %s181 = scalar_lea.vmem %s3, %s180
      %p182 = scmp.lt.s32.totalorder %s14, 1
      %s183 = scalar_select %p182, %s14, 1
      %s184 = smul.addr %s183, 4
      %s185 = scalar_lea.vmem %s0, %s184
      %p186 = scmp.lt.s32.totalorder %s14, 1
      %s187 = scalar_select %p186, %s14, 1
      %s188 = smul.addr %s187, 4
      %s189 = scalar_lea.vmem %s1, %s188
      %p190 = scmp.lt.s32.totalorder %s14, 1
      %s191 = scalar_select %p190, %s14, 1
      %s192 = scalar_lea.vmem %s2, %s191
      %p193 = scmp.lt.s32.totalorder %s14, 1
      %s194 = scalar_select %p193, %s14, 1
      %s195 = smul.addr %s194, 4
      %s196 = scalar_lea.vmem %s3, %s195
      %v198 = vld [vmem:[%s185] sm:$0xf]
      %v199 = vld [vmem:[%s189] sm:$0xf]
      %v200 = vld [vmem:[%s192] sm:$0x1]
      %vm201 = vcmask 64512
      %v203 = vsel %vm201, %v198, 0
      %v206 = vsel %vm201, %v199, 0
      %208 = vmatpush.bf16.xpose.msra.mxu0 0
      %209 = vmatpush.bf16.xpose.msra.mxu0 0
      %210 = vmatpush.bf16.xpose.msra.mxu0 0
      %211 = vmatpush.bf16.xpose.msra.mxu0 0
      %212 = vmatpush.bf16.xpose.msra.mxu0 0
      %213 = vmatpush.bf16.xpose.msra.mxu0 0
      %214 = vmatpush.bf16.xpose.msra.mxu0 0
      %215 = vmatpush.bf16.xpose.msra.mxu0 %v206
      %216 = vmatmul.bf16.gmra.mxu0 %v203
      %v217 = vpop.f32.mrf.mxu0
      %v218 = vadd.f32 0.0, %v217
      %v219 = vpop.f32.mrf.mxu0
      %220 = vdwg.mxu0
      %v221 = vmul.f32 %v218, 0.35355338
      %v223 = vperm.slane %v200, 0
      %v225 = vadd.f32 %v221, %v223
      %v226 = vsel %vm201, %v225, -inf
      %227 = vmax.xlane.f32.xlu0 %v226
      %v228 = vpop.xlane.xlu0 %227
      %v229 = vsub.f32 %v225, %v228
      %v230 = vmul.f32 %v229, 1.442695
      %v231 = vpow.pop %v230
      %v232 = vsel %vm201, %v231, 0.0
      %233 = vadd.xlane.f32.xlu0 %v232
      %v234 = vpop.xlane.xlu0 %233
      %v235 = vrcp.pop %v234
      %v236 = vmul.f32 %v231, %v235
      %v237 = vpack.c.bf16 %v236, %v236
      %v239 = vunpack.c.l.b16 %v199
      %v240 = vpack.c.b16 %v239, %v239
      %241 = vrot.lane.b32.xlu0 %v240, 96
      %v242 = vpop.permute.xlu0 %241
      %v244 = vsel %vm201, %v237, 0
      %vm246 = vcmask 1043456
      %v248 = vsel %vm246, %v242, 0
      %250 = vmatpush.bf16.msra.mxu0 0
      %251 = vmatpush.bf16.msra.mxu0 0
      %252 = vmatpush.bf16.msra.mxu0 0
      %253 = vmatpush.bf16.msra.mxu0 0
      %254 = vmatpush.bf16.msra.mxu0 0
      %255 = vmatpush.bf16.msra.mxu0 0
      %256 = vmatpush.bf16.msra.mxu0 0
      %257 = vmatpush.bf16.msra.mxu0 %v248
      %258 = vmatmul.bf16.gmra.mxu0 %v244
      %v259 = vpop.f32.mrf.mxu0
      %v260 = vadd.f32 0.0, %v259
      %v261 = vpop.f32.mrf.mxu0
      %262 = vdwg.mxu0
      %v263 = vpack.c.bf16 %v260, %v260
      %vm264 = vcmask 60416
      %265 = vst.msk [vmem:[%s196] sm:$0xf] %vm264, %v263
      %v267 = vunpack.c.l.b16 %v198
      %v268 = vpack.c.b16 %v267, %v267
      %269 = vrot.lane.b32.xlu0 %v268, 120
      %v270 = vpop.permute.xlu0 %269
      %271 = vrot.lane.b32.xlu0 %v240, 120
      %v272 = vpop.permute.xlu0 %271
      %v274 = vsel %vm201, %v270, 0
      %v277 = vsel %vm201, %v272, 0
      %279 = vmatpush.bf16.xpose.msra.mxu0 0
      %280 = vmatpush.bf16.xpose.msra.mxu0 0
      %281 = vmatpush.bf16.xpose.msra.mxu0 0
      %282 = vmatpush.bf16.xpose.msra.mxu0 0
      %283 = vmatpush.bf16.xpose.msra.mxu0 0
      %284 = vmatpush.bf16.xpose.msra.mxu0 0
      %285 = vmatpush.bf16.xpose.msra.mxu0 0
      %286 = vmatpush.bf16.xpose.msra.mxu0 %v277
      %287 = vmatmul.bf16.gmra.mxu0 %v274
      %v288 = vpop.f32.mrf.mxu0
      %v289 = vadd.f32 0.0, %v288
      %v290 = vpop.f32.mrf.mxu0
      %291 = vdwg.mxu0
      %v292 = vmul.f32 %v289, 0.35355338
      %v293 = vadd.f32 %v292, %v223
      %v294 = vsel %vm201, %v293, -inf
      %295 = vmax.xlane.f32.xlu0 %v294
      %v296 = vpop.xlane.xlu0 %295
      %v297 = vsub.f32 %v293, %v296
      %v298 = vmul.f32 %v297, 1.442695
      %v299 = vpow.pop %v298
      %v300 = vsel %vm201, %v299, 0.0
      %301 = vadd.xlane.f32.xlu0 %v300
      %v302 = vpop.xlane.xlu0 %301
      %v303 = vrcp.pop %v302
      %v304 = vmul.f32 %v299, %v303
      %v305 = vpack.c.bf16 %v304, %v304
      %306 = vrot.lane.b32.xlu0 %v240, 88
      %v307 = vpop.permute.xlu0 %306
      %v309 = vsel %vm201, %v305, 0
      %v312 = vsel %vm246, %v307, 0
      %314 = vmatpush.bf16.msra.mxu0 0
      %315 = vmatpush.bf16.msra.mxu0 0
      %316 = vmatpush.bf16.msra.mxu0 0
      %317 = vmatpush.bf16.msra.mxu0 0
      %318 = vmatpush.bf16.msra.mxu0 0
      %319 = vmatpush.bf16.msra.mxu0 0
      %320 = vmatpush.bf16.msra.mxu0 0
      %321 = vmatpush.bf16.msra.mxu0 %v312
      %322 = vmatmul.bf16.gmra.mxu0 %v309
      %v323 = vpop.f32.mrf.mxu0
      %v324 = vadd.f32 0.0, %v323
      %v325 = vpop.f32.mrf.mxu0
      %326 = vdwg.mxu0
      %v327 = vpack.c.bf16 %v324, %v324
      %329 = vrot.lane.b32.xlu0 %v327, 8
      %v330 = vpop.permute.xlu0 %329
      %vm332 = vcmask 126016
      %333 = vst.msk [vmem:[%s196] sm:$0xf] %vm332, %v330
      %334 = vrot.lane.b32.xlu0 %v268, 112
      %v335 = vpop.permute.xlu0 %334
      %336 = vrot.lane.b32.xlu0 %v240, 112
      %v337 = vpop.permute.xlu0 %336
      %v339 = vsel %vm201, %v335, 0
      %v342 = vsel %vm201, %v337, 0
      %344 = vmatpush.bf16.xpose.msra.mxu0 0
      %345 = vmatpush.bf16.xpose.msra.mxu0 0
      %346 = vmatpush.bf16.xpose.msra.mxu0 0
      %347 = vmatpush.bf16.xpose.msra.mxu0 0
      %348 = vmatpush.bf16.xpose.msra.mxu0 0
      %349 = vmatpush.bf16.xpose.msra.mxu0 0
      %350 = vmatpush.bf16.xpose.msra.mxu0 0
      %351 = vmatpush.bf16.xpose.msra.mxu0 %v342
      %352 = vmatmul.bf16.gmra.mxu0 %v339
      %v353 = vpop.f32.mrf.mxu0
      %v354 = vadd.f32 0.0, %v353
      %v355 = vpop.f32.mrf.mxu0
      %356 = vdwg.mxu0
      %v357 = vmul.f32 %v354, 0.35355338
      %v358 = vadd.f32 %v357, %v223
      %v359 = vsel %vm201, %v358, -inf
      %360 = vmax.xlane.f32.xlu0 %v359
      %v361 = vpop.xlane.xlu0 %360
      %v362 = vsub.f32 %v358, %v361
      %v363 = vmul.f32 %v362, 1.442695
      %v364 = vpow.pop %v363
      %v365 = vsel %vm201, %v364, 0.0
      %366 = vadd.xlane.f32.xlu0 %v365
      %v367 = vpop.xlane.xlu0 %366
      %v368 = vrcp.pop %v367
      %v369 = vmul.f32 %v364, %v368
      %v370 = vpack.c.bf16 %v369, %v369
      %371 = vrot.lane.b32.xlu0 %v240, 80
      %v372 = vpop.permute.xlu0 %371
      %v374 = vsel %vm201, %v370, 0
      %v377 = vsel %vm246, %v372, 0
      %379 = vmatpush.bf16.msra.mxu0 0
      %380 = vmatpush.bf16.msra.mxu0 0
      %381 = vmatpush.bf16.msra.mxu0 0
      %382 = vmatpush.bf16.msra.mxu0 0
      %383 = vmatpush.bf16.msra.mxu0 0
      %384 = vmatpush.bf16.msra.mxu0 0
      %385 = vmatpush.bf16.msra.mxu0 0
      %386 = vmatpush.bf16.msra.mxu0 %v377
      %387 = vmatmul.bf16.gmra.mxu0 %v374
      %v388 = vpop.f32.mrf.mxu0
      %v389 = vadd.f32 0.0, %v388
      %v390 = vpop.f32.mrf.mxu0
      %391 = vdwg.mxu0
      %v392 = vpack.c.bf16 %v389, %v389
      %394 = vrot.lane.b32.xlu0 %v392, 16
      %v395 = vpop.permute.xlu0 %394
      %vm397 = vcmask 191616
      %398 = vst.msk [vmem:[%s196] sm:$0xf] %vm397, %v395
      %399 = vrot.lane.b32.xlu0 %v268, 104
      %v400 = vpop.permute.xlu0 %399
      %401 = vrot.lane.b32.xlu0 %v240, 104
      %v402 = vpop.permute.xlu0 %401
      %v404 = vsel %vm201, %v400, 0
      %v407 = vsel %vm201, %v402, 0
      %409 = vmatpush.bf16.xpose.msra.mxu0 0
      %410 = vmatpush.bf16.xpose.msra.mxu0 0
      %411 = vmatpush.bf16.xpose.msra.mxu0 0
      %412 = vmatpush.bf16.xpose.msra.mxu0 0
      %413 = vmatpush.bf16.xpose.msra.mxu0 0
      %414 = vmatpush.bf16.xpose.msra.mxu0 0
      %415 = vmatpush.bf16.xpose.msra.mxu0 0
      %416 = vmatpush.bf16.xpose.msra.mxu0 %v407
      %417 = vmatmul.bf16.gmra.mxu0 %v404
      %v418 = vpop.f32.mrf.mxu0
      %v419 = vadd.f32 0.0, %v418
      %v420 = vpop.f32.mrf.mxu0
      %421 = vdwg.mxu0
      %v422 = vmul.f32 %v419, 0.35355338
      %v423 = vadd.f32 %v422, %v223
      %v424 = vsel %vm201, %v423, -inf
      %425 = vmax.xlane.f32.xlu0 %v424
      %v426 = vpop.xlane.xlu0 %425
      %v427 = vsub.f32 %v423, %v426
      %v428 = vmul.f32 %v427, 1.442695
      %v429 = vpow.pop %v428
      %v430 = vsel %vm201, %v429, 0.0
      %431 = vadd.xlane.f32.xlu0 %v430
      %v432 = vpop.xlane.xlu0 %431
      %v433 = vrcp.pop %v432
      %v434 = vmul.f32 %v429, %v433
      %v435 = vpack.c.bf16 %v434, %v434
      %436 = vrot.lane.b32.xlu0 %v240, 72
      %v437 = vpop.permute.xlu0 %436
      %v439 = vsel %vm201, %v435, 0
      %v442 = vsel %vm246, %v437, 0
      %444 = vmatpush.bf16.msra.mxu0 0
      %445 = vmatpush.bf16.msra.mxu0 0
      %446 = vmatpush.bf16.msra.mxu0 0
      %447 = vmatpush.bf16.msra.mxu0 0
      %448 = vmatpush.bf16.msra.mxu0 0
      %449 = vmatpush.bf16.msra.mxu0 0
      %450 = vmatpush.bf16.msra.mxu0 0
      %451 = vmatpush.bf16.msra.mxu0 %v442
      %452 = vmatmul.bf16.gmra.mxu0 %v439
      %v453 = vpop.f32.mrf.mxu0
      %v454 = vadd.f32 0.0, %v453
      %v455 = vpop.f32.mrf.mxu0
      %456 = vdwg.mxu0
      %v457 = vpack.c.bf16 %v454, %v454
      %459 = vrot.lane.b32.xlu0 %v457, 24
      %v460 = vpop.permute.xlu0 %459
      %vm462 = vcmask 257216
      %463 = vst.msk [vmem:[%s196] sm:$0xf] %vm462, %v460
      %p464 = scmp.lt.s32.totalorder %s14, 1
      %s465 = scalar_select %p464, %s14, 1
      %s466 = smul.addr %s465, 4
      %s467 = scalar_lea.vmem %s3, %s466
      // Predicated region
      $region33: #{transformer_forward.43} parent=31 // pred_check
        %p468 = pneg %p110
      $region34: #{transformer_forward.43} parent=31 // pred_check_branch
        %470 = sbr.rel (%p468) target = $region36
      $region35: #{transformer_forward.43} parent=31 // pred_region
        _
      $region36: #{transformer_forward.43} parent=31 // pred_fallthru
        _
    $region32: #{transformer_forward.43} parent=5 // pred_fallthru
      _
    %p471 = scmp.le.s32.totalorder 2, %s9
    // Predicated region
    $region37: #{transformer_forward.43} parent=5 // pred_check
      %p472 = pneg %p471
    $region38: #{transformer_forward.43} parent=5 // pred_check_branch
      %474 = sbr.rel (%p472) target = $region40
    $region39: #{transformer_forward.43} parent=5 // pred_region
      %s475 = ssub.s32 %s9, 2
      // Predicated region
      $region41: #{transformer_forward.43} parent=39 // pred_check
        %p476 = pneg %p116
      $region42: #{transformer_forward.43} parent=39 // pred_check_branch
        %478 = sbr.rel (%p476) target = $region44
      $region43: #{transformer_forward.43} parent=39 // pred_region
        %p479 = scmp.lt.s32.totalorder %s15, 1
        %s480 = scalar_select %p479, %s15, 1
        %s481 = smul.addr %s480, 4
        %s482 = scalar_lea.vmem %s3, %s481
      $region44: #{transformer_forward.43} parent=39 // pred_fallthru
        _
    $region40: #{transformer_forward.43} parent=5 // pred_fallthru
      _
  $region6: #{transformer_forward.43} parent=0 // loop_footer
    %s13 = sadd.s32 1, %s9
  $region7: #{transformer_forward.43} parent=0 // loop_footer_branch
    %8 = sbr.rel target = $region3
  $region8: #{transformer_forward.43} parent=0 // loop_exit
    _

// kernel: transformer_forward.50
$region0: #{transformer_forward.50}
  #allocation0 [shape = 'u32[]', space=smem, size = 0x4, offset = 0x4, fixed_abs, tag = 'smem constant byte address 0x4 - core index']
  #allocation1 [shape = 'u32[72,128]{1,0:T(1,128)}', space=vmem, size = 0x9000, scoped, tag = 'internal scratch']
  #allocation2 [shape = 'f32[16,32]{1,0:T(8,128)}', space=vmem, size = 0x2000, scoped, tag = 'scratch operand']
  %s0 = inlined_call_operand.vmem [shape: bf16[16,32], index: 0, kind: input, shape index: {}]
  %s1 = inlined_call_operand.vmem [shape: bf16[32,32], index: 1, kind: input, shape index: {}]
  %s2 = inlined_call_operand.vmem [shape: f32[1,32], index: 2, kind: input, shape index: {}]
  %s3 = inlined_call_operand.vmem [shape: bf16[16,32], index: 3, kind: output, shape index: {}]
  %s4 = sld [smem:[#allocation0]]
  $region30: #{transformer_forward.50} parent=0
    _
  %s6 = ssub.s32 1, %s4
  %s7 = scalar_select 0, %s6, %s4
  // Predicated region
  $region2: #{transformer_forward.50} parent=0 // pred_check
    _
  $region3: #{transformer_forward.50} parent=0 // pred_check_branch
    %9 = sbr.rel (0) target = $region5
  $region4: #{transformer_forward.50} parent=0 // pred_region
    _
  $region5: #{transformer_forward.50} parent=0 // pred_fallthru
    _
  // Predicated region
  $region6: #{transformer_forward.50} parent=0 // pred_check
    _
  $region7: #{transformer_forward.50} parent=0 // pred_check_branch
    %11 = sbr.rel (0) target = $region9
  $region8: #{transformer_forward.50} parent=0 // pred_region
    _
  $region9: #{transformer_forward.50} parent=0 // pred_fallthru
    _
  // Predicated region
  $region10: #{transformer_forward.50} parent=0 // pred_check
    _
  $region11: #{transformer_forward.50} parent=0 // pred_check_branch
    %13 = sbr.rel (0) target = $region13
  $region12: #{transformer_forward.50} parent=0 // pred_region
    _
  $region13: #{transformer_forward.50} parent=0 // pred_fallthru
    _
  %p15 = scmp.eq.s32.totalorder 0, 0
  // Predicated region
  $region14: #{transformer_forward.50} parent=0 // pred_check
    %p16 = pneg %p15
  $region15: #{transformer_forward.50} parent=0 // pred_check_branch
    %18 = sbr.rel (%p16) target = $region17
  $region16: #{transformer_forward.50} parent=0 // pred_region
    %vm19 = vcmask 261120
    %20 = vst.msk [vmem:[#allocation2] sm:$0xff] %vm19, 0.0
    %21 = vst.msk [vmem:[#allocation2 + $0x8] sm:$0xff] %vm19, 0.0
  $region17: #{transformer_forward.50} parent=0 // pred_fallthru
    _
  %v22 = vld [vmem:[#allocation2] sm:$0xff]
  %v23 = vld [vmem:[#allocation2 + $0x8] sm:$0xff]
  %v24 = vld [vmem:[%s0] sm:$0xf]
  %v25 = vld [vmem:[%s0 + $0x4] sm:$0xf]
  %v26 = vld [vmem:[%s1] sm:$0xf]
  %v27 = vld [vmem:[%s1 + $0x4] sm:$0xf]
  %v28 = vld [vmem:[%s1 + $0x8] sm:$0xf]
  %v29 = vld [vmem:[%s1 + $0xc] sm:$0xf]
  %v32 = vunpack.c.l.b16 %v24
  %v33 = vunpack.c.l.b16 %v25
  %v34 = vpack.c.b16 %v33, %v32
  %v39 = vunpack.c.l.b16 %v26
  %v40 = vunpack.c.l.b16 %v27
  %v41 = vunpack.c.l.b16 %v28
  %v42 = vunpack.c.l.b16 %v29
  %v43 = vpack.c.b16 %v40, %v39
  %v44 = vpack.c.b16 %v42, %v41
  %vm47 = vcmask 261120
  %v49 = vsel %vm47, %v34, 0
  %51 = vmatpush.bf16.msra.mxu0 0
  %52 = vmatpush.bf16.msra.mxu0 0
  %53 = vmatpush.bf16.msra.mxu0 0
  %54 = vmatpush.bf16.msra.mxu0 0
  %55 = vmatpush.bf16.msra.mxu0 0
  %56 = vmatpush.bf16.msra.mxu0 0
  %57 = vmatpush.bf16.msra.mxu0 %v44
  %58 = vmatpush.bf16.msra.mxu0 %v43
  %59 = vmatmul.bf16.gmra.mxu0 %v49
  %v60 = vpop.f32.mrf.mxu0
  %v61 = vadd.f32 0.0, %v60
  %v62 = vpop.f32.mrf.mxu0
  %v63 = vadd.f32 0.0, %v62
  %64 = vdwg.mxu0
  %v65 = vadd.f32 %v22, %v61
  %v66 = vadd.f32 %v23, %v63
  %67 = vst.msk [vmem:[#allocation2] sm:$0xff] %vm47, %v65
  %68 = vst.msk [vmem:[#allocation2 + $0x8] sm:$0xff] %vm47, %v66
  // Predicated region
  $region18: #{transformer_forward.50} parent=0 // pred_check
    %p69 = pneg %p15
  $region19: #{transformer_forward.50} parent=0 // pred_check_branch
    %71 = sbr.rel (%p69) target = $region21
  $region20: #{transformer_forward.50} parent=0 // pred_region
    %v72 = vld [vmem:[#allocation2] sm:$0xff]
    %v73 = vld [vmem:[#allocation2 + $0x8] sm:$0xff]
    %v74 = vld [vmem:[%s2] sm:$0x1]
    %v76 = vperm.slane %v74, 0
    %v78 = vadd.f32 %v72, %v76
    %v79 = vadd.f32 %v73, %v76
    %v80 = vpack.c.bf16 %v78, %v78
    %v81 = vpack.c.bf16 %v79, %v79
    %vm82 = vcmask 257024
    %83 = vst.msk [vmem:[%s3] sm:$0xf] %vm82, %v80
    %84 = vst.msk [vmem:[%s3 + $0x4] sm:$0xf] %vm82, %v81
  $region21: #{transformer_forward.50} parent=0 // pred_fallthru
    _
  // Predicated region
  $region22: #{transformer_forward.50} parent=0 // pred_check
    _
  $region23: #{transformer_forward.50} parent=0 // pred_check_branch
    %86 = sbr.rel (0) target = $region25
  $region24: #{transformer_forward.50} parent=0 // pred_region
    _
  $region25: #{transformer_forward.50} parent=0 // pred_fallthru
    _
  // Predicated region
  $region26: #{transformer_forward.50} parent=0 // pred_check
    _
  $region27: #{transformer_forward.50} parent=0 // pred_check_branch
    %88 = sbr.rel (0) target = $region29
  $region28: #{transformer_forward.50} parent=0 // pred_region
    _
  $region29: #{transformer_forward.50} parent=0 // pred_fallthru
    _

// kernel: transformer_forward.45
$region0: #{transformer_forward.45}
  #allocation0 [shape = 'u32[]', space=smem, size = 0x4, offset = 0x4, fixed_abs, tag = 'smem constant byte address 0x4 - core index']
  #allocation1 [shape = 'u32[72,128]{1,0:T(1,128)}', space=vmem, size = 0x9000, scoped, tag = 'internal scratch']
  #allocation2 [shape = 'f32[16,64]{1,0:T(8,128)}', space=vmem, size = 0x2000, scoped, tag = 'scratch operand']
  %s0 = inlined_call_operand.vmem [shape: bf16[16,32], index: 0, kind: input, shape index: {}]
  %s1 = inlined_call_operand.vmem [shape: bf16[32,64], index: 1, kind: input, shape index: {}]
  %s2 = inlined_call_operand.hbm [shape: f32[1,64], index: 2, kind: input, shape index: {}]
  %s3 = inlined_call_operand.vmem [shape: bf16[16,64], index: 3, kind: output, shape index: {}]
  %s4 = sld [smem:[#allocation0]]
  $region34: #{transformer_forward.45} parent=0
    _
  %s6 = ssub.s32 1, %s4
  %s7 = scalar_select 0, %s6, %s4
  $region1: #{transformer_forward.45} parent=0
    #allocation3 [shape = 'u8[512]{0}', space=vmem, size = 0x400, scoped, tag = 'input window, operand 2, single buffered']
    #allocation4 [shape = 's32[1]{0}', space=sflag, size = 0x4, scoped, tag = 'scoped memory for transformer_forward.45']
    %8 = vsyncpa [#allocation4], 0
    // Predicated region
    $region2: #{transformer_forward.45} parent=1 // pred_check
      _
    $region3: #{transformer_forward.45} parent=1 // pred_check_branch
      %10 = sbr.rel (0) target = $region5
    $region4: #{transformer_forward.45} parent=1 // pred_region
      _
    $region5: #{transformer_forward.45} parent=1 // pred_fallthru
      _
    // Predicated region
    $region6: #{transformer_forward.45} parent=1 // pred_check
      _
    $region7: #{transformer_forward.45} parent=1 // pred_check_branch
      %12 = sbr.rel (0) target = $region9
    $region8: #{transformer_forward.45} parent=1 // pred_region
      _
    $region9: #{transformer_forward.45} parent=1 // pred_fallthru
      _
    // Predicated region
    $region10: #{transformer_forward.45} parent=1 // pred_check
      _
    $region11: #{transformer_forward.45} parent=1 // pred_check_branch
      %14 = sbr.rel (0) target = $region13
    $region12: #{transformer_forward.45} parent=1 // pred_region
      %16 = vsyncadd [#allocation4], 0
      %s18 = sshll.u32 %s2, 4
      %s19 = int_to_ptr.hbm [resolvable:$true] %s18
      %s20 = sshll.u32 [#allocation3], 4
      %s21 = int_to_ptr.vmem [resolvable:$true] %s20
      %23 = dma.hbm_to_vmem [thread:$0]  %s19, 16, %s21, [#allocation4]
    $region13: #{transformer_forward.45} parent=1 // pred_fallthru
      _
    // Predicated region
    $region14: #{transformer_forward.45} parent=1 // pred_check
      _
    $region15: #{transformer_forward.45} parent=1 // pred_check_branch
      %25 = sbr.rel (0) target = $region17
    $region16: #{transformer_forward.45} parent=1 // pred_region
      %27 = dma.done [#allocation4], 16
    $region17: #{transformer_forward.45} parent=1 // pred_fallthru
      _
    %p29 = scmp.eq.s32.totalorder 0, 0
    // Predicated region
    $region18: #{transformer_forward.45} parent=1 // pred_check
      %p30 = pneg %p29
    $region19: #{transformer_forward.45} parent=1 // pred_check_branch
      %32 = sbr.rel (%p30) target = $region21
    $region20: #{transformer_forward.45} parent=1 // pred_region
      %vm33 = vcmask 523264
      %34 = vst.msk [vmem:[#allocation2] sm:$0xff] %vm33, 0.0
      %35 = vst.msk [vmem:[#allocation2 + $0x8] sm:$0xff] %vm33, 0.0
    $region21: #{transformer_forward.45} parent=1 // pred_fallthru
      _
    %v36 = vld [vmem:[#allocation2] sm:$0xff]
    %v37 = vld [vmem:[#allocation2 + $0x8] sm:$0xff]
    %v38 = vld [vmem:[%s0] sm:$0xf]
    %v39 = vld [vmem:[%s0 + $0x4] sm:$0xf]
    %v40 = vld [vmem:[%s1] sm:$0xf]
    %v41 = vld [vmem:[%s1 + $0x4] sm:$0xf]
    %v42 = vld [vmem:[%s1 + $0x8] sm:$0xf]
    %v43 = vld [vmem:[%s1 + $0xc] sm:$0xf]
    %v46 = vunpack.c.l.b16 %v38
    %v47 = vunpack.c.l.b16 %v39
    %v48 = vpack.c.b16 %v47, %v46
    %v53 = vunpack.c.l.b16 %v40
    %v54 = vunpack.c.l.b16 %v41
    %v55 = vunpack.c.l.b16 %v42
    %v56 = vunpack.c.l.b16 %v43
    %v57 = vpack.c.b16 %v54, %v53
    %v58 = vpack.c.b16 %v56, %v55
    %vm61 = vcmask 261120
    %v63 = vsel %vm61, %v48, 0
    %65 = vmatpush.bf16.msra.mxu0 0
    %66 = vmatpush.bf16.msra.mxu0 0
    %67 = vmatpush.bf16.msra.mxu0 0
    %68 = vmatpush.bf16.msra.mxu0 0
    %69 = vmatpush.bf16.msra.mxu0 0
    %70 = vmatpush.bf16.msra.mxu0 0
    %71 = vmatpush.bf16.msra.mxu0 %v58
    %72 = vmatpush.bf16.msra.mxu0 %v57
    %73 = vmatmul.bf16.gmra.mxu0 %v63
    %v74 = vpop.f32.mrf.mxu0
    %v75 = vadd.f32 0.0, %v74
    %v76 = vpop.f32.mrf.mxu0
    %v77 = vadd.f32 0.0, %v76
    %78 = vdwg.mxu0
    %v79 = vadd.f32 %v36, %v75
    %v80 = vadd.f32 %v37, %v77
    %vm81 = vcmask 523264
    %82 = vst.msk [vmem:[#allocation2] sm:$0xff] %vm81, %v79
    %83 = vst.msk [vmem:[#allocation2 + $0x8] sm:$0xff] %vm81, %v80
    // Predicated region
    $region22: #{transformer_forward.45} parent=1 // pred_check
      %p84 = pneg %p29
    $region23: #{transformer_forward.45} parent=1 // pred_check_branch
      %86 = sbr.rel (%p84) target = $region25
    $region24: #{transformer_forward.45} parent=1 // pred_region
      %v87 = vld [vmem:[#allocation2] sm:$0xff]
      %v88 = vld [vmem:[#allocation2 + $0x8] sm:$0xff]
      %v89 = vld [vmem:[#allocation3] sm:$0x1]
      %v91 = vperm.slane %v89, 0
      %v93 = vadd.f32 %v87, %v91
      %v94 = vadd.f32 %v88, %v91
      %v95 = vmax.f32 %v93, 0.0
      %v96 = vmax.f32 %v94, 0.0
      %v97 = vpack.c.bf16 %v95, %v95
      %v98 = vpack.c.bf16 %v96, %v96
      %vm99 = vcmask 519168
      %100 = vst.msk [vmem:[%s3] sm:$0xf] %vm99, %v97
      %101 = vst.msk [vmem:[%s3 + $0x4] sm:$0xf] %vm99, %v98
    $region25: #{transformer_forward.45} parent=1 // pred_fallthru
      _
    // Predicated region
    $region26: #{transformer_forward.45} parent=1 // pred_check
      _
    $region27: #{transformer_forward.45} parent=1 // pred_check_branch
      %103 = sbr.rel (0) target = $region29
    $region28: #{transformer_forward.45} parent=1 // pred_region
      _
    $region29: #{transformer_forward.45} parent=1 // pred_fallthru
      _
    // Predicated region
    $region30: #{transformer_forward.45} parent=1 // pred_check
      _
    $region31: #{transformer_forward.45} parent=1 // pred_check_branch
      %105 = sbr.rel (0) target = $region33
    $region32: #{transformer_forward.45} parent=1 // pred_region
      _
    $region33: #{transformer_forward.45} parent=1 // pred_fallthru
      _
    %106 = vsyncpa [#allocation4], 1

// kernel: transformer_forward.44
$region0: #{transformer_forward.44}
  #allocation0 [shape = 'u32[]', space=smem, size = 0x4, offset = 0x4, fixed_abs, tag = 'smem constant byte address 0x4 - core index']
  #allocation1 [shape = 'u32[72,128]{1,0:T(1,128)}', space=vmem, size = 0x9000, scoped, tag = 'internal scratch']
  #allocation2 [shape = 'f32[16,32]{1,0:T(8,128)}', space=vmem, size = 0x2000, scoped, tag = 'scratch operand']
  %s0 = inlined_call_operand.vmem [shape: bf16[16,32], index: 0, kind: input, shape index: {}]
  %s1 = inlined_call_operand.vmem [shape: bf16[32,32], index: 1, kind: input, shape index: {}]
  %s2 = inlined_call_operand.hbm [shape: f32[1,32], index: 2, kind: input, shape index: {}]
  %s3 = inlined_call_operand.vmem [shape: bf16[16,32], index: 3, kind: input, shape index: {}]
  %s4 = inlined_call_operand.hbm [shape: f32[1,32], index: 4, kind: input, shape index: {}]
  %s5 = inlined_call_operand.hbm [shape: f32[1,32], index: 5, kind: input, shape index: {}]
  %s6 = inlined_call_operand.vmem [shape: bf16[16,32], index: 6, kind: output, shape index: {}]
  %s7 = sld [smem:[#allocation0]]
  $region54: #{transformer_forward.44} parent=0
    _
  %s9 = ssub.s32 1, %s7
  %s10 = scalar_select 0, %s9, %s7
  $region1: #{transformer_forward.44} parent=0
    #allocation3 [shape = 'u8[512]{0}', space=vmem, size = 0x400, scoped, tag = 'input window, operand 2, single buffered']
    #allocation4 [shape = 's32[1]{0}', space=sflag, size = 0x4, scoped, tag = 'scoped memory for transformer_forward.44']
    #allocation5 [shape = 'u8[512]{0}', space=vmem, size = 0x400, scoped, tag = 'input window, operand 4, single buffered']
    #allocation6 [shape = 's32[1]{0}', space=sflag, size = 0x4, scoped, tag = 'scoped memory for transformer_forward.44']
    #allocation7 [shape = 'u8[512]{0}', space=vmem, size = 0x400, scoped, tag = 'input window, operand 5, single buffered']
    %11 = vsyncpa [#allocation4], 0
    %12 = vsyncpa [#allocation6], 0
    // Predicated region
    $region2: #{transformer_forward.44} parent=1 // pred_check
      _
    $region3: #{transformer_forward.44} parent=1 // pred_check_branch
      %14 = sbr.rel (0) target = $region5
    $region4: #{transformer_forward.44} parent=1 // pred_region
      _
    $region5: #{transformer_forward.44} parent=1 // pred_fallthru
      _
    // Predicated region
    $region6: #{transformer_forward.44} parent=1 // pred_check
      _
    $region7: #{transformer_forward.44} parent=1 // pred_check_branch
      %16 = sbr.rel (0) target = $region9
    $region8: #{transformer_forward.44} parent=1 // pred_region
      _
    $region9: #{transformer_forward.44} parent=1 // pred_fallthru
      _
    // Predicated region
    $region10: #{transformer_forward.44} parent=1 // pred_check
      _
    $region11: #{transformer_forward.44} parent=1 // pred_check_branch
      %18 = sbr.rel (0) target = $region13
    $region12: #{transformer_forward.44} parent=1 // pred_region
      %20 = vsyncadd [#allocation4], 0
      %s22 = sshll.u32 %s2, 4
      %s23 = int_to_ptr.hbm [resolvable:$true] %s22
      %s24 = sshll.u32 [#allocation3], 4
      %s25 = int_to_ptr.vmem [resolvable:$true] %s24
      %27 = dma.hbm_to_vmem [thread:$0]  %s23, 16, %s25, [#allocation4]
    $region13: #{transformer_forward.44} parent=1 // pred_fallthru
      _
    // Predicated region
    $region14: #{transformer_forward.44} parent=1 // pred_check
      _
    $region15: #{transformer_forward.44} parent=1 // pred_check_branch
      %29 = sbr.rel (0) target = $region17
    $region16: #{transformer_forward.44} parent=1 // pred_region
      _
    $region17: #{transformer_forward.44} parent=1 // pred_fallthru
      _
    // Predicated region
    $region18: #{transformer_forward.44} parent=1 // pred_check
      _
    $region19: #{transformer_forward.44} parent=1 // pred_check_branch
      %31 = sbr.rel (0) target = $region21
    $region20: #{transformer_forward.44} parent=1 // pred_region
      %33 = vsyncadd [#allocation6], 0
      %s35 = sshll.u32 %s4, 4
      %s36 = int_to_ptr.hbm [resolvable:$true] %s35
      %s37 = sshll.u32 [#allocation5], 4
      %s38 = int_to_ptr.vmem [resolvable:$true] %s37
      %40 = dma.hbm_to_vmem [thread:$0]  %s36, 16, %s38, [#allocation6]
    $region21: #{transformer_forward.44} parent=1 // pred_fallthru
      _
    // Predicated region
    $region22: #{transformer_forward.44} parent=1 // pred_check
      _
    $region23: #{transformer_forward.44} parent=1 // pred_check_branch
      %42 = sbr.rel (0) target = $region25
    $region24: #{transformer_forward.44} parent=1 // pred_region
      %44 = vsyncadd [#allocation6], 0
      %s46 = sshll.u32 %s5, 4
      %s47 = int_to_ptr.hbm [resolvable:$true] %s46
      %s48 = sshll.u32 [#allocation7], 4
      %s49 = int_to_ptr.vmem [resolvable:$true] %s48
      %51 = dma.hbm_to_vmem [thread:$0]  %s47, 16, %s49, [#allocation6]
    $region25: #{transformer_forward.44} parent=1 // pred_fallthru
      _
    // Predicated region
    $region26: #{transformer_forward.44} parent=1 // pred_check
      _
    $region27: #{transformer_forward.44} parent=1 // pred_check_branch
      %53 = sbr.rel (0) target = $region29
    $region28: #{transformer_forward.44} parent=1 // pred_region
      %55 = dma.done [#allocation4], 16
    $region29: #{transformer_forward.44} parent=1 // pred_fallthru
      _
    // Predicated region
    $region30: #{transformer_forward.44} parent=1 // pred_check
      _
    $region31: #{transformer_forward.44} parent=1 // pred_check_branch
      %57 = sbr.rel (0) target = $region33
    $region32: #{transformer_forward.44} parent=1 // pred_region
      %59 = dma.done [#allocation6], 16
    $region33: #{transformer_forward.44} parent=1 // pred_fallthru
      _
    // Predicated region
    $region34: #{transformer_forward.44} parent=1 // pred_check
      _
    $region35: #{transformer_forward.44} parent=1 // pred_check_branch
      %61 = sbr.rel (0) target = $region37
    $region36: #{transformer_forward.44} parent=1 // pred_region
      %63 = dma.done [#allocation6], 16
    $region37: #{transformer_forward.44} parent=1 // pred_fallthru
      _
    %p65 = scmp.eq.s32.totalorder 0, 0
    // Predicated region
    $region38: #{transformer_forward.44} parent=1 // pred_check
      %p66 = pneg %p65
    $region39: #{transformer_forward.44} parent=1 // pred_check_branch
      %68 = sbr.rel (%p66) target = $region41
    $region40: #{transformer_forward.44} parent=1 // pred_region
      %vm69 = vcmask 261120
      %70 = vst.msk [vmem:[#allocation2] sm:$0xff] %vm69, 0.0
      %71 = vst.msk [vmem:[#allocation2 + $0x8] sm:$0xff] %vm69, 0.0
    $region41: #{transformer_forward.44} parent=1 // pred_fallthru
      _
    %v72 = vld [vmem:[#allocation2] sm:$0xff]
    %v73 = vld [vmem:[#allocation2 + $0x8] sm:$0xff]
    %v74 = vld [vmem:[%s0] sm:$0xf]
    %v75 = vld [vmem:[%s0 + $0x4] sm:$0xf]
    %v76 = vld [vmem:[%s1] sm:$0xf]
    %v77 = vld [vmem:[%s1 + $0x4] sm:$0xf]
    %v78 = vld [vmem:[%s1 + $0x8] sm:$0xf]
    %v79 = vld [vmem:[%s1 + $0xc] sm:$0xf]
    %v82 = vunpack.c.l.b16 %v74
    %v83 = vunpack.c.l.b16 %v75
    %v84 = vpack.c.b16 %v83, %v82
    %v89 = vunpack.c.l.b16 %v76
    %v90 = vunpack.c.l.b16 %v77
    %v91 = vunpack.c.l.b16 %v78
    %v92 = vunpack.c.l.b16 %v79
    %v93 = vpack.c.b16 %v90, %v89
    %v94 = vpack.c.b16 %v92, %v91
    %vm97 = vcmask 261120
    %v99 = vsel %vm97, %v84, 0
    %101 = vmatpush.bf16.msra.mxu0 0
    %102 = vmatpush.bf16.msra.mxu0 0
    %103 = vmatpush.bf16.msra.mxu0 0
    %104 = vmatpush.bf16.msra.mxu0 0
    %105 = vmatpush.bf16.msra.mxu0 0
    %106 = vmatpush.bf16.msra.mxu0 0
    %107 = vmatpush.bf16.msra.mxu0 %v94
    %108 = vmatpush.bf16.msra.mxu0 %v93
    %109 = vmatmul.bf16.gmra.mxu0 %v99
    %v110 = vpop.f32.mrf.mxu0
    %v111 = vadd.f32 0.0, %v110
    %v112 = vpop.f32.mrf.mxu0
    %v113 = vadd.f32 0.0, %v112
    %114 = vdwg.mxu0
    %v115 = vadd.f32 %v72, %v111
    %v116 = vadd.f32 %v73, %v113
    %117 = vst.msk [vmem:[#allocation2] sm:$0xff] %vm97, %v115
    %118 = vst.msk [vmem:[#allocation2 + $0x8] sm:$0xff] %vm97, %v116
    // Predicated region
    $region42: #{transformer_forward.44} parent=1 // pred_check
      %p119 = pneg %p65
    $region43: #{transformer_forward.44} parent=1 // pred_check_branch
      %121 = sbr.rel (%p119) target = $region45
    $region44: #{transformer_forward.44} parent=1 // pred_region
      %v122 = vld [vmem:[#allocation2] sm:$0xff]
      %v123 = vld [vmem:[#allocation2 + $0x8] sm:$0xff]
      %v124 = vld [vmem:[#allocation3] sm:$0x1]
      %v126 = vperm.slane %v124, 0
      %v128 = vadd.f32 %v122, %v126
      %v129 = vadd.f32 %v123, %v126
      %v130 = vld [vmem:[%s3] sm:$0xf]
      %v131 = vld [vmem:[%s3 + $0x4] sm:$0xf]
      %v132 = vunpack.c.l.bf16 %v130
      %v133 = vunpack.c.l.bf16 %v131
      %v134 = vadd.f32 %v128, %v132
      %v135 = vadd.f32 %v129, %v133
      %v136 = vsel %vm97, %v134, 0.0
      %137 = vadd.xlane.f32.xlu0 %v136
      %v138 = vpop.xlane.xlu0 %137
      %v139 = vsel %vm97, %v135, 0.0
      %140 = vadd.xlane.f32.xlu0 %v139
      %v141 = vpop.xlane.xlu0 %140
      %v142 = vrcp.pop 32.0
      %v143 = vmul.f32 32.0, %v142
      %v144 = vsub.f32 1.0, %v143
      %v145 = vmul.f32 %v142, %v144
      %v146 = vadd.f32 %v142, %v145
      %vm147 = vweird.f32 %v142
      %v148 = vsel %vm147, %v142, %v146
      %v149 = vmul.f32 %v138, %v148
      %v150 = vmul.f32 %v141, %v148
      %v151 = vsub.f32 %v134, %v149
      %v152 = vsub.f32 %v135, %v150
      %v153 = vmul.f32 %v151, %v151
      %v154 = vmul.f32 %v152, %v152
      %v155 = vsel %vm97, %v153, 0.0
      %156 = vadd.xlane.f32.xlu0 %v155
      %v157 = vpop.xlane.xlu0 %156
      %v158 = vsel %vm97, %v154, 0.0
      %159 = vadd.xlane.f32.xlu0 %v158
      %v160 = vpop.xlane.xlu0 %159
      %v161 = vmul.f32 %v157, %v148
      %v162 = vmul.f32 %v160, %v148
      %v163 = vadd.f32 %v161, 1e-05
      %v164 = vadd.f32 %v162, 1e-05
      %v165 = vrsqrt.pop %v163
      %v166 = vmul.f32 %v165, %v163
      %v167 = vmul.f32 %v166, %v165
      %v168 = vmul.f32 0.5, %v167
      %v169 = vsub.f32 1.5, %v168
      %v170 = vmul.f32 %v165, %v169
      %vm171 = vweird.f32 %v163
      %vm172 = vweird.f32 %v165
      %vm173 = vmor %vm171, %vm172
      %v174 = vsel %vm173, %v165, %v170
      %v175 = vrsqrt.pop %v164
      %v176 = vmul.f32 %v175, %v164
      %v177 = vmul.f32 %v176, %v175
      %v178 = vmul.f32 0.5, %v177
      %v179 = vsub.f32 1.5, %v178
      %v180 = vmul.f32 %v175, %v179
      %vm181 = vweird.f32 %v164
      %vm182 = vweird.f32 %v175
      %vm183 = vmor %vm181, %vm182
      %v184 = vsel %vm183, %v175, %v180
      %v185 = vmul.f32 %v151, %v174
      %v186 = vmul.f32 %v152, %v184
      %v187 = vld [vmem:[#allocation5] sm:$0x1]
      %v189 = vperm.slane %v187, 0
      %v191 = vmul.f32 %v185, %v189
      %v192 = vmul.f32 %v186, %v189
      %v193 = vld [vmem:[#allocation7] sm:$0x1]
      %v195 = vperm.slane %v193, 0
      %v197 = vadd.f32 %v191, %v195
      %v198 = vadd.f32 %v192, %v195
      %v199 = vpack.c.bf16 %v197, %v197
      %v200 = vpack.c.bf16 %v198, %v198
      %vm201 = vcmask 257024
      %202 = vst.msk [vmem:[%s6] sm:$0xf] %vm201, %v199
      %203 = vst.msk [vmem:[%s6 + $0x4] sm:$0xf] %vm201, %v200
    $region45: #{transformer_forward.44} parent=1 // pred_fallthru
      _
    // Predicated region
    $region46: #{transformer_forward.44} parent=1 // pred_check
      _
    $region47: #{transformer_forward.44} parent=1 // pred_check_branch
      %205 = sbr.rel (0) target = $region49
    $region48: #{transformer_forward.44} parent=1 // pred_region
      _
    $region49: #{transformer_forward.44} parent=1 // pred_fallthru
      _
    // Predicated region
    $region50: #{transformer_forward.44} parent=1 // pred_check
      _
    $region51: #{transformer_forward.44} parent=1 // pred_check_branch
      %207 = sbr.rel (0) target = $region53
    $region52: #{transformer_forward.44} parent=1 // pred_region
      _
    $region53: #{transformer_forward.44} parent=1 // pred_fallthru
      _
    %208 = vsyncpa [#allocation4], 1
    %209 = vsyncpa [#allocation6], 1

// kernel: transformer_forward.53
$region0: #{transformer_forward.53}
  #allocation0 [shape = 'u32[]', space=smem, size = 0x4, offset = 0x4, fixed_abs, tag = 'smem constant byte address 0x4 - core index']
  #allocation1 [shape = 'u32[72,128]{1,0:T(1,128)}', space=vmem, size = 0x9000, scoped, tag = 'internal scratch']
  #allocation2 [shape = 'f32[16,32]{1,0:T(8,128)}', space=vmem, size = 0x2000, scoped, tag = 'scratch operand']
  %s0 = inlined_call_operand.vmem [shape: bf16[16,32], index: 0, kind: input, shape index: {}]
  %s1 = inlined_call_operand.vmem [shape: bf16[32,32], index: 1, kind: input, shape index: {}]
  %s2 = inlined_call_operand.vmem [shape: f32[1,32], index: 2, kind: input, shape index: {}]
  %s3 = inlined_call_operand.vmem [shape: bf16[16,32], index: 3, kind: input, shape index: {}]
  %s4 = inlined_call_operand.hbm [shape: f32[1,32], index: 4, kind: input, shape index: {}]
  %s5 = inlined_call_operand.hbm [shape: f32[1,32], index: 5, kind: input, shape index: {}]
  %s6 = inlined_call_operand.vmem [shape: bf16[16,32], index: 6, kind: output, shape index: {}]
  %s7 = sld [smem:[#allocation0]]
  $region50: #{transformer_forward.53} parent=0
    _
  %s9 = ssub.s32 1, %s7
  %s10 = scalar_select 0, %s9, %s7
  $region1: #{transformer_forward.53} parent=0
    #allocation3 [shape = 'u8[512]{0}', space=vmem, size = 0x400, scoped, tag = 'input window, operand 4, single buffered']
    #allocation4 [shape = 's32[1]{0}', space=sflag, size = 0x4, scoped, tag = 'scoped memory for transformer_forward.53']
    #allocation5 [shape = 'u8[512]{0}', space=vmem, size = 0x400, scoped, tag = 'input window, operand 5, single buffered']
    #allocation6 [shape = 's32[1]{0}', space=sflag, size = 0x4, scoped, tag = 'scoped memory for transformer_forward.53']
    %11 = vsyncpa [#allocation4], 0
    %12 = vsyncpa [#allocation6], 0
    // Predicated region
    $region2: #{transformer_forward.53} parent=1 // pred_check
      _
    $region3: #{transformer_forward.53} parent=1 // pred_check_branch
      %14 = sbr.rel (0) target = $region5
    $region4: #{transformer_forward.53} parent=1 // pred_region
      _
    $region5: #{transformer_forward.53} parent=1 // pred_fallthru
      _
    // Predicated region
    $region6: #{transformer_forward.53} parent=1 // pred_check
      _
    $region7: #{transformer_forward.53} parent=1 // pred_check_branch
      %16 = sbr.rel (0) target = $region9
    $region8: #{transformer_forward.53} parent=1 // pred_region
      _
    $region9: #{transformer_forward.53} parent=1 // pred_fallthru
      _
    // Predicated region
    $region10: #{transformer_forward.53} parent=1 // pred_check
      _
    $region11: #{transformer_forward.53} parent=1 // pred_check_branch
      %18 = sbr.rel (0) target = $region13
    $region12: #{transformer_forward.53} parent=1 // pred_region
      _
    $region13: #{transformer_forward.53} parent=1 // pred_fallthru
      _
    // Predicated region
    $region14: #{transformer_forward.53} parent=1 // pred_check
      _
    $region15: #{transformer_forward.53} parent=1 // pred_check_branch
      %20 = sbr.rel (0) target = $region17
    $region16: #{transformer_forward.53} parent=1 // pred_region
      _
    $region17: #{transformer_forward.53} parent=1 // pred_fallthru
      _
    // Predicated region
    $region18: #{transformer_forward.53} parent=1 // pred_check
      _
    $region19: #{transformer_forward.53} parent=1 // pred_check_branch
      %22 = sbr.rel (0) target = $region21
    $region20: #{transformer_forward.53} parent=1 // pred_region
      %24 = vsyncadd [#allocation4], 0
      %s26 = sshll.u32 %s4, 4
      %s27 = int_to_ptr.hbm [resolvable:$true] %s26
      %s28 = sshll.u32 [#allocation3], 4
      %s29 = int_to_ptr.vmem [resolvable:$true] %s28
      %31 = dma.hbm_to_vmem [thread:$0]  %s27, 16, %s29, [#allocation4]
    $region21: #{transformer_forward.53} parent=1 // pred_fallthru
      _
    // Predicated region
    $region22: #{transformer_forward.53} parent=1 // pred_check
      _
    $region23: #{transformer_forward.53} parent=1 // pred_check_branch
      %33 = sbr.rel (0) target = $region25
    $region24: #{transformer_forward.53} parent=1 // pred_region
      %35 = vsyncadd [#allocation6], 0
      %s37 = sshll.u32 %s5, 4
      %s38 = int_to_ptr.hbm [resolvable:$true] %s37
      %s39 = sshll.u32 [#allocation5], 4
      %s40 = int_to_ptr.vmem [resolvable:$true] %s39
      %42 = dma.hbm_to_vmem [thread:$0]  %s38, 16, %s40, [#allocation6]
    $region25: #{transformer_forward.53} parent=1 // pred_fallthru
      _
    // Predicated region
    $region26: #{transformer_forward.53} parent=1 // pred_check
      _
    $region27: #{transformer_forward.53} parent=1 // pred_check_branch
      %44 = sbr.rel (0) target = $region29
    $region28: #{transformer_forward.53} parent=1 // pred_region
      %46 = dma.done [#allocation4], 16
    $region29: #{transformer_forward.53} parent=1 // pred_fallthru
      _
    // Predicated region
    $region30: #{transformer_forward.53} parent=1 // pred_check
      _
    $region31: #{transformer_forward.53} parent=1 // pred_check_branch
      %48 = sbr.rel (0) target = $region33
    $region32: #{transformer_forward.53} parent=1 // pred_region
      %50 = dma.done [#allocation6], 16
    $region33: #{transformer_forward.53} parent=1 // pred_fallthru
      _
    %p52 = scmp.eq.s32.totalorder 0, 0
    // Predicated region
    $region34: #{transformer_forward.53} parent=1 // pred_check
      %p53 = pneg %p52
    $region35: #{transformer_forward.53} parent=1 // pred_check_branch
      %55 = sbr.rel (%p53) target = $region37
    $region36: #{transformer_forward.53} parent=1 // pred_region
      %vm56 = vcmask 261120
      %57 = vst.msk [vmem:[#allocation2] sm:$0xff] %vm56, 0.0
      %58 = vst.msk [vmem:[#allocation2 + $0x8] sm:$0xff] %vm56, 0.0
    $region37: #{transformer_forward.53} parent=1 // pred_fallthru
      _
    %v59 = vld [vmem:[#allocation2] sm:$0xff]
    %v60 = vld [vmem:[#allocation2 + $0x8] sm:$0xff]
    %v61 = vld [vmem:[%s0] sm:$0xf]
    %v62 = vld [vmem:[%s0 + $0x4] sm:$0xf]
    %v63 = vld [vmem:[%s1] sm:$0xf]
    %v64 = vld [vmem:[%s1 + $0x4] sm:$0xf]
    %v65 = vld [vmem:[%s1 + $0x8] sm:$0xf]
    %v66 = vld [vmem:[%s1 + $0xc] sm:$0xf]
    %v69 = vunpack.c.l.b16 %v61
    %v70 = vunpack.c.l.b16 %v62
    %v71 = vpack.c.b16 %v70, %v69
    %v76 = vunpack.c.l.b16 %v63
    %v77 = vunpack.c.l.b16 %v64
    %v78 = vunpack.c.l.b16 %v65
    %v79 = vunpack.c.l.b16 %v66
    %v80 = vpack.c.b16 %v77, %v76
    %v81 = vpack.c.b16 %v79, %v78
    %vm84 = vcmask 261120
    %v86 = vsel %vm84, %v71, 0
    %88 = vmatpush.bf16.msra.mxu0 0
    %89 = vmatpush.bf16.msra.mxu0 0
    %90 = vmatpush.bf16.msra.mxu0 0
    %91 = vmatpush.bf16.msra.mxu0 0
    %92 = vmatpush.bf16.msra.mxu0 0
    %93 = vmatpush.bf16.msra.mxu0 0
    %94 = vmatpush.bf16.msra.mxu0 %v81
    %95 = vmatpush.bf16.msra.mxu0 %v80
    %96 = vmatmul.bf16.gmra.mxu0 %v86
    %v97 = vpop.f32.mrf.mxu0
    %v98 = vadd.f32 0.0, %v97
    %v99 = vpop.f32.mrf.mxu0
    %v100 = vadd.f32 0.0, %v99
    %101 = vdwg.mxu0
    %v102 = vadd.f32 %v59, %v98
    %v103 = vadd.f32 %v60, %v100
    %104 = vst.msk [vmem:[#allocation2] sm:$0xff] %vm84, %v102
    %105 = vst.msk [vmem:[#allocation2 + $0x8] sm:$0xff] %vm84, %v103
    // Predicated region
    $region38: #{transformer_forward.53} parent=1 // pred_check
      %p106 = pneg %p52
    $region39: #{transformer_forward.53} parent=1 // pred_check_branch
      %108 = sbr.rel (%p106) target = $region41
    $region40: #{transformer_forward.53} parent=1 // pred_region
      %v109 = vld [vmem:[#allocation2] sm:$0xff]
      %v110 = vld [vmem:[#allocation2 + $0x8] sm:$0xff]
      %v111 = vld [vmem:[%s2] sm:$0x1]
      %v113 = vperm.slane %v111, 0
      %v115 = vadd.f32 %v109, %v113
      %v116 = vadd.f32 %v110, %v113
      %v117 = vld [vmem:[%s3] sm:$0xf]
      %v118 = vld [vmem:[%s3 + $0x4] sm:$0xf]
      %v119 = vunpack.c.l.bf16 %v117
      %v120 = vunpack.c.l.bf16 %v118
      %v121 = vadd.f32 %v115, %v119
      %v122 = vadd.f32 %v116, %v120
      %v123 = vsel %vm84, %v121, 0.0
      %124 = vadd.xlane.f32.xlu0 %v123
      %v125 = vpop.xlane.xlu0 %124
      %v126 = vsel %vm84, %v122, 0.0
      %127 = vadd.xlane.f32.xlu0 %v126
      %v128 = vpop.xlane.xlu0 %127
      %v129 = vrcp.pop 32.0
      %v130 = vmul.f32 32.0, %v129
      %v131 = vsub.f32 1.0, %v130
      %v132 = vmul.f32 %v129, %v131
      %v133 = vadd.f32 %v129, %v132
      %vm134 = vweird.f32 %v129
      %v135 = vsel %vm134, %v129, %v133
      %v136 = vmul.f32 %v125, %v135
      %v137 = vmul.f32 %v128, %v135
      %v138 = vsub.f32 %v121, %v136
      %v139 = vsub.f32 %v122, %v137
      %v140 = vmul.f32 %v138, %v138
      %v141 = vmul.f32 %v139, %v139
      %v142 = vsel %vm84, %v140, 0.0
      %143 = vadd.xlane.f32.xlu0 %v142
      %v144 = vpop.xlane.xlu0 %143
      %v145 = vsel %vm84, %v141, 0.0
      %146 = vadd.xlane.f32.xlu0 %v145
      %v147 = vpop.xlane.xlu0 %146
      %v148 = vmul.f32 %v144, %v135
      %v149 = vmul.f32 %v147, %v135
      %v150 = vadd.f32 %v148, 1e-05
      %v151 = vadd.f32 %v149, 1e-05
      %v152 = vrsqrt.pop %v150
      %v153 = vmul.f32 %v152, %v150
      %v154 = vmul.f32 %v153, %v152
      %v155 = vmul.f32 0.5, %v154
      %v156 = vsub.f32 1.5, %v155
      %v157 = vmul.f32 %v152, %v156
      %vm158 = vweird.f32 %v150
      %vm159 = vweird.f32 %v152
      %vm160 = vmor %vm158, %vm159
      %v161 = vsel %vm160, %v152, %v157
      %v162 = vrsqrt.pop %v151
      %v163 = vmul.f32 %v162, %v151
      %v164 = vmul.f32 %v163, %v162
      %v165 = vmul.f32 0.5, %v164
      %v166 = vsub.f32 1.5, %v165
      %v167 = vmul.f32 %v162, %v166
      %vm168 = vweird.f32 %v151
      %vm169 = vweird.f32 %v162
      %vm170 = vmor %vm168, %vm169
      %v171 = vsel %vm170, %v162, %v167
      %v172 = vmul.f32 %v138, %v161
      %v173 = vmul.f32 %v139, %v171
      %v174 = vld [vmem:[#allocation3] sm:$0x1]
      %v176 = vperm.slane %v174, 0
      %v178 = vmul.f32 %v172, %v176
      %v179 = vmul.f32 %v173, %v176
      %v180 = vld [vmem:[#allocation5] sm:$0x1]
      %v182 = vperm.slane %v180, 0
      %v184 = vadd.f32 %v178, %v182
      %v185 = vadd.f32 %v179, %v182
      %v186 = vpack.c.bf16 %v184, %v184
      %v187 = vpack.c.bf16 %v185, %v185
      %vm188 = vcmask 257024
      %189 = vst.msk [vmem:[%s6] sm:$0xf] %vm188, %v186
      %190 = vst.msk [vmem:[%s6 + $0x4] sm:$0xf] %vm188, %v187
    $region41: #{transformer_forward.53} parent=1 // pred_fallthru
      _
    // Predicated region
    $region42: #{transformer_forward.53} parent=1 // pred_check
      _
    $region43: #{transformer_forward.53} parent=1 // pred_check_branch
      %192 = sbr.rel (0) target = $region45
    $region44: #{transformer_forward.53} parent=1 // pred_region
      _
    $region45: #{transformer_forward.53} parent=1 // pred_fallthru
      _
    // Predicated region
    $region46: #{transformer_forward.53} parent=1 // pred_check
      _
    $region47: #{transformer_forward.53} parent=1 // pred_check_branch
      %194 = sbr.rel (0) target = $region49
    $region48: #{transformer_forward.53} parent=1 // pred_region
      _
    $region49: #{transformer_forward.53} parent=1 // pred_fallthru
      _
    %195 = vsyncpa [#allocation4], 1
    %196 = vsyncpa [#allocation6], 1

</llo_original>
